<compile_context>
chip_gen: v5e
topology: v5e:2x2
jax: 0.10.0
libtpu: 0.0.40
codegen_flags: <defaults>
</compile_context>

<pallas_src>
import functools
import math

import jax
import jax.numpy as jnp
from jax.experimental import pallas as pl
from jax.experimental.pallas import tpu as pltpu


# ----------------------------- shared helpers ------------------------------

def _layer_norm(x, gamma, beta, eps):
    mean = jnp.mean(x, axis=-1, keepdims=True)
    var = jnp.mean((x - mean) ** 2, axis=-1, keepdims=True)
    return (x - mean) * jax.lax.rsqrt(var + eps) * gamma + beta


def _gelu(x):
    # TODO(synk): HF Roberta uses exact erf-GELU; tanh approximation used here
    # because Mosaic erf lowering support is not guaranteed.
    c = math.sqrt(2.0 / math.pi)
    return 0.5 * x * (1.0 + jnp.tanh(c * (x + 0.044715 * x * x * x)))


# ------------------------------ Pallas kernel ------------------------------

def roberta_layer_kernel(
    x_ref,
    wq_ref, bq_ref, wk_ref, bk_ref, wv_ref, bv_ref,
    wo_ref, bo_ref, ln1_g_ref, ln1_b_ref,
    wi_ref, bi_ref, w2_ref, b2_ref, ln2_g_ref, ln2_b_ref,
    out_ref,
    *, num_heads, head_dim, eps, matmul_dtype,
):
    Bb, S, H = x_ref.shape
    x_f32 = x_ref[...].astype(jnp.float32).reshape(Bb * S, H)   # residual path
    x_mm = x_f32.astype(matmul_dtype)                           # cast once

    def mm(a_mm, w_ref, b_ref):
        # bf16 x bf16 -> f32 accumulate on the MXU; bias add in f32.
        return jax.lax.dot_general(
            a_mm, w_ref[...],
            dimension_numbers=(((1,), (0,)), ((), ())),
            preferred_element_type=jnp.float32) + b_ref[...]

    # --- ProbeRobertaSelfAttention: QKV projections (kept in matmul dtype) ---
    scale = 1.0 / math.sqrt(head_dim)
    q = (mm(x_mm, wq_ref, bq_ref) * scale).astype(matmul_dtype)  # fold 1/sqrt(hd)
    k = mm(x_mm, wk_ref, bk_ref).astype(matmul_dtype)
    v = mm(x_mm, wv_ref, bv_ref).astype(matmul_dtype)

    # Split heads: (Bb*S, H) -> (Bb*num_heads, S, head_dim); static lane slices
    # + concat along the leading axis, done in bf16 (half the relayout bytes).
    # TODO(synk): replace with a multi-batch-dim dot_general over a
    # (Bb, S, nh, hd) reshape to remove the sub-128-lane slice/concat entirely.
    def split_heads(t2):
        t3 = t2.reshape(Bb, S, H)
        return jnp.concatenate(
            [t3[:, :, h * head_dim:(h + 1) * head_dim] for h in range(num_heads)],
            axis=0)

    qh = split_heads(q)                   # (Bb*nh, S, hd)
    kh = split_heads(k)
    vh = split_heads(v)

    # Batched scores over all (batch, head) pairs in one dot_general.
    # TODO(synk): pre-transpose kh to (Bb*nh, hd, S); kh is already bf16 so the
    # implicit RHS transpose Mosaic inserts is bf16, not f32.
    scores = jax.lax.dot_general(
        qh, kh,
        dimension_numbers=(((2,), (2,)), ((0,), (0,))),
        preferred_element_type=jnp.float32)                   # (Bb*nh, S, S)

    # Softmax (f32, numerically stable); reciprocal on the EUP.
    # TODO(synk): for S >~ 1024 switch to a KV-blocked online-softmax loop so
    # the full nh*S^2 score tensor is never materialized (v7x VMEM = 64 MiB).
    scores = scores - jnp.max(scores, axis=-1, keepdims=True)
    p = jnp.exp(scores)
    denom = jnp.sum(p, axis=-1, keepdims=True)
    p = (p * pl.reciprocal(denom, approx=True)).astype(matmul_dtype)

    # Batched context: p @ v over all (batch, head) pairs.
    ctx = jax.lax.dot_general(
        p, vh,
        dimension_numbers=(((2,), (1,)), ((0,), (0,))),
        preferred_element_type=jnp.float32)                   # (Bb*nh, S, hd)

    # Merge heads back (in matmul dtype): (Bb*nh, S, hd) -> (Bb*S, H)
    ctx = ctx.astype(matmul_dtype)
    ctx2 = jnp.concatenate(
        [ctx[h * Bb:(h + 1) * Bb] for h in range(num_heads)], axis=-1)
    ctx2 = ctx2.reshape(Bb * S, H)

    # --- RobertaSelfOutput: dense + residual + LayerNorm (f32 epilogue) ---
    attn_out = _layer_norm(mm(ctx2, wo_ref, bo_ref) + x_f32,
                           ln1_g_ref[...], ln1_b_ref[...], eps)

    # --- RobertaIntermediate: dense + GELU ---
    inter = _gelu(mm(attn_out.astype(matmul_dtype), wi_ref, bi_ref))

    # --- RobertaOutput: dense + residual + LayerNorm ---
    y = _layer_norm(mm(inter.astype(matmul_dtype), w2_ref, b2_ref) + attn_out,
                    ln2_g_ref[...], ln2_b_ref[...], eps)

    out_ref[...] = y.reshape(Bb, S, H).astype(out_ref.dtype)


# ------------------------------- wrappers ----------------------------------

_WEIGHT_ORDER = ("wq", "bq", "wk", "bk", "wv", "bv",
                 "wo", "bo", "ln1_g", "ln1_b",
                 "wi", "bi", "w2", "b2", "ln2_g", "ln2_b")
_WEIGHT_MATS = frozenset({"wq", "wk", "wv", "wo", "wi", "w2"})

_MIB = 1024 * 1024


def _physical_vmem_bytes():
    try:
        return int(pltpu.get_tpu_info().vmem_capacity_bytes)
    except Exception:
        return 64 * _MIB   # conservative (v7x per-TensorCore VMEM)


def _activation_bytes_per_batch_elem(seq, hidden, intermediate, num_heads):
    """Rough f32 VMEM bytes of compiler-managed intermediates per batch elem."""
    dense = seq * (8 * hidden + 2 * intermediate) * 4        # x/q/k/v/ctx/LN/FFN
    attn = 3 * num_heads * seq * seq * 4                     # scores + p (+bf16)
    io = 4 * seq * hidden * 4                                # double-buffered in/out
    return dense + attn + io


def _pick_batch_block(batch, seq, hidden, intermediate, num_heads,
                      act_budget_bytes):
    """Largest divisor of `batch` whose activations fit the VMEM budget and
    that still leaves >= 2 grid steps (v7x dual-TensorCore sharding)."""
    per_elem = max(1, _activation_bytes_per_batch_elem(
        seq, hidden, intermediate, num_heads))
    max_bb = max(1, act_budget_bytes // per_elem)
    if batch >= 2:
        max_bb = min(max_bb, batch // 2)   # at least 2 grid steps
    max_bb = max(1, min(max_bb, batch))
    best = 1
    for d in range(1, batch + 1):
        if batch % d == 0 and d <= max_bb:
            best = d
    return best


def _const_spec(shape, single_buffer):
    ndim = len(shape)
    index_map = lambda b: (0,) * ndim
    if single_buffer:
        try:
            # Constant index_map => a second buffer is pure VMEM waste.
            return pl.BlockSpec(shape, index_map, pipeline_mode=pl.Buffered(1))
        except TypeError:
            pass
    return pl.BlockSpec(shape, index_map)


def _roberta_layer_pallas_impl(hidden_states, prepared, *, num_heads, head_dim,
                               intermediate, eps, matmul_dtype, batch_block,
                               single_buffer_weights):
    B, S, H = hidden_states.shape
    assert B % batch_block == 0, "batch_block must divide the batch size"

    weight_bytes = sum(int(w.size) * w.dtype.itemsize for w in prepared)
    weight_buf = 1 if single_buffer_weights else 2
    out_itemsize = jnp.dtype(hidden_states.dtype).itemsize

    # VMEM budget derived from the actual footprint of one grid step.
    phys = _physical_vmem_bytes()
    est = (weight_bytes * weight_buf
           + batch_block * _activation_bytes_per_batch_elem(
               S, H, intermediate, num_heads)
           + 2 * batch_block * S * H * out_itemsize
           + 4 * _MIB)
    vmem_limit_bytes = int(min(max(est, 32 * _MIB), int(phys * 0.9)))

    kernel = functools.partial(
        roberta_layer_kernel, num_heads=num_heads, head_dim=head_dim,
        eps=eps, matmul_dtype=matmul_dtype)

    in_specs = [pl.BlockSpec((batch_block, S, H), lambda b: (b, 0, 0))]
    in_specs += [_const_spec(w.shape, single_buffer_weights) for w in prepared]

    # Advisory cost estimate so XLA can schedule neighbouring ops around us.
    flops = (2 * B * S * (4 * H * H + 2 * H * intermediate)
             + 4 * B * num_heads * S * S * head_dim)
    transcendentals = B * num_heads * S * S + B * S * intermediate
    bytes_accessed = weight_bytes + 2 * B * S * H * 4

    return pl.pallas_call(
        kernel,
        out_shape=jax.ShapeDtypeStruct((B, S, H), hidden_states.dtype),
        grid=(pl.cdiv(B, batch_block),),
        in_specs=in_specs,
        out_specs=pl.BlockSpec((batch_block, S, H), lambda b: (b, 0, 0)),
        compiler_params=pltpu.CompilerParams(
            dimension_semantics=("parallel",),
            vmem_limit_bytes=vmem_limit_bytes),
        cost_estimate=pl.CostEstimate(
            flops=int(flops), transcendentals=int(transcendentals),
            bytes_accessed=int(bytes_accessed)),
    )(hidden_states, *prepared)


def roberta_layer_pallas(hidden_states, params, *, num_heads, eps=1e-5,
                         matmul_dtype=jnp.bfloat16, batch_block=None):
    B, S, H = hidden_states.shape
    head_dim = H // num_heads
    intermediate = params["wi"].shape[1]

    # Weight matrices in matmul_dtype (bf16 by default: half the HBM traffic,
    # full-rate MXU); biases / LayerNorm params stay f32 for the epilogue.
    # TODO(synk): per-generation weight quantization (fp8 on v7x, int8 on
    # v5e/v6e) with per-channel scales applied in the f32 epilogue.
    prepared = []
    for name in _WEIGHT_ORDER:
        w = params[name]
        prepared.append(w.astype(matmul_dtype if name in _WEIGHT_MATS
                                 else jnp.float32))

    if batch_block is None:
        phys = _physical_vmem_bytes()
        weight_bytes = sum(int(w.size) * w.dtype.itemsize for w in prepared)
        act_budget = max(4 * _MIB,
                         int((phys * 0.7) - weight_bytes - 8 * _MIB))
        batch_block = _pick_batch_block(B, S, H, intermediate, num_heads,
                                        act_budget)

    common = dict(num_heads=num_heads, head_dim=head_dim,
                  intermediate=intermediate, eps=eps,
                  matmul_dtype=matmul_dtype, batch_block=batch_block)
    try:
        return _roberta_layer_pallas_impl(hidden_states, prepared,
                                          single_buffer_weights=True, **common)
    except Exception:
        # Fall back to default (double-buffered) weight blocks if the runtime
        # rejects Buffered(1) specs.
        return _roberta_layer_pallas_impl(hidden_states, prepared,
                                          single_buffer_weights=False, **common)


def probe_roberta_encoder_pallas(hidden_states, layer_params, *, num_heads,
                                 eps=1e-5, matmul_dtype=jnp.bfloat16):
    """ProbeRobertaEncoder.forward (None masks, eval mode, last hidden only)."""
    # TODO(synk): cross-pallas_call prefetch of layer l+1 weights (P10) and
    # bf16 inter-layer activations would hide the per-layer cold weight DMA.
    for params in layer_params:
        hidden_states = roberta_layer_pallas(
            hidden_states, params, num_heads=num_heads, eps=eps,
            matmul_dtype=matmul_dtype)
    return hidden_states


# --------------------------- pure-JAX reference -----------------------------

def _reference_layer(x, prm, num_heads, eps, matmul_dtype):
    B, S, H = x.shape
    hd = H // num_heads

    def mm(a, w, b):
        return (jnp.matmul(a.astype(matmul_dtype), w.astype(matmul_dtype),
                           preferred_element_type=jnp.float32) + b)

    scale = 1.0 / math.sqrt(hd)
    q = mm(x, prm["wq"], prm["bq"]) * scale
    k = mm(x, prm["wk"], prm["bk"])
    v = mm(x, prm["wv"], prm["bv"])

    def split(t):  # (B,S,H) -> (B,nh,S,hd)
        return t.reshape(B, S, num_heads, hd).transpose(0, 2, 1, 3)

    qh, kh, vh = split(q), split(k), split(v)
    scores = jnp.einsum("bnqd,bnkd->bnqk",
                        qh.astype(matmul_dtype), kh.astype(matmul_dtype),
                        preferred_element_type=jnp.float32)
    probs = jax.nn.softmax(scores, axis=-1)
    ctx = jnp.einsum("bnqk,bnkd->bnqd",
                     probs.astype(matmul_dtype), vh.astype(matmul_dtype),
                     preferred_element_type=jnp.float32)
    ctx = ctx.transpose(0, 2, 1, 3).reshape(B, S, H)

    attn_out = _layer_norm(mm(ctx, prm["wo"], prm["bo"]) + x,
                           prm["ln1_g"], prm["ln1_b"], eps)
    inter = _gelu(mm(attn_out, prm["wi"], prm["bi"]))
    return _layer_norm(mm(inter, prm["w2"], prm["b2"]) + attn_out,
                       prm["ln2_g"], prm["ln2_b"], eps)


def _reference_encoder(x, layer_params, num_heads, eps, matmul_dtype):
    for prm in layer_params:
        x = _reference_layer(x, prm, num_heads, eps, matmul_dtype)
    return x


# --------------------------------- main -------------------------------------

def _init_layer_params(key, hidden, intermediate):
    ks = jax.random.split(key, 8)
    s = 0.02
    f32 = jnp.float32
    return dict(
        wq=s * jax.random.normal(ks[0], (hidden, hidden), f32),
        bq=jnp.zeros((1, hidden), f32),
        wk=s * jax.random.normal(ks[1], (hidden, hidden), f32),
        bk=jnp.zeros((1, hidden), f32),
        wv=s * jax.random.normal(ks[2], (hidden, hidden), f32),
        bv=jnp.zeros((1, hidden), f32),
        wo=s * jax.random.normal(ks[3], (hidden, hidden), f32),
        bo=s * jax.random.normal(ks[4], (1, hidden), f32),
        ln1_g=jnp.ones((1, hidden), f32),
        ln1_b=jnp.zeros((1, hidden), f32),
        wi=s * jax.random.normal(ks[5], (hidden, intermediate), f32),
        bi=jnp.zeros((1, intermediate), f32),
        w2=s * jax.random.normal(ks[6], (intermediate, hidden), f32),
        b2=s * jax.random.normal(ks[7], (1, hidden), f32),
        ln2_g=jnp.ones((1, hidden), f32),
        ln2_b=jnp.zeros((1, hidden), f32),
    )


if __name__ == "__main__":
    # small config consistent with the module
    B, S, H = 2, 8, 32
    NUM_HEADS = 4
    INTERMEDIATE = 64
    NUM_LAYERS = 2
    EPS = 1e-5
    MM_DTYPE = jnp.bfloat16

    root = jax.random.PRNGKey(0)
    kx, kp = jax.random.split(root)
    hidden_states = jax.random.normal(kx, (B, S, H), jnp.float32)

    layer_keys = jax.random.split(kp, NUM_LAYERS)
    layer_params = [_init_layer_params(k, H, INTERMEDIATE) for k in layer_keys]

    out = probe_roberta_encoder_pallas(
        hidden_states, layer_params, num_heads=NUM_HEADS, eps=EPS,
        matmul_dtype=MM_DTYPE)
    out = jax.block_until_ready(out)

    ref = _reference_encoder(hidden_states, layer_params, NUM_HEADS, EPS,
                             MM_DTYPE)
    ref = jax.block_until_ready(ref)

    assert out.shape == (B, S, H)
    max_err = float(jnp.max(jnp.abs(out - ref)))
    # Tolerance covers approx-reciprocal softmax + f32 accumulation-order
    # differences (both sides use identical bf16-quantized weights/operands).
    assert jnp.allclose(out, ref, atol=5e-3, rtol=5e-3), (
        f"kernel/reference mismatch, max abs err = {max_err}")
    print("KERNEL_OK")
</pallas_src>

<mosaic_0001>
module attributes {stable_mosaic.version = 11 : i64} {
  func.func @roberta_layer_kernel(%arg0: i32, %arg1: memref<1x8x32xf32, #tpu.memory_space<vmem>>, %arg2: memref<32x32xbf16, #tpu.memory_space<vmem>>, %arg3: memref<1x32xf32, #tpu.memory_space<vmem>>, %arg4: memref<32x32xbf16, #tpu.memory_space<vmem>>, %arg5: memref<1x32xf32, #tpu.memory_space<vmem>>, %arg6: memref<32x32xbf16, #tpu.memory_space<vmem>>, %arg7: memref<1x32xf32, #tpu.memory_space<vmem>>, %arg8: memref<32x32xbf16, #tpu.memory_space<vmem>>, %arg9: memref<1x32xf32, #tpu.memory_space<vmem>>, %arg10: memref<1x32xf32, #tpu.memory_space<vmem>>, %arg11: memref<1x32xf32, #tpu.memory_space<vmem>>, %arg12: memref<32x64xbf16, #tpu.memory_space<vmem>>, %arg13: memref<1x64xf32, #tpu.memory_space<vmem>>, %arg14: memref<64x32xbf16, #tpu.memory_space<vmem>>, %arg15: memref<1x32xf32, #tpu.memory_space<vmem>>, %arg16: memref<1x32xf32, #tpu.memory_space<vmem>>, %arg17: memref<1x32xf32, #tpu.memory_space<vmem>>, %arg18: memref<1x8x32xf32, #tpu.memory_space<vmem>>) attributes {dimension_semantics = [#tpu.dimension_semantics<parallel>], iteration_bounds = array<i64: 2>, scalar_prefetch = 0 : i64, scratch_operands = 0 : i64, tpu.core_type = #tpu.core_type<tc>, window_params = [{transform_indices = @transform_0, window_bounds = array<i64: 1, 8, 32>}, {pipeline_mode = #tpu.pipeline_mode<synchronous>, transform_indices = @transform_1, window_bounds = array<i64: 32, 32>}, {pipeline_mode = #tpu.pipeline_mode<synchronous>, transform_indices = @transform_2, window_bounds = array<i64: 1, 32>}, {pipeline_mode = #tpu.pipeline_mode<synchronous>, transform_indices = @transform_3, window_bounds = array<i64: 32, 32>}, {pipeline_mode = #tpu.pipeline_mode<synchronous>, transform_indices = @transform_4, window_bounds = array<i64: 1, 32>}, {pipeline_mode = #tpu.pipeline_mode<synchronous>, transform_indices = @transform_5, window_bounds = array<i64: 32, 32>}, {pipeline_mode = #tpu.pipeline_mode<synchronous>, transform_indices = @transform_6, window_bounds = array<i64: 1, 32>}, {pipeline_mode = #tpu.pipeline_mode<synchronous>, transform_indices = @transform_7, window_bounds = array<i64: 32, 32>}, {pipeline_mode = #tpu.pipeline_mode<synchronous>, transform_indices = @transform_8, window_bounds = array<i64: 1, 32>}, {pipeline_mode = #tpu.pipeline_mode<synchronous>, transform_indices = @transform_9, window_bounds = array<i64: 1, 32>}, {pipeline_mode = #tpu.pipeline_mode<synchronous>, transform_indices = @transform_10, window_bounds = array<i64: 1, 32>}, {pipeline_mode = #tpu.pipeline_mode<synchronous>, transform_indices = @transform_11, window_bounds = array<i64: 32, 64>}, {pipeline_mode = #tpu.pipeline_mode<synchronous>, transform_indices = @transform_12, window_bounds = array<i64: 1, 64>}, {pipeline_mode = #tpu.pipeline_mode<synchronous>, transform_indices = @transform_13, window_bounds = array<i64: 64, 32>}, {pipeline_mode = #tpu.pipeline_mode<synchronous>, transform_indices = @transform_14, window_bounds = array<i64: 1, 32>}, {pipeline_mode = #tpu.pipeline_mode<synchronous>, transform_indices = @transform_15, window_bounds = array<i64: 1, 32>}, {pipeline_mode = #tpu.pipeline_mode<synchronous>, transform_indices = @transform_16, window_bounds = array<i64: 1, 32>}, {transform_indices = @transform_17, window_bounds = array<i64: 1, 8, 32>}]} {
    %c0 = arith.constant 0 : index
    %c0_0 = arith.constant 0 : index
    %c0_1 = arith.constant 0 : index
    %0 = vector.load %arg1[%c0, %c0_0, %c0_1] : memref<1x8x32xf32, #tpu.memory_space<vmem>>, vector<1x8x32xf32>
    %1 = vector.shape_cast %0 : vector<1x8x32xf32> to vector<8x32xf32>
    %2 = arith.truncf %1 : vector<8x32xf32> to vector<8x32xbf16>
    %c0_2 = arith.constant 0 : index
    %c0_3 = arith.constant 0 : index
    %3 = vector.load %arg2[%c0_2, %c0_3] : memref<32x32xbf16, #tpu.memory_space<vmem>>, vector<32x32xbf16>
    %cst = arith.constant dense<0.000000e+00> : vector<8x32xf32>
    %4 = tpu.matmul %2, %3, %cst {dimension_numbers = #tpu.dot_dimension_numbers<[1], [0], [0], [1], [0, 0, 1, 1], [], []>} : vector<8x32xbf16>, vector<32x32xbf16>, vector<8x32xf32> -> vector<8x32xf32>
    %c0_4 = arith.constant 0 : index
    %c0_5 = arith.constant 0 : index
    %5 = vector.load %arg3[%c0_4, %c0_5] : memref<1x32xf32, #tpu.memory_space<vmem>>, vector<1x32xf32>
    %6 = vector.broadcast %5 : vector<1x32xf32> to vector<8x32xf32>
    %7 = arith.addf %4, %6 : vector<8x32xf32>
    %cst_6 = arith.constant 0.353553385 : f32
    %8 = vector.broadcast %cst_6 : f32 to vector<8x32xf32>
    %9 = arith.mulf %7, %8 : vector<8x32xf32>
    %10 = arith.truncf %9 : vector<8x32xf32> to vector<8x32xbf16>
    %c0_7 = arith.constant 0 : index
    %c0_8 = arith.constant 0 : index
    %11 = vector.load %arg4[%c0_7, %c0_8] : memref<32x32xbf16, #tpu.memory_space<vmem>>, vector<32x32xbf16>
    %cst_9 = arith.constant dense<0.000000e+00> : vector<8x32xf32>
    %12 = tpu.matmul %2, %11, %cst_9 {dimension_numbers = #tpu.dot_dimension_numbers<[1], [0], [0], [1], [0, 0, 1, 1], [], []>} : vector<8x32xbf16>, vector<32x32xbf16>, vector<8x32xf32> -> vector<8x32xf32>
    %c0_10 = arith.constant 0 : index
    %c0_11 = arith.constant 0 : index
    %13 = vector.load %arg5[%c0_10, %c0_11] : memref<1x32xf32, #tpu.memory_space<vmem>>, vector<1x32xf32>
    %14 = vector.broadcast %13 : vector<1x32xf32> to vector<8x32xf32>
    %15 = arith.addf %12, %14 : vector<8x32xf32>
    %16 = arith.truncf %15 : vector<8x32xf32> to vector<8x32xbf16>
    %c0_12 = arith.constant 0 : index
    %c0_13 = arith.constant 0 : index
    %17 = vector.load %arg6[%c0_12, %c0_13] : memref<32x32xbf16, #tpu.memory_space<vmem>>, vector<32x32xbf16>
    %cst_14 = arith.constant dense<0.000000e+00> : vector<8x32xf32>
    %18 = tpu.matmul %2, %17, %cst_14 {dimension_numbers = #tpu.dot_dimension_numbers<[1], [0], [0], [1], [0, 0, 1, 1], [], []>} : vector<8x32xbf16>, vector<32x32xbf16>, vector<8x32xf32> -> vector<8x32xf32>
    %c0_15 = arith.constant 0 : index
    %c0_16 = arith.constant 0 : index
    %19 = vector.load %arg7[%c0_15, %c0_16] : memref<1x32xf32, #tpu.memory_space<vmem>>, vector<1x32xf32>
    %20 = vector.broadcast %19 : vector<1x32xf32> to vector<8x32xf32>
    %21 = arith.addf %18, %20 : vector<8x32xf32>
    %22 = arith.truncf %21 : vector<8x32xf32> to vector<8x32xbf16>
    %23 = vector.shape_cast %10 : vector<8x32xbf16> to vector<1x8x32xbf16>
    %24 = vector.extract_strided_slice %23 {offsets = [0, 0, 0], sizes = [1, 8, 8], strides = [1, 1, 1]} : vector<1x8x32xbf16> to vector<1x8x8xbf16>
    %25 = vector.extract_strided_slice %23 {offsets = [0, 0, 8], sizes = [1, 8, 8], strides = [1, 1, 1]} : vector<1x8x32xbf16> to vector<1x8x8xbf16>
    %26 = vector.extract_strided_slice %23 {offsets = [0, 0, 16], sizes = [1, 8, 8], strides = [1, 1, 1]} : vector<1x8x32xbf16> to vector<1x8x8xbf16>
    %27 = vector.extract_strided_slice %23 {offsets = [0, 0, 24], sizes = [1, 8, 8], strides = [1, 1, 1]} : vector<1x8x32xbf16> to vector<1x8x8xbf16>
    %28 = tpu.concatenate %24, %25, %26, %27 in 0 : vector<1x8x8xbf16>, vector<1x8x8xbf16>, vector<1x8x8xbf16>, vector<1x8x8xbf16> -> vector<4x8x8xbf16>
    %29 = vector.shape_cast %16 : vector<8x32xbf16> to vector<1x8x32xbf16>
    %30 = vector.extract_strided_slice %29 {offsets = [0, 0, 0], sizes = [1, 8, 8], strides = [1, 1, 1]} : vector<1x8x32xbf16> to vector<1x8x8xbf16>
    %31 = vector.extract_strided_slice %29 {offsets = [0, 0, 8], sizes = [1, 8, 8], strides = [1, 1, 1]} : vector<1x8x32xbf16> to vector<1x8x8xbf16>
    %32 = vector.extract_strided_slice %29 {offsets = [0, 0, 16], sizes = [1, 8, 8], strides = [1, 1, 1]} : vector<1x8x32xbf16> to vector<1x8x8xbf16>
    %33 = vector.extract_strided_slice %29 {offsets = [0, 0, 24], sizes = [1, 8, 8], strides = [1, 1, 1]} : vector<1x8x32xbf16> to vector<1x8x8xbf16>
    %34 = tpu.concatenate %30, %31, %32, %33 in 0 : vector<1x8x8xbf16>, vector<1x8x8xbf16>, vector<1x8x8xbf16>, vector<1x8x8xbf16> -> vector<4x8x8xbf16>
    %35 = vector.shape_cast %22 : vector<8x32xbf16> to vector<1x8x32xbf16>
    %36 = vector.extract_strided_slice %35 {offsets = [0, 0, 0], sizes = [1, 8, 8], strides = [1, 1, 1]} : vector<1x8x32xbf16> to vector<1x8x8xbf16>
    %37 = vector.extract_strided_slice %35 {offsets = [0, 0, 8], sizes = [1, 8, 8], strides = [1, 1, 1]} : vector<1x8x32xbf16> to vector<1x8x8xbf16>
    %38 = vector.extract_strided_slice %35 {offsets = [0, 0, 16], sizes = [1, 8, 8], strides = [1, 1, 1]} : vector<1x8x32xbf16> to vector<1x8x8xbf16>
    %39 = vector.extract_strided_slice %35 {offsets = [0, 0, 24], sizes = [1, 8, 8], strides = [1, 1, 1]} : vector<1x8x32xbf16> to vector<1x8x8xbf16>
    %40 = tpu.concatenate %36, %37, %38, %39 in 0 : vector<1x8x8xbf16>, vector<1x8x8xbf16>, vector<1x8x8xbf16>, vector<1x8x8xbf16> -> vector<4x8x8xbf16>
    %cst_17 = arith.constant dense<0.000000e+00> : vector<4x8x8xf32>
    %41 = tpu.matmul %28, %34, %cst_17 {dimension_numbers = #tpu.dot_dimension_numbers<[2], [2], [1], [1], [0, 0, 0, 1, 1, 1], [0], [0]>} : vector<4x8x8xbf16>, vector<4x8x8xbf16>, vector<4x8x8xf32> -> vector<4x8x8xf32>
    %cst_18 = arith.constant dense<0xFF800000> : vector<4x8xf32>
    %42 = vector.multi_reduction <maximumf>, %41, %cst_18 [2] : vector<4x8x8xf32> to vector<4x8xf32>
    %43 = vector.shape_cast %42 : vector<4x8xf32> to vector<4x8x1xf32>
    %44 = vector.broadcast %43 : vector<4x8x1xf32> to vector<4x8x8xf32>
    %45 = arith.subf %41, %44 : vector<4x8x8xf32>
    %46 = math.exp %45 : vector<4x8x8xf32>
    %cst_19 = arith.constant dense<0.000000e+00> : vector<4x8xf32>
    %47 = vector.multi_reduction <add>, %46, %cst_19 [2] : vector<4x8x8xf32> to vector<4x8xf32>
    %48 = vector.shape_cast %47 : vector<4x8xf32> to vector<4x8x1xf32>
    %49 = tpu.reciprocal %48 {approx = true} : vector<4x8x1xf32> -> vector<4x8x1xf32>
    %50 = vector.broadcast %49 : vector<4x8x1xf32> to vector<4x8x8xf32>
    %51 = arith.mulf %46, %50 : vector<4x8x8xf32>
    %52 = arith.truncf %51 : vector<4x8x8xf32> to vector<4x8x8xbf16>
    %cst_20 = arith.constant dense<0.000000e+00> : vector<4x8x8xf32>
    %53 = tpu.matmul %52, %40, %cst_20 {dimension_numbers = #tpu.dot_dimension_numbers<[2], [1], [1], [2], [0, 0, 0, 1, 1, 2], [0], [0]>} : vector<4x8x8xbf16>, vector<4x8x8xbf16>, vector<4x8x8xf32> -> vector<4x8x8xf32>
    %54 = arith.truncf %53 : vector<4x8x8xf32> to vector<4x8x8xbf16>
    %55 = vector.extract_strided_slice %54 {offsets = [0, 0, 0], sizes = [1, 8, 8], strides = [1, 1, 1]} : vector<4x8x8xbf16> to vector<1x8x8xbf16>
    %56 = vector.extract_strided_slice %54 {offsets = [1, 0, 0], sizes = [1, 8, 8], strides = [1, 1, 1]} : vector<4x8x8xbf16> to vector<1x8x8xbf16>
    %57 = vector.extract_strided_slice %54 {offsets = [2, 0, 0], sizes = [1, 8, 8], strides = [1, 1, 1]} : vector<4x8x8xbf16> to vector<1x8x8xbf16>
    %58 = vector.extract_strided_slice %54 {offsets = [3, 0, 0], sizes = [1, 8, 8], strides = [1, 1, 1]} : vector<4x8x8xbf16> to vector<1x8x8xbf16>
    %59 = tpu.concatenate %55, %56, %57, %58 in 2 : vector<1x8x8xbf16>, vector<1x8x8xbf16>, vector<1x8x8xbf16>, vector<1x8x8xbf16> -> vector<1x8x32xbf16>
    %60 = vector.shape_cast %59 : vector<1x8x32xbf16> to vector<8x32xbf16>
    %c0_21 = arith.constant 0 : index
    %c0_22 = arith.constant 0 : index
    %61 = vector.load %arg8[%c0_21, %c0_22] : memref<32x32xbf16, #tpu.memory_space<vmem>>, vector<32x32xbf16>
    %cst_23 = arith.constant dense<0.000000e+00> : vector<8x32xf32>
    %62 = tpu.matmul %60, %61, %cst_23 {dimension_numbers = #tpu.dot_dimension_numbers<[1], [0], [0], [1], [0, 0, 1, 1], [], []>} : vector<8x32xbf16>, vector<32x32xbf16>, vector<8x32xf32> -> vector<8x32xf32>
    %c0_24 = arith.constant 0 : index
    %c0_25 = arith.constant 0 : index
    %63 = vector.load %arg9[%c0_24, %c0_25] : memref<1x32xf32, #tpu.memory_space<vmem>>, vector<1x32xf32>
    %64 = vector.broadcast %63 : vector<1x32xf32> to vector<8x32xf32>
    %65 = arith.addf %62, %64 : vector<8x32xf32>
    %66 = arith.addf %65, %1 : vector<8x32xf32>
    %c0_26 = arith.constant 0 : index
    %c0_27 = arith.constant 0 : index
    %67 = vector.load %arg10[%c0_26, %c0_27] : memref<1x32xf32, #tpu.memory_space<vmem>>, vector<1x32xf32>
    %c0_28 = arith.constant 0 : index
    %c0_29 = arith.constant 0 : index
    %68 = vector.load %arg11[%c0_28, %c0_29] : memref<1x32xf32, #tpu.memory_space<vmem>>, vector<1x32xf32>
    %cst_30 = arith.constant dense<0.000000e+00> : vector<8xf32>
    %69 = vector.multi_reduction <add>, %66, %cst_30 [1] : vector<8x32xf32> to vector<8xf32>
    %70 = vector.shape_cast %69 : vector<8xf32> to vector<8x1xf32>
    %cst_31 = arith.constant 3.200000e+01 : f32
    %71 = vector.broadcast %cst_31 : f32 to vector<8x1xf32>
    %72 = arith.divf %70, %71 : vector<8x1xf32>
    %73 = vector.broadcast %72 : vector<8x1xf32> to vector<8x32xf32>
    %74 = arith.subf %66, %73 : vector<8x32xf32>
    %75 = arith.mulf %74, %74 : vector<8x32xf32>
    %cst_32 = arith.constant dense<0.000000e+00> : vector<8xf32>
    %76 = vector.multi_reduction <add>, %75, %cst_32 [1] : vector<8x32xf32> to vector<8xf32>
    %77 = vector.shape_cast %76 : vector<8xf32> to vector<8x1xf32>
    %cst_33 = arith.constant 3.200000e+01 : f32
    %78 = vector.broadcast %cst_33 : f32 to vector<8x1xf32>
    %79 = arith.divf %77, %78 : vector<8x1xf32>
    %80 = vector.broadcast %72 : vector<8x1xf32> to vector<8x32xf32>
    %81 = arith.subf %66, %80 : vector<8x32xf32>
    %cst_34 = arith.constant 9.99999974E-6 : f32
    %82 = vector.broadcast %cst_34 : f32 to vector<8x1xf32>
    %83 = arith.addf %79, %82 : vector<8x1xf32>
    %84 = math.rsqrt %83 : vector<8x1xf32>
    %85 = vector.broadcast %84 : vector<8x1xf32> to vector<8x32xf32>
    %86 = arith.mulf %81, %85 : vector<8x32xf32>
    %87 = vector.broadcast %67 : vector<1x32xf32> to vector<8x32xf32>
    %88 = arith.mulf %86, %87 : vector<8x32xf32>
    %89 = vector.broadcast %68 : vector<1x32xf32> to vector<8x32xf32>
    %90 = arith.addf %88, %89 : vector<8x32xf32>
    %91 = arith.truncf %90 : vector<8x32xf32> to vector<8x32xbf16>
    %c0_35 = arith.constant 0 : index
    %c0_36 = arith.constant 0 : index
    %92 = vector.load %arg12[%c0_35, %c0_36] : memref<32x64xbf16, #tpu.memory_space<vmem>>, vector<32x64xbf16>
    %cst_37 = arith.constant dense<0.000000e+00> : vector<8x64xf32>
    %93 = tpu.matmul %91, %92, %cst_37 {dimension_numbers = #tpu.dot_dimension_numbers<[1], [0], [0], [1], [0, 0, 1, 1], [], []>} : vector<8x32xbf16>, vector<32x64xbf16>, vector<8x64xf32> -> vector<8x64xf32>
    %c0_38 = arith.constant 0 : index
    %c0_39 = arith.constant 0 : index
    %94 = vector.load %arg13[%c0_38, %c0_39] : memref<1x64xf32, #tpu.memory_space<vmem>>, vector<1x64xf32>
    %95 = vector.broadcast %94 : vector<1x64xf32> to vector<8x64xf32>
    %96 = arith.addf %93, %95 : vector<8x64xf32>
    %cst_40 = arith.constant 5.000000e-01 : f32
    %97 = vector.broadcast %cst_40 : f32 to vector<8x64xf32>
    %98 = arith.mulf %97, %96 : vector<8x64xf32>
    %cst_41 = arith.constant 4.471500e-02 : f32
    %99 = vector.broadcast %cst_41 : f32 to vector<8x64xf32>
    %100 = arith.mulf %99, %96 : vector<8x64xf32>
    %101 = arith.mulf %100, %96 : vector<8x64xf32>
    %102 = arith.mulf %101, %96 : vector<8x64xf32>
    %103 = arith.addf %96, %102 : vector<8x64xf32>
    %cst_42 = arith.constant 0.797884583 : f32
    %104 = vector.broadcast %cst_42 : f32 to vector<8x64xf32>
    %105 = arith.mulf %104, %103 : vector<8x64xf32>
    %106 = math.tanh %105 : vector<8x64xf32>
    %cst_43 = arith.constant 1.000000e+00 : f32
    %107 = vector.broadcast %cst_43 : f32 to vector<8x64xf32>
    %108 = arith.addf %107, %106 : vector<8x64xf32>
    %109 = arith.mulf %98, %108 : vector<8x64xf32>
    %110 = arith.truncf %109 : vector<8x64xf32> to vector<8x64xbf16>
    %c0_44 = arith.constant 0 : index
    %c0_45 = arith.constant 0 : index
    %111 = vector.load %arg14[%c0_44, %c0_45] : memref<64x32xbf16, #tpu.memory_space<vmem>>, vector<64x32xbf16>
    %cst_46 = arith.constant dense<0.000000e+00> : vector<8x32xf32>
    %112 = tpu.matmul %110, %111, %cst_46 {dimension_numbers = #tpu.dot_dimension_numbers<[1], [0], [0], [1], [0, 0, 1, 1], [], []>} : vector<8x64xbf16>, vector<64x32xbf16>, vector<8x32xf32> -> vector<8x32xf32>
    %c0_47 = arith.constant 0 : index
    %c0_48 = arith.constant 0 : index
    %113 = vector.load %arg15[%c0_47, %c0_48] : memref<1x32xf32, #tpu.memory_space<vmem>>, vector<1x32xf32>
    %114 = vector.broadcast %113 : vector<1x32xf32> to vector<8x32xf32>
    %115 = arith.addf %112, %114 : vector<8x32xf32>
    %116 = arith.addf %115, %90 : vector<8x32xf32>
    %c0_49 = arith.constant 0 : index
    %c0_50 = arith.constant 0 : index
    %117 = vector.load %arg16[%c0_49, %c0_50] : memref<1x32xf32, #tpu.memory_space<vmem>>, vector<1x32xf32>
    %c0_51 = arith.constant 0 : index
    %c0_52 = arith.constant 0 : index
    %118 = vector.load %arg17[%c0_51, %c0_52] : memref<1x32xf32, #tpu.memory_space<vmem>>, vector<1x32xf32>
    %cst_53 = arith.constant dense<0.000000e+00> : vector<8xf32>
    %119 = vector.multi_reduction <add>, %116, %cst_53 [1] : vector<8x32xf32> to vector<8xf32>
    %120 = vector.shape_cast %119 : vector<8xf32> to vector<8x1xf32>
    %cst_54 = arith.constant 3.200000e+01 : f32
    %121 = vector.broadcast %cst_54 : f32 to vector<8x1xf32>
    %122 = arith.divf %120, %121 : vector<8x1xf32>
    %123 = vector.broadcast %122 : vector<8x1xf32> to vector<8x32xf32>
    %124 = arith.subf %116, %123 : vector<8x32xf32>
    %125 = arith.mulf %124, %124 : vector<8x32xf32>
    %cst_55 = arith.constant dense<0.000000e+00> : vector<8xf32>
    %126 = vector.multi_reduction <add>, %125, %cst_55 [1] : vector<8x32xf32> to vector<8xf32>
    %127 = vector.shape_cast %126 : vector<8xf32> to vector<8x1xf32>
    %cst_56 = arith.constant 3.200000e+01 : f32
    %128 = vector.broadcast %cst_56 : f32 to vector<8x1xf32>
    %129 = arith.divf %127, %128 : vector<8x1xf32>
    %130 = vector.broadcast %122 : vector<8x1xf32> to vector<8x32xf32>
    %131 = arith.subf %116, %130 : vector<8x32xf32>
    %cst_57 = arith.constant 9.99999974E-6 : f32
    %132 = vector.broadcast %cst_57 : f32 to vector<8x1xf32>
    %133 = arith.addf %129, %132 : vector<8x1xf32>
    %134 = math.rsqrt %133 : vector<8x1xf32>
    %135 = vector.broadcast %134 : vector<8x1xf32> to vector<8x32xf32>
    %136 = arith.mulf %131, %135 : vector<8x32xf32>
    %137 = vector.broadcast %117 : vector<1x32xf32> to vector<8x32xf32>
    %138 = arith.mulf %136, %137 : vector<8x32xf32>
    %139 = vector.broadcast %118 : vector<1x32xf32> to vector<8x32xf32>
    %140 = arith.addf %138, %139 : vector<8x32xf32>
    %141 = vector.shape_cast %140 : vector<8x32xf32> to vector<1x8x32xf32>
    %c0_58 = arith.constant 0 : index
    %c0_59 = arith.constant 0 : index
    %c0_60 = arith.constant 0 : index
    %142 = vector.load %arg18[%c0_58, %c0_59, %c0_60] : memref<1x8x32xf32, #tpu.memory_space<vmem>>, vector<1x8x32xf32>
    tpu.vector_store %arg18[%c0_58, %c0_59, %c0_60], %141 {strides = array<i32>} : memref<1x8x32xf32, #tpu.memory_space<vmem>>, vector<1x8x32xf32>,
    return
  }
  func.func @transform_0(%arg0: i32) -> (i32, i32, i32) {
    %c0_i32 = arith.constant 0 : i32
    %c0_i32_0 = arith.constant 0 : i32
    %c0_i32_1 = arith.constant 0 : i32
    return %arg0, %c0_i32, %c0_i32_0 : i32, i32, i32
  }
  func.func @transform_1(%arg0: i32) -> (i32, i32) {
    %c0_i32 = arith.constant 0 : i32
    %c0_i32_0 = arith.constant 0 : i32
    %c0_i32_1 = arith.constant 0 : i32
    return %c0_i32, %c0_i32_0 : i32, i32
  }
  func.func @transform_2(%arg0: i32) -> (i32, i32) {
    %c0_i32 = arith.constant 0 : i32
    %c0_i32_0 = arith.constant 0 : i32
    %c0_i32_1 = arith.constant 0 : i32
    return %c0_i32, %c0_i32_0 : i32, i32
  }
  func.func @transform_3(%arg0: i32) -> (i32, i32) {
    %c0_i32 = arith.constant 0 : i32
    %c0_i32_0 = arith.constant 0 : i32
    %c0_i32_1 = arith.constant 0 : i32
    return %c0_i32, %c0_i32_0 : i32, i32
  }
  func.func @transform_4(%arg0: i32) -> (i32, i32) {
    %c0_i32 = arith.constant 0 : i32
    %c0_i32_0 = arith.constant 0 : i32
    %c0_i32_1 = arith.constant 0 : i32
    return %c0_i32, %c0_i32_0 : i32, i32
  }
  func.func @transform_5(%arg0: i32) -> (i32, i32) {
    %c0_i32 = arith.constant 0 : i32
    %c0_i32_0 = arith.constant 0 : i32
    %c0_i32_1 = arith.constant 0 : i32
    return %c0_i32, %c0_i32_0 : i32, i32
  }
  func.func @transform_6(%arg0: i32) -> (i32, i32) {
    %c0_i32 = arith.constant 0 : i32
    %c0_i32_0 = arith.constant 0 : i32
    %c0_i32_1 = arith.constant 0 : i32
    return %c0_i32, %c0_i32_0 : i32, i32
  }
  func.func @transform_7(%arg0: i32) -> (i32, i32) {
    %c0_i32 = arith.constant 0 : i32
    %c0_i32_0 = arith.constant 0 : i32
    %c0_i32_1 = arith.constant 0 : i32
    return %c0_i32, %c0_i32_0 : i32, i32
  }
  func.func @transform_8(%arg0: i32) -> (i32, i32) {
    %c0_i32 = arith.constant 0 : i32
    %c0_i32_0 = arith.constant 0 : i32
    %c0_i32_1 = arith.constant 0 : i32
    return %c0_i32, %c0_i32_0 : i32, i32
  }
  func.func @transform_9(%arg0: i32) -> (i32, i32) {
    %c0_i32 = arith.constant 0 : i32
    %c0_i32_0 = arith.constant 0 : i32
    %c0_i32_1 = arith.constant 0 : i32
    return %c0_i32, %c0_i32_0 : i32, i32
  }
  func.func @transform_10(%arg0: i32) -> (i32, i32) {
    %c0_i32 = arith.constant 0 : i32
    %c0_i32_0 = arith.constant 0 : i32
    %c0_i32_1 = arith.constant 0 : i32
    return %c0_i32, %c0_i32_0 : i32, i32
  }
  func.func @transform_11(%arg0: i32) -> (i32, i32) {
    %c0_i32 = arith.constant 0 : i32
    %c0_i32_0 = arith.constant 0 : i32
    %c0_i32_1 = arith.constant 0 : i32
    return %c0_i32, %c0_i32_0 : i32, i32
  }
  func.func @transform_12(%arg0: i32) -> (i32, i32) {
    %c0_i32 = arith.constant 0 : i32
    %c0_i32_0 = arith.constant 0 : i32
    %c0_i32_1 = arith.constant 0 : i32
    return %c0_i32, %c0_i32_0 : i32, i32
  }
  func.func @transform_13(%arg0: i32) -> (i32, i32) {
    %c0_i32 = arith.constant 0 : i32
    %c0_i32_0 = arith.constant 0 : i32
    %c0_i32_1 = arith.constant 0 : i32
    return %c0_i32, %c0_i32_0 : i32, i32
  }
  func.func @transform_14(%arg0: i32) -> (i32, i32) {
    %c0_i32 = arith.constant 0 : i32
    %c0_i32_0 = arith.constant 0 : i32
    %c0_i32_1 = arith.constant 0 : i32
    return %c0_i32, %c0_i32_0 : i32, i32
  }
  func.func @transform_15(%arg0: i32) -> (i32, i32) {
    %c0_i32 = arith.constant 0 : i32
    %c0_i32_0 = arith.constant 0 : i32
    %c0_i32_1 = arith.constant 0 : i32
    return %c0_i32, %c0_i32_0 : i32, i32
  }
  func.func @transform_16(%arg0: i32) -> (i32, i32) {
    %c0_i32 = arith.constant 0 : i32
    %c0_i32_0 = arith.constant 0 : i32
    %c0_i32_1 = arith.constant 0 : i32
    return %c0_i32, %c0_i32_0 : i32, i32
  }
  func.func @transform_17(%arg0: i32) -> (i32, i32, i32) {
    %c0_i32 = arith.constant 0 : i32
    %c0_i32_0 = arith.constant 0 : i32
    %c0_i32_1 = arith.constant 0 : i32
    return %arg0, %c0_i32, %c0_i32_0 : i32, i32, i32
  }
}

module attributes {stable_mosaic.version = 11 : i64} {
  func.func @roberta_layer_kernel(%arg0: i32, %arg1: memref<1x8x32xf32, #tpu.memory_space<vmem>>, %arg2: memref<32x32xbf16, #tpu.memory_space<vmem>>, %arg3: memref<1x32xf32, #tpu.memory_space<vmem>>, %arg4: memref<32x32xbf16, #tpu.memory_space<vmem>>, %arg5: memref<1x32xf32, #tpu.memory_space<vmem>>, %arg6: memref<32x32xbf16, #tpu.memory_space<vmem>>, %arg7: memref<1x32xf32, #tpu.memory_space<vmem>>, %arg8: memref<32x32xbf16, #tpu.memory_space<vmem>>, %arg9: memref<1x32xf32, #tpu.memory_space<vmem>>, %arg10: memref<1x32xf32, #tpu.memory_space<vmem>>, %arg11: memref<1x32xf32, #tpu.memory_space<vmem>>, %arg12: memref<32x64xbf16, #tpu.memory_space<vmem>>, %arg13: memref<1x64xf32, #tpu.memory_space<vmem>>, %arg14: memref<64x32xbf16, #tpu.memory_space<vmem>>, %arg15: memref<1x32xf32, #tpu.memory_space<vmem>>, %arg16: memref<1x32xf32, #tpu.memory_space<vmem>>, %arg17: memref<1x32xf32, #tpu.memory_space<vmem>>, %arg18: memref<1x8x32xf32, #tpu.memory_space<vmem>>) attributes {dimension_semantics = [#tpu.dimension_semantics<parallel>], iteration_bounds = array<i64: 2>, scalar_prefetch = 0 : i64, scratch_operands = 0 : i64, tpu.core_type = #tpu.core_type<tc>, window_params = [{transform_indices = @transform_0, window_bounds = array<i64: 1, 8, 32>}, {pipeline_mode = #tpu.pipeline_mode<synchronous>, transform_indices = @transform_1, window_bounds = array<i64: 32, 32>}, {pipeline_mode = #tpu.pipeline_mode<synchronous>, transform_indices = @transform_2, window_bounds = array<i64: 1, 32>}, {pipeline_mode = #tpu.pipeline_mode<synchronous>, transform_indices = @transform_3, window_bounds = array<i64: 32, 32>}, {pipeline_mode = #tpu.pipeline_mode<synchronous>, transform_indices = @transform_4, window_bounds = array<i64: 1, 32>}, {pipeline_mode = #tpu.pipeline_mode<synchronous>, transform_indices = @transform_5, window_bounds = array<i64: 32, 32>}, {pipeline_mode = #tpu.pipeline_mode<synchronous>, transform_indices = @transform_6, window_bounds = array<i64: 1, 32>}, {pipeline_mode = #tpu.pipeline_mode<synchronous>, transform_indices = @transform_7, window_bounds = array<i64: 32, 32>}, {pipeline_mode = #tpu.pipeline_mode<synchronous>, transform_indices = @transform_8, window_bounds = array<i64: 1, 32>}, {pipeline_mode = #tpu.pipeline_mode<synchronous>, transform_indices = @transform_9, window_bounds = array<i64: 1, 32>}, {pipeline_mode = #tpu.pipeline_mode<synchronous>, transform_indices = @transform_10, window_bounds = array<i64: 1, 32>}, {pipeline_mode = #tpu.pipeline_mode<synchronous>, transform_indices = @transform_11, window_bounds = array<i64: 32, 64>}, {pipeline_mode = #tpu.pipeline_mode<synchronous>, transform_indices = @transform_12, window_bounds = array<i64: 1, 64>}, {pipeline_mode = #tpu.pipeline_mode<synchronous>, transform_indices = @transform_13, window_bounds = array<i64: 64, 32>}, {pipeline_mode = #tpu.pipeline_mode<synchronous>, transform_indices = @transform_14, window_bounds = array<i64: 1, 32>}, {pipeline_mode = #tpu.pipeline_mode<synchronous>, transform_indices = @transform_15, window_bounds = array<i64: 1, 32>}, {pipeline_mode = #tpu.pipeline_mode<synchronous>, transform_indices = @transform_16, window_bounds = array<i64: 1, 32>}, {transform_indices = @transform_17, window_bounds = array<i64: 1, 8, 32>}]} {
    %c0 = arith.constant 0 : index
    %c0_0 = arith.constant 0 : index
    %c0_1 = arith.constant 0 : index
    %0 = vector.load %arg1[%c0, %c0_0, %c0_1] : memref<1x8x32xf32, #tpu.memory_space<vmem>>, vector<1x8x32xf32>
    %1 = vector.shape_cast %0 : vector<1x8x32xf32> to vector<8x32xf32>
    %2 = arith.truncf %1 : vector<8x32xf32> to vector<8x32xbf16>
    %c0_2 = arith.constant 0 : index
    %c0_3 = arith.constant 0 : index
    %3 = vector.load %arg2[%c0_2, %c0_3] : memref<32x32xbf16, #tpu.memory_space<vmem>>, vector<32x32xbf16>
    %cst = arith.constant dense<0.000000e+00> : vector<8x32xf32>
    %4 = tpu.matmul %2, %3, %cst {dimension_numbers = #tpu.dot_dimension_numbers<[1], [0], [0], [1], [0, 0, 1, 1], [], []>} : vector<8x32xbf16>, vector<32x32xbf16>, vector<8x32xf32> -> vector<8x32xf32>
    %c0_4 = arith.constant 0 : index
    %c0_5 = arith.constant 0 : index
    %5 = vector.load %arg3[%c0_4, %c0_5] : memref<1x32xf32, #tpu.memory_space<vmem>>, vector<1x32xf32>
    %6 = vector.broadcast %5 : vector<1x32xf32> to vector<8x32xf32>
    %7 = arith.addf %4, %6 : vector<8x32xf32>
    %cst_6 = arith.constant 0.353553385 : f32
    %8 = vector.broadcast %cst_6 : f32 to vector<8x32xf32>
    %9 = arith.mulf %7, %8 : vector<8x32xf32>
    %10 = arith.truncf %9 : vector<8x32xf32> to vector<8x32xbf16>
    %c0_7 = arith.constant 0 : index
    %c0_8 = arith.constant 0 : index
    %11 = vector.load %arg4[%c0_7, %c0_8] : memref<32x32xbf16, #tpu.memory_space<vmem>>, vector<32x32xbf16>
    %cst_9 = arith.constant dense<0.000000e+00> : vector<8x32xf32>
    %12 = tpu.matmul %2, %11, %cst_9 {dimension_numbers = #tpu.dot_dimension_numbers<[1], [0], [0], [1], [0, 0, 1, 1], [], []>} : vector<8x32xbf16>, vector<32x32xbf16>, vector<8x32xf32> -> vector<8x32xf32>
    %c0_10 = arith.constant 0 : index
    %c0_11 = arith.constant 0 : index
    %13 = vector.load %arg5[%c0_10, %c0_11] : memref<1x32xf32, #tpu.memory_space<vmem>>, vector<1x32xf32>
    %14 = vector.broadcast %13 : vector<1x32xf32> to vector<8x32xf32>
    %15 = arith.addf %12, %14 : vector<8x32xf32>
    %16 = arith.truncf %15 : vector<8x32xf32> to vector<8x32xbf16>
    %c0_12 = arith.constant 0 : index
    %c0_13 = arith.constant 0 : index
    %17 = vector.load %arg6[%c0_12, %c0_13] : memref<32x32xbf16, #tpu.memory_space<vmem>>, vector<32x32xbf16>
    %cst_14 = arith.constant dense<0.000000e+00> : vector<8x32xf32>
    %18 = tpu.matmul %2, %17, %cst_14 {dimension_numbers = #tpu.dot_dimension_numbers<[1], [0], [0], [1], [0, 0, 1, 1], [], []>} : vector<8x32xbf16>, vector<32x32xbf16>, vector<8x32xf32> -> vector<8x32xf32>
    %c0_15 = arith.constant 0 : index
    %c0_16 = arith.constant 0 : index
    %19 = vector.load %arg7[%c0_15, %c0_16] : memref<1x32xf32, #tpu.memory_space<vmem>>, vector<1x32xf32>
    %20 = vector.broadcast %19 : vector<1x32xf32> to vector<8x32xf32>
    %21 = arith.addf %18, %20 : vector<8x32xf32>
    %22 = arith.truncf %21 : vector<8x32xf32> to vector<8x32xbf16>
    %23 = vector.shape_cast %10 : vector<8x32xbf16> to vector<1x8x32xbf16>
    %24 = vector.extract_strided_slice %23 {offsets = [0, 0, 0], sizes = [1, 8, 8], strides = [1, 1, 1]} : vector<1x8x32xbf16> to vector<1x8x8xbf16>
    %25 = vector.extract_strided_slice %23 {offsets = [0, 0, 8], sizes = [1, 8, 8], strides = [1, 1, 1]} : vector<1x8x32xbf16> to vector<1x8x8xbf16>
    %26 = vector.extract_strided_slice %23 {offsets = [0, 0, 16], sizes = [1, 8, 8], strides = [1, 1, 1]} : vector<1x8x32xbf16> to vector<1x8x8xbf16>
    %27 = vector.extract_strided_slice %23 {offsets = [0, 0, 24], sizes = [1, 8, 8], strides = [1, 1, 1]} : vector<1x8x32xbf16> to vector<1x8x8xbf16>
    %28 = tpu.concatenate %24, %25, %26, %27 in 0 : vector<1x8x8xbf16>, vector<1x8x8xbf16>, vector<1x8x8xbf16>, vector<1x8x8xbf16> -> vector<4x8x8xbf16>
    %29 = vector.shape_cast %16 : vector<8x32xbf16> to vector<1x8x32xbf16>
    %30 = vector.extract_strided_slice %29 {offsets = [0, 0, 0], sizes = [1, 8, 8], strides = [1, 1, 1]} : vector<1x8x32xbf16> to vector<1x8x8xbf16>
    %31 = vector.extract_strided_slice %29 {offsets = [0, 0, 8], sizes = [1, 8, 8], strides = [1, 1, 1]} : vector<1x8x32xbf16> to vector<1x8x8xbf16>
    %32 = vector.extract_strided_slice %29 {offsets = [0, 0, 16], sizes = [1, 8, 8], strides = [1, 1, 1]} : vector<1x8x32xbf16> to vector<1x8x8xbf16>
    %33 = vector.extract_strided_slice %29 {offsets = [0, 0, 24], sizes = [1, 8, 8], strides = [1, 1, 1]} : vector<1x8x32xbf16> to vector<1x8x8xbf16>
    %34 = tpu.concatenate %30, %31, %32, %33 in 0 : vector<1x8x8xbf16>, vector<1x8x8xbf16>, vector<1x8x8xbf16>, vector<1x8x8xbf16> -> vector<4x8x8xbf16>
    %35 = vector.shape_cast %22 : vector<8x32xbf16> to vector<1x8x32xbf16>
    %36 = vector.extract_strided_slice %35 {offsets = [0, 0, 0], sizes = [1, 8, 8], strides = [1, 1, 1]} : vector<1x8x32xbf16> to vector<1x8x8xbf16>
    %37 = vector.extract_strided_slice %35 {offsets = [0, 0, 8], sizes = [1, 8, 8], strides = [1, 1, 1]} : vector<1x8x32xbf16> to vector<1x8x8xbf16>
    %38 = vector.extract_strided_slice %35 {offsets = [0, 0, 16], sizes = [1, 8, 8], strides = [1, 1, 1]} : vector<1x8x32xbf16> to vector<1x8x8xbf16>
    %39 = vector.extract_strided_slice %35 {offsets = [0, 0, 24], sizes = [1, 8, 8], strides = [1, 1, 1]} : vector<1x8x32xbf16> to vector<1x8x8xbf16>
    %40 = tpu.concatenate %36, %37, %38, %39 in 0 : vector<1x8x8xbf16>, vector<1x8x8xbf16>, vector<1x8x8xbf16>, vector<1x8x8xbf16> -> vector<4x8x8xbf16>
    %cst_17 = arith.constant dense<0.000000e+00> : vector<4x8x8xf32>
    %41 = tpu.matmul %28, %34, %cst_17 {dimension_numbers = #tpu.dot_dimension_numbers<[2], [2], [1], [1], [0, 0, 0, 1, 1, 1], [0], [0]>} : vector<4x8x8xbf16>, vector<4x8x8xbf16>, vector<4x8x8xf32> -> vector<4x8x8xf32>
    %cst_18 = arith.constant dense<0xFF800000> : vector<4x8xf32>
    %42 = vector.multi_reduction <maximumf>, %41, %cst_18 [2] : vector<4x8x8xf32> to vector<4x8xf32>
    %43 = vector.shape_cast %42 : vector<4x8xf32> to vector<4x8x1xf32>
    %44 = vector.broadcast %43 : vector<4x8x1xf32> to vector<4x8x8xf32>
    %45 = arith.subf %41, %44 : vector<4x8x8xf32>
    %46 = math.exp %45 : vector<4x8x8xf32>
    %cst_19 = arith.constant dense<0.000000e+00> : vector<4x8xf32>
    %47 = vector.multi_reduction <add>, %46, %cst_19 [2] : vector<4x8x8xf32> to vector<4x8xf32>
    %48 = vector.shape_cast %47 : vector<4x8xf32> to vector<4x8x1xf32>
    %49 = tpu.reciprocal %48 {approx = true} : vector<4x8x1xf32> -> vector<4x8x1xf32>
    %50 = vector.broadcast %49 : vector<4x8x1xf32> to vector<4x8x8xf32>
    %51 = arith.mulf %46, %50 : vector<4x8x8xf32>
    %52 = arith.truncf %51 : vector<4x8x8xf32> to vector<4x8x8xbf16>
    %cst_20 = arith.constant dense<0.000000e+00> : vector<4x8x8xf32>
    %53 = tpu.matmul %52, %40, %cst_20 {dimension_numbers = #tpu.dot_dimension_numbers<[2], [1], [1], [2], [0, 0, 0, 1, 1, 2], [0], [0]>} : vector<4x8x8xbf16>, vector<4x8x8xbf16>, vector<4x8x8xf32> -> vector<4x8x8xf32>
    %54 = arith.truncf %53 : vector<4x8x8xf32> to vector<4x8x8xbf16>
    %55 = vector.extract_strided_slice %54 {offsets = [0, 0, 0], sizes = [1, 8, 8], strides = [1, 1, 1]} : vector<4x8x8xbf16> to vector<1x8x8xbf16>
    %56 = vector.extract_strided_slice %54 {offsets = [1, 0, 0], sizes = [1, 8, 8], strides = [1, 1, 1]} : vector<4x8x8xbf16> to vector<1x8x8xbf16>
    %57 = vector.extract_strided_slice %54 {offsets = [2, 0, 0], sizes = [1, 8, 8], strides = [1, 1, 1]} : vector<4x8x8xbf16> to vector<1x8x8xbf16>
    %58 = vector.extract_strided_slice %54 {offsets = [3, 0, 0], sizes = [1, 8, 8], strides = [1, 1, 1]} : vector<4x8x8xbf16> to vector<1x8x8xbf16>
    %59 = tpu.concatenate %55, %56, %57, %58 in 2 : vector<1x8x8xbf16>, vector<1x8x8xbf16>, vector<1x8x8xbf16>, vector<1x8x8xbf16> -> vector<1x8x32xbf16>
    %60 = vector.shape_cast %59 : vector<1x8x32xbf16> to vector<8x32xbf16>
    %c0_21 = arith.constant 0 : index
    %c0_22 = arith.constant 0 : index
    %61 = vector.load %arg8[%c0_21, %c0_22] : memref<32x32xbf16, #tpu.memory_space<vmem>>, vector<32x32xbf16>
    %cst_23 = arith.constant dense<0.000000e+00> : vector<8x32xf32>
    %62 = tpu.matmul %60, %61, %cst_23 {dimension_numbers = #tpu.dot_dimension_numbers<[1], [0], [0], [1], [0, 0, 1, 1], [], []>} : vector<8x32xbf16>, vector<32x32xbf16>, vector<8x32xf32> -> vector<8x32xf32>
    %c0_24 = arith.constant 0 : index
    %c0_25 = arith.constant 0 : index
    %63 = vector.load %arg9[%c0_24, %c0_25] : memref<1x32xf32, #tpu.memory_space<vmem>>, vector<1x32xf32>
    %64 = vector.broadcast %63 : vector<1x32xf32> to vector<8x32xf32>
    %65 = arith.addf %62, %64 : vector<8x32xf32>
    %66 = arith.addf %65, %1 : vector<8x32xf32>
    %c0_26 = arith.constant 0 : index
    %c0_27 = arith.constant 0 : index
    %67 = vector.load %arg10[%c0_26, %c0_27] : memref<1x32xf32, #tpu.memory_space<vmem>>, vector<1x32xf32>
    %c0_28 = arith.constant 0 : index
    %c0_29 = arith.constant 0 : index
    %68 = vector.load %arg11[%c0_28, %c0_29] : memref<1x32xf32, #tpu.memory_space<vmem>>, vector<1x32xf32>
    %cst_30 = arith.constant dense<0.000000e+00> : vector<8xf32>
    %69 = vector.multi_reduction <add>, %66, %cst_30 [1] : vector<8x32xf32> to vector<8xf32>
    %70 = vector.shape_cast %69 : vector<8xf32> to vector<8x1xf32>
    %cst_31 = arith.constant 3.200000e+01 : f32
    %71 = vector.broadcast %cst_31 : f32 to vector<8x1xf32>
    %72 = arith.divf %70, %71 : vector<8x1xf32>
    %73 = vector.broadcast %72 : vector<8x1xf32> to vector<8x32xf32>
    %74 = arith.subf %66, %73 : vector<8x32xf32>
    %75 = arith.mulf %74, %74 : vector<8x32xf32>
    %cst_32 = arith.constant dense<0.000000e+00> : vector<8xf32>
    %76 = vector.multi_reduction <add>, %75, %cst_32 [1] : vector<8x32xf32> to vector<8xf32>
    %77 = vector.shape_cast %76 : vector<8xf32> to vector<8x1xf32>
    %cst_33 = arith.constant 3.200000e+01 : f32
    %78 = vector.broadcast %cst_33 : f32 to vector<8x1xf32>
    %79 = arith.divf %77, %78 : vector<8x1xf32>
    %80 = vector.broadcast %72 : vector<8x1xf32> to vector<8x32xf32>
    %81 = arith.subf %66, %80 : vector<8x32xf32>
    %cst_34 = arith.constant 9.99999974E-6 : f32
    %82 = vector.broadcast %cst_34 : f32 to vector<8x1xf32>
    %83 = arith.addf %79, %82 : vector<8x1xf32>
    %84 = math.rsqrt %83 : vector<8x1xf32>
    %85 = vector.broadcast %84 : vector<8x1xf32> to vector<8x32xf32>
    %86 = arith.mulf %81, %85 : vector<8x32xf32>
    %87 = vector.broadcast %67 : vector<1x32xf32> to vector<8x32xf32>
    %88 = arith.mulf %86, %87 : vector<8x32xf32>
    %89 = vector.broadcast %68 : vector<1x32xf32> to vector<8x32xf32>
    %90 = arith.addf %88, %89 : vector<8x32xf32>
    %91 = arith.truncf %90 : vector<8x32xf32> to vector<8x32xbf16>
    %c0_35 = arith.constant 0 : index
    %c0_36 = arith.constant 0 : index
    %92 = vector.load %arg12[%c0_35, %c0_36] : memref<32x64xbf16, #tpu.memory_space<vmem>>, vector<32x64xbf16>
    %cst_37 = arith.constant dense<0.000000e+00> : vector<8x64xf32>
    %93 = tpu.matmul %91, %92, %cst_37 {dimension_numbers = #tpu.dot_dimension_numbers<[1], [0], [0], [1], [0, 0, 1, 1], [], []>} : vector<8x32xbf16>, vector<32x64xbf16>, vector<8x64xf32> -> vector<8x64xf32>
    %c0_38 = arith.constant 0 : index
    %c0_39 = arith.constant 0 : index
    %94 = vector.load %arg13[%c0_38, %c0_39] : memref<1x64xf32, #tpu.memory_space<vmem>>, vector<1x64xf32>
    %95 = vector.broadcast %94 : vector<1x64xf32> to vector<8x64xf32>
    %96 = arith.addf %93, %95 : vector<8x64xf32>
    %cst_40 = arith.constant 5.000000e-01 : f32
    %97 = vector.broadcast %cst_40 : f32 to vector<8x64xf32>
    %98 = arith.mulf %97, %96 : vector<8x64xf32>
    %cst_41 = arith.constant 4.471500e-02 : f32
    %99 = vector.broadcast %cst_41 : f32 to vector<8x64xf32>
    %100 = arith.mulf %99, %96 : vector<8x64xf32>
    %101 = arith.mulf %100, %96 : vector<8x64xf32>
    %102 = arith.mulf %101, %96 : vector<8x64xf32>
    %103 = arith.addf %96, %102 : vector<8x64xf32>
    %cst_42 = arith.constant 0.797884583 : f32
    %104 = vector.broadcast %cst_42 : f32 to vector<8x64xf32>
    %105 = arith.mulf %104, %103 : vector<8x64xf32>
    %106 = math.tanh %105 : vector<8x64xf32>
    %cst_43 = arith.constant 1.000000e+00 : f32
    %107 = vector.broadcast %cst_43 : f32 to vector<8x64xf32>
    %108 = arith.addf %107, %106 : vector<8x64xf32>
    %109 = arith.mulf %98, %108 : vector<8x64xf32>
    %110 = arith.truncf %109 : vector<8x64xf32> to vector<8x64xbf16>
    %c0_44 = arith.constant 0 : index
    %c0_45 = arith.constant 0 : index
    %111 = vector.load %arg14[%c0_44, %c0_45] : memref<64x32xbf16, #tpu.memory_space<vmem>>, vector<64x32xbf16>
    %cst_46 = arith.constant dense<0.000000e+00> : vector<8x32xf32>
    %112 = tpu.matmul %110, %111, %cst_46 {dimension_numbers = #tpu.dot_dimension_numbers<[1], [0], [0], [1], [0, 0, 1, 1], [], []>} : vector<8x64xbf16>, vector<64x32xbf16>, vector<8x32xf32> -> vector<8x32xf32>
    %c0_47 = arith.constant 0 : index
    %c0_48 = arith.constant 0 : index
    %113 = vector.load %arg15[%c0_47, %c0_48] : memref<1x32xf32, #tpu.memory_space<vmem>>, vector<1x32xf32>
    %114 = vector.broadcast %113 : vector<1x32xf32> to vector<8x32xf32>
    %115 = arith.addf %112, %114 : vector<8x32xf32>
    %116 = arith.addf %115, %90 : vector<8x32xf32>
    %c0_49 = arith.constant 0 : index
    %c0_50 = arith.constant 0 : index
    %117 = vector.load %arg16[%c0_49, %c0_50] : memref<1x32xf32, #tpu.memory_space<vmem>>, vector<1x32xf32>
    %c0_51 = arith.constant 0 : index
    %c0_52 = arith.constant 0 : index
    %118 = vector.load %arg17[%c0_51, %c0_52] : memref<1x32xf32, #tpu.memory_space<vmem>>, vector<1x32xf32>
    %cst_53 = arith.constant dense<0.000000e+00> : vector<8xf32>
    %119 = vector.multi_reduction <add>, %116, %cst_53 [1] : vector<8x32xf32> to vector<8xf32>
    %120 = vector.shape_cast %119 : vector<8xf32> to vector<8x1xf32>
    %cst_54 = arith.constant 3.200000e+01 : f32
    %121 = vector.broadcast %cst_54 : f32 to vector<8x1xf32>
    %122 = arith.divf %120, %121 : vector<8x1xf32>
    %123 = vector.broadcast %122 : vector<8x1xf32> to vector<8x32xf32>
    %124 = arith.subf %116, %123 : vector<8x32xf32>
    %125 = arith.mulf %124, %124 : vector<8x32xf32>
    %cst_55 = arith.constant dense<0.000000e+00> : vector<8xf32>
    %126 = vector.multi_reduction <add>, %125, %cst_55 [1] : vector<8x32xf32> to vector<8xf32>
    %127 = vector.shape_cast %126 : vector<8xf32> to vector<8x1xf32>
    %cst_56 = arith.constant 3.200000e+01 : f32
    %128 = vector.broadcast %cst_56 : f32 to vector<8x1xf32>
    %129 = arith.divf %127, %128 : vector<8x1xf32>
    %130 = vector.broadcast %122 : vector<8x1xf32> to vector<8x32xf32>
    %131 = arith.subf %116, %130 : vector<8x32xf32>
    %cst_57 = arith.constant 9.99999974E-6 : f32
    %132 = vector.broadcast %cst_57 : f32 to vector<8x1xf32>
    %133 = arith.addf %129, %132 : vector<8x1xf32>
    %134 = math.rsqrt %133 : vector<8x1xf32>
    %135 = vector.broadcast %134 : vector<8x1xf32> to vector<8x32xf32>
    %136 = arith.mulf %131, %135 : vector<8x32xf32>
    %137 = vector.broadcast %117 : vector<1x32xf32> to vector<8x32xf32>
    %138 = arith.mulf %136, %137 : vector<8x32xf32>
    %139 = vector.broadcast %118 : vector<1x32xf32> to vector<8x32xf32>
    %140 = arith.addf %138, %139 : vector<8x32xf32>
    %141 = vector.shape_cast %140 : vector<8x32xf32> to vector<1x8x32xf32>
    %c0_58 = arith.constant 0 : index
    %c0_59 = arith.constant 0 : index
    %c0_60 = arith.constant 0 : index
    %142 = vector.load %arg18[%c0_58, %c0_59, %c0_60] : memref<1x8x32xf32, #tpu.memory_space<vmem>>, vector<1x8x32xf32>
    tpu.vector_store %arg18[%c0_58, %c0_59, %c0_60], %141 {strides = array<i32>} : memref<1x8x32xf32, #tpu.memory_space<vmem>>, vector<1x8x32xf32>,
    return
  }
  func.func @transform_0(%arg0: i32) -> (i32, i32, i32) {
    %c0_i32 = arith.constant 0 : i32
    %c0_i32_0 = arith.constant 0 : i32
    %c0_i32_1 = arith.constant 0 : i32
    return %arg0, %c0_i32, %c0_i32_0 : i32, i32, i32
  }
  func.func @transform_1(%arg0: i32) -> (i32, i32) {
    %c0_i32 = arith.constant 0 : i32
    %c0_i32_0 = arith.constant 0 : i32
    %c0_i32_1 = arith.constant 0 : i32
    return %c0_i32, %c0_i32_0 : i32, i32
  }
  func.func @transform_2(%arg0: i32) -> (i32, i32) {
    %c0_i32 = arith.constant 0 : i32
    %c0_i32_0 = arith.constant 0 : i32
    %c0_i32_1 = arith.constant 0 : i32
    return %c0_i32, %c0_i32_0 : i32, i32
  }
  func.func @transform_3(%arg0: i32) -> (i32, i32) {
    %c0_i32 = arith.constant 0 : i32
    %c0_i32_0 = arith.constant 0 : i32
    %c0_i32_1 = arith.constant 0 : i32
    return %c0_i32, %c0_i32_0 : i32, i32
  }
  func.func @transform_4(%arg0: i32) -> (i32, i32) {
    %c0_i32 = arith.constant 0 : i32
    %c0_i32_0 = arith.constant 0 : i32
    %c0_i32_1 = arith.constant 0 : i32
    return %c0_i32, %c0_i32_0 : i32, i32
  }
  func.func @transform_5(%arg0: i32) -> (i32, i32) {
    %c0_i32 = arith.constant 0 : i32
    %c0_i32_0 = arith.constant 0 : i32
    %c0_i32_1 = arith.constant 0 : i32
    return %c0_i32, %c0_i32_0 : i32, i32
  }
  func.func @transform_6(%arg0: i32) -> (i32, i32) {
    %c0_i32 = arith.constant 0 : i32
    %c0_i32_0 = arith.constant 0 : i32
    %c0_i32_1 = arith.constant 0 : i32
    return %c0_i32, %c0_i32_0 : i32, i32
  }
  func.func @transform_7(%arg0: i32) -> (i32, i32) {
    %c0_i32 = arith.constant 0 : i32
    %c0_i32_0 = arith.constant 0 : i32
    %c0_i32_1 = arith.constant 0 : i32
    return %c0_i32, %c0_i32_0 : i32, i32
  }
  func.func @transform_8(%arg0: i32) -> (i32, i32) {
    %c0_i32 = arith.constant 0 : i32
    %c0_i32_0 = arith.constant 0 : i32
    %c0_i32_1 = arith.constant 0 : i32
    return %c0_i32, %c0_i32_0 : i32, i32
  }
  func.func @transform_9(%arg0: i32) -> (i32, i32) {
    %c0_i32 = arith.constant 0 : i32
    %c0_i32_0 = arith.constant 0 : i32
    %c0_i32_1 = arith.constant 0 : i32
    return %c0_i32, %c0_i32_0 : i32, i32
  }
  func.func @transform_10(%arg0: i32) -> (i32, i32) {
    %c0_i32 = arith.constant 0 : i32
    %c0_i32_0 = arith.constant 0 : i32
    %c0_i32_1 = arith.constant 0 : i32
    return %c0_i32, %c0_i32_0 : i32, i32
  }
  func.func @transform_11(%arg0: i32) -> (i32, i32) {
    %c0_i32 = arith.constant 0 : i32
    %c0_i32_0 = arith.constant 0 : i32
    %c0_i32_1 = arith.constant 0 : i32
    return %c0_i32, %c0_i32_0 : i32, i32
  }
  func.func @transform_12(%arg0: i32) -> (i32, i32) {
    %c0_i32 = arith.constant 0 : i32
    %c0_i32_0 = arith.constant 0 : i32
    %c0_i32_1 = arith.constant 0 : i32
    return %c0_i32, %c0_i32_0 : i32, i32
  }
  func.func @transform_13(%arg0: i32) -> (i32, i32) {
    %c0_i32 = arith.constant 0 : i32
    %c0_i32_0 = arith.constant 0 : i32
    %c0_i32_1 = arith.constant 0 : i32
    return %c0_i32, %c0_i32_0 : i32, i32
  }
  func.func @transform_14(%arg0: i32) -> (i32, i32) {
    %c0_i32 = arith.constant 0 : i32
    %c0_i32_0 = arith.constant 0 : i32
    %c0_i32_1 = arith.constant 0 : i32
    return %c0_i32, %c0_i32_0 : i32, i32
  }
  func.func @transform_15(%arg0: i32) -> (i32, i32) {
    %c0_i32 = arith.constant 0 : i32
    %c0_i32_0 = arith.constant 0 : i32
    %c0_i32_1 = arith.constant 0 : i32
    return %c0_i32, %c0_i32_0 : i32, i32
  }
  func.func @transform_16(%arg0: i32) -> (i32, i32) {
    %c0_i32 = arith.constant 0 : i32
    %c0_i32_0 = arith.constant 0 : i32
    %c0_i32_1 = arith.constant 0 : i32
    return %c0_i32, %c0_i32_0 : i32, i32
  }
  func.func @transform_17(%arg0: i32) -> (i32, i32, i32) {
    %c0_i32 = arith.constant 0 : i32
    %c0_i32_0 = arith.constant 0 : i32
    %c0_i32_1 = arith.constant 0 : i32
    return %arg0, %c0_i32, %c0_i32_0 : i32, i32, i32
  }
}

</mosaic_0001>

<llo_original>
// kernel: tpu_custom_call.1
$region0: #{tpu_custom_call.1}
  #allocation0 [shape = 'u32[]', space=smem, size = 0x4, offset = 0x4, fixed_abs, tag = 'smem constant byte address 0x4 - core index']
  #allocation1 [shape = 'u32[72,128]{1,0:T(1,128)}', space=vmem, size = 0x9000, scoped, tag = 'internal scratch']
  %s0 = inlined_call_operand.vmem [shape: f32[2,8,32], index: 0, kind: input, shape index: {}]
  %s1 = inlined_call_operand.vmem [shape: bf16[32,32], index: 1, kind: input, shape index: {}]
  %s2 = inlined_call_operand.vmem [shape: f32[1,32], index: 2, kind: input, shape index: {}]
  %s3 = inlined_call_operand.vmem [shape: bf16[32,32], index: 3, kind: input, shape index: {}]
  %s4 = inlined_call_operand.vmem [shape: f32[1,32], index: 4, kind: input, shape index: {}]
  %s5 = inlined_call_operand.hbm [shape: bf16[32,32], index: 5, kind: input, shape index: {}]
  %s6 = inlined_call_operand.vmem [shape: f32[1,32], index: 6, kind: input, shape index: {}]
  %s7 = inlined_call_operand.hbm [shape: bf16[32,32], index: 7, kind: input, shape index: {}]
  %s8 = inlined_call_operand.vmem [shape: f32[1,32], index: 8, kind: input, shape index: {}]
  %s9 = inlined_call_operand.vmem [shape: f32[1,32], index: 9, kind: input, shape index: {}]
  %s10 = inlined_call_operand.vmem [shape: f32[1,32], index: 10, kind: input, shape index: {}]
  %s11 = inlined_call_operand.hbm [shape: bf16[32,64], index: 11, kind: input, shape index: {}]
  %s12 = inlined_call_operand.vmem [shape: f32[1,64], index: 12, kind: input, shape index: {}]
  %s13 = inlined_call_operand.vmem [shape: bf16[64,32], index: 13, kind: input, shape index: {}]
  %s14 = inlined_call_operand.vmem [shape: f32[1,32], index: 14, kind: input, shape index: {}]
  %s15 = inlined_call_operand.vmem [shape: f32[1,32], index: 15, kind: input, shape index: {}]
  %s16 = inlined_call_operand.vmem [shape: f32[1,32], index: 16, kind: input, shape index: {}]
  %s17 = inlined_call_operand.hbm [shape: f32[2,8,32], index: 17, kind: output, shape index: {}]
  %s18 = sld [smem:[#allocation0]]
  $region113: #{tpu_custom_call.1} parent=0
    _
  %s20 = ssub.s32 1, %s18
  %s21 = scalar_select 0, %s20, %s18
  $region1: #{tpu_custom_call.1} parent=0
    #allocation2 [shape = 'u8[8192]{0}', space=vmem, size = 0x2000, scoped, tag = 'input window, operand 5, single buffered']
    #allocation3 [shape = 's32[2]{0}', space=sflag, size = 0x8, scoped, tag = 'scoped memory for tpu_custom_call.1']
    #allocation4 [shape = 's32[2]{0}', space=sflag, size = 0x8, scoped, tag = 'scoped memory for tpu_custom_call.1']
    #allocation5 [shape = 'u8[8192]{0}', space=vmem, size = 0x2000, scoped, tag = 'input window, operand 7, single buffered']
    #allocation6 [shape = 's32[1]{0}', space=sflag, size = 0x4, scoped, tag = 'scoped memory for tpu_custom_call.1']
    #allocation7 [shape = 'u8[8192]{0}', space=vmem, size = 0x2000, scoped, tag = 'input window, operand 11, single buffered']
    #allocation8 [shape = 'u8[8192]{0}', space=vmem, size = 0x2000, scoped, tag = 'output window, operand 0']
    %22 = vsyncpa [#allocation3], 0
    %23 = vsyncpa [#allocation6], 0
    %24 = vsyncpa [#allocation4], 0
    %s25 = scalar_lea.sflag [#allocation4], 1
    %26 = vsyncpa %s25, 0
    loop: start=0, step=1, limit=4
    $region2: #{tpu_custom_call.1} parent=1 // loop_pre_header
      _
    $region3: #{tpu_custom_call.1} parent=1 // loop_header
      %s28 = sphi 0, %s32
      %p29 = scmp.ge.s32.totalorder %s28, 4
      %s38 = sphi 0, %s40
      %s41 = sphi 0, %s38
      %s42 = sphi 0, %s41
      %s58 = sphi 0, %s42
      %s62 = sphi 0, %s62
      %s64 = sphi 0, %s62
      %s65 = sphi 0, %s64
      %s79 = sphi 0, %s65
      %s83 = sphi 0, %s83
      %s85 = sphi 0, %s83
      %s86 = sphi 0, %s85
      %s100 = sphi 0, %s86
      %s104 = sphi 0, %s104
      %s106 = sphi 0, %s104
      %s107 = sphi 0, %s106
      %s121 = sphi 0, %s107
      %s125 = sphi 0, %s125
      %s127 = sphi 0, %s125
      %s128 = sphi 0, %s127
      %s142 = sphi 0, %s128
      %s146 = sphi 0, %s146
      %s148 = sphi 0, %s146
      %s149 = sphi 0, %s148
      %s163 = sphi 0, %s149
      %s167 = sphi 0, %s167
      %s169 = sphi 0, %s167
      %s170 = sphi 0, %s169
      %s184 = sphi 0, %s170
      %s188 = sphi 0, %s188
      %s190 = sphi 0, %s188
      %s191 = sphi 0, %s190
      %s205 = sphi 0, %s191
      %s209 = sphi 0, %s209
      %s211 = sphi 0, %s209
      %s212 = sphi 0, %s211
      %s226 = sphi 0, %s212
      %s230 = sphi 0, %s230
      %s232 = sphi 0, %s230
      %s233 = sphi 0, %s232
      %s247 = sphi 0, %s233
      %s251 = sphi 0, %s251
      %s253 = sphi 0, %s251
      %s254 = sphi 0, %s253
      %s268 = sphi 0, %s254
      %s272 = sphi 0, %s272
      %s274 = sphi 0, %s272
      %s275 = sphi 0, %s274
      %s289 = sphi 0, %s275
      %s293 = sphi 0, %s293
      %s295 = sphi 0, %s293
      %s296 = sphi 0, %s295
      %s310 = sphi 0, %s296
      %s314 = sphi 0, %s314
      %s316 = sphi 0, %s314
      %s317 = sphi 0, %s316
      %s331 = sphi 0, %s317
      %s335 = sphi 0, %s335
      %s337 = sphi 0, %s335
      %s338 = sphi 0, %s337
      %s352 = sphi 0, %s338
      %s356 = sphi 0, %s356
      %s358 = sphi 0, %s356
      %s359 = sphi 0, %s358
      %s373 = sphi 0, %s359
      %s377 = sphi 0, %s377
      %s379 = sphi 0, %s377
      %s380 = sphi 0, %s379
      %s394 = sphi 0, %s380
      %s400 = sphi 0, %s402
      %s403 = sphi 0, %s400
      %s404 = sphi 0, %s403
      %s420 = sphi 0, %s404
    $region4: #{tpu_custom_call.1} parent=1 // loop_header_branch
      %31 = sbr.rel (%p29) target = $region8
    $region5: #{tpu_custom_call.1} parent=1 // loop_body
      %s33 = ssub.s32 %s28, 1
      %s34 = ssub.s32 %s28, 2
      %s35 = sadd.s32 %s28, 1
      %s36 = ssub.s32 %s28, %s35
      %p37 = scmp.eq.s32.totalorder %s36, 0
      %s39 = sadd.s32 %s38, 1
      %s40 = scalar_select %p37, %s38, %s39
      %p43 = pneg %p37
      %p44 = scmp.eq.s32.totalorder %s28, 1
      %p45 = por %p43, %p44
      %p46 = scmp.ne.s32.totalorder %s38, %s41
      %p47 = scmp.eq.s32.totalorder %s28, 0
      %p48 = por %p46, %p47
      %p49 = scmp.ne.s32.totalorder %s38, %s41
      %p50 = scmp.eq.s32.totalorder %s33, 1
      %p51 = por %p49, %p50
      %p52 = scmp.ne.s32.totalorder %s41, %s42
      %p53 = scmp.eq.s32.totalorder %s33, 0
      %p54 = por %p52, %p53
      %p55 = scmp.ne.s32.totalorder %s41, %s42
      %p56 = scmp.eq.s32.totalorder %s34, 1
      %p57 = por %p55, %p56
      %p59 = scmp.ne.s32.totalorder %s42, %s58
      %p60 = scmp.eq.s32.totalorder %s34, 0
      %p61 = por %p59, %p60
      %s63 = sadd.s32 %s62, 1
      %p66 = scmp.eq.s32.totalorder %s28, 1
      %p67 = scmp.ne.s32.totalorder %s62, %s64
      %p68 = scmp.eq.s32.totalorder %s28, 0
      %p69 = por %p67, %p68
      %p70 = scmp.ne.s32.totalorder %s62, %s64
      %p71 = scmp.eq.s32.totalorder %s33, 1
      %p72 = por %p70, %p71
      %p73 = scmp.ne.s32.totalorder %s64, %s65
      %p74 = scmp.eq.s32.totalorder %s33, 0
      %p75 = por %p73, %p74
      %p76 = scmp.ne.s32.totalorder %s64, %s65
      %p77 = scmp.eq.s32.totalorder %s34, 1
      %p78 = por %p76, %p77
      %p80 = scmp.ne.s32.totalorder %s65, %s79
      %p81 = scmp.eq.s32.totalorder %s34, 0
      %p82 = por %p80, %p81
      %s84 = sadd.s32 %s83, 1
      %p87 = scmp.eq.s32.totalorder %s28, 1
      %p88 = scmp.ne.s32.totalorder %s83, %s85
      %p89 = scmp.eq.s32.totalorder %s28, 0
      %p90 = por %p88, %p89
      %p91 = scmp.ne.s32.totalorder %s83, %s85
      %p92 = scmp.eq.s32.totalorder %s33, 1
      %p93 = por %p91, %p92
      %p94 = scmp.ne.s32.totalorder %s85, %s86
      %p95 = scmp.eq.s32.totalorder %s33, 0
      %p96 = por %p94, %p95
      %p97 = scmp.ne.s32.totalorder %s85, %s86
      %p98 = scmp.eq.s32.totalorder %s34, 1
      %p99 = por %p97, %p98
      %p101 = scmp.ne.s32.totalorder %s86, %s100
      %p102 = scmp.eq.s32.totalorder %s34, 0
      %p103 = por %p101, %p102
      %s105 = sadd.s32 %s104, 1
      %p108 = scmp.eq.s32.totalorder %s28, 1
      %p109 = scmp.ne.s32.totalorder %s104, %s106
      %p110 = scmp.eq.s32.totalorder %s28, 0
      %p111 = por %p109, %p110
      %p112 = scmp.ne.s32.totalorder %s104, %s106
      %p113 = scmp.eq.s32.totalorder %s33, 1
      %p114 = por %p112, %p113
      %p115 = scmp.ne.s32.totalorder %s106, %s107
      %p116 = scmp.eq.s32.totalorder %s33, 0
      %p117 = por %p115, %p116
      %p118 = scmp.ne.s32.totalorder %s106, %s107
      %p119 = scmp.eq.s32.totalorder %s34, 1
      %p120 = por %p118, %p119
      %p122 = scmp.ne.s32.totalorder %s107, %s121
      %p123 = scmp.eq.s32.totalorder %s34, 0
      %p124 = por %p122, %p123
      %s126 = sadd.s32 %s125, 1
      %p129 = scmp.eq.s32.totalorder %s28, 1
      %p130 = scmp.ne.s32.totalorder %s125, %s127
      %p131 = scmp.eq.s32.totalorder %s28, 0
      %p132 = por %p130, %p131
      %p133 = scmp.ne.s32.totalorder %s125, %s127
      %p134 = scmp.eq.s32.totalorder %s33, 1
      %p135 = por %p133, %p134
      %p136 = scmp.ne.s32.totalorder %s127, %s128
      %p137 = scmp.eq.s32.totalorder %s33, 0
      %p138 = por %p136, %p137
      %p139 = scmp.ne.s32.totalorder %s127, %s128
      %p140 = scmp.eq.s32.totalorder %s34, 1
      %p141 = por %p139, %p140
      %p143 = scmp.ne.s32.totalorder %s128, %s142
      %p144 = scmp.eq.s32.totalorder %s34, 0
      %p145 = por %p143, %p144
      %s147 = sadd.s32 %s146, 1
      %p150 = scmp.eq.s32.totalorder %s28, 1
      %p151 = scmp.ne.s32.totalorder %s146, %s148
      %p152 = scmp.eq.s32.totalorder %s28, 0
      %p153 = por %p151, %p152
      %p154 = scmp.ne.s32.totalorder %s146, %s148
      %p155 = scmp.eq.s32.totalorder %s33, 1
      %p156 = por %p154, %p155
      %p157 = scmp.ne.s32.totalorder %s148, %s149
      %p158 = scmp.eq.s32.totalorder %s33, 0
      %p159 = por %p157, %p158
      %p160 = scmp.ne.s32.totalorder %s148, %s149
      %p161 = scmp.eq.s32.totalorder %s34, 1
      %p162 = por %p160, %p161
      %p164 = scmp.ne.s32.totalorder %s149, %s163
      %p165 = scmp.eq.s32.totalorder %s34, 0
      %p166 = por %p164, %p165
      %s168 = sadd.s32 %s167, 1
      %p171 = scmp.eq.s32.totalorder %s28, 1
      %p172 = scmp.ne.s32.totalorder %s167, %s169
      %p173 = scmp.eq.s32.totalorder %s28, 0
      %p174 = por %p172, %p173
      %p175 = scmp.ne.s32.totalorder %s167, %s169
      %p176 = scmp.eq.s32.totalorder %s33, 1
      %p177 = por %p175, %p176
      %p178 = scmp.ne.s32.totalorder %s169, %s170
      %p179 = scmp.eq.s32.totalorder %s33, 0
      %p180 = por %p178, %p179
      %p181 = scmp.ne.s32.totalorder %s169, %s170
      %p182 = scmp.eq.s32.totalorder %s34, 1
      %p183 = por %p181, %p182
      %p185 = scmp.ne.s32.totalorder %s170, %s184
      %p186 = scmp.eq.s32.totalorder %s34, 0
      %p187 = por %p185, %p186
      %s189 = sadd.s32 %s188, 1
      %p192 = scmp.eq.s32.totalorder %s28, 1
      %p193 = scmp.ne.s32.totalorder %s188, %s190
      %p194 = scmp.eq.s32.totalorder %s28, 0
      %p195 = por %p193, %p194
      %p196 = scmp.ne.s32.totalorder %s188, %s190
      %p197 = scmp.eq.s32.totalorder %s33, 1
      %p198 = por %p196, %p197
      %p199 = scmp.ne.s32.totalorder %s190, %s191
      %p200 = scmp.eq.s32.totalorder %s33, 0
      %p201 = por %p199, %p200
      %p202 = scmp.ne.s32.totalorder %s190, %s191
      %p203 = scmp.eq.s32.totalorder %s34, 1
      %p204 = por %p202, %p203
      %p206 = scmp.ne.s32.totalorder %s191, %s205
      %p207 = scmp.eq.s32.totalorder %s34, 0
      %p208 = por %p206, %p207
      %s210 = sadd.s32 %s209, 1
      %p213 = scmp.eq.s32.totalorder %s28, 1
      %p214 = scmp.ne.s32.totalorder %s209, %s211
      %p215 = scmp.eq.s32.totalorder %s28, 0
      %p216 = por %p214, %p215
      %p217 = scmp.ne.s32.totalorder %s209, %s211
      %p218 = scmp.eq.s32.totalorder %s33, 1
      %p219 = por %p217, %p218
      %p220 = scmp.ne.s32.totalorder %s211, %s212
      %p221 = scmp.eq.s32.totalorder %s33, 0
      %p222 = por %p220, %p221
      %p223 = scmp.ne.s32.totalorder %s211, %s212
      %p224 = scmp.eq.s32.totalorder %s34, 1
      %p225 = por %p223, %p224
      %p227 = scmp.ne.s32.totalorder %s212, %s226
      %p228 = scmp.eq.s32.totalorder %s34, 0
      %p229 = por %p227, %p228
      %s231 = sadd.s32 %s230, 1
      %p234 = scmp.eq.s32.totalorder %s28, 1
      %p235 = scmp.ne.s32.totalorder %s230, %s232
      %p236 = scmp.eq.s32.totalorder %s28, 0
      %p237 = por %p235, %p236
      %p238 = scmp.ne.s32.totalorder %s230, %s232
      %p239 = scmp.eq.s32.totalorder %s33, 1
      %p240 = por %p238, %p239
      %p241 = scmp.ne.s32.totalorder %s232, %s233
      %p242 = scmp.eq.s32.totalorder %s33, 0
      %p243 = por %p241, %p242
      %p244 = scmp.ne.s32.totalorder %s232, %s233
      %p245 = scmp.eq.s32.totalorder %s34, 1
      %p246 = por %p244, %p245
      %p248 = scmp.ne.s32.totalorder %s233, %s247
      %p249 = scmp.eq.s32.totalorder %s34, 0
      %p250 = por %p248, %p249
      %s252 = sadd.s32 %s251, 1
      %p255 = scmp.eq.s32.totalorder %s28, 1
      %p256 = scmp.ne.s32.totalorder %s251, %s253
      %p257 = scmp.eq.s32.totalorder %s28, 0
      %p258 = por %p256, %p257
      %p259 = scmp.ne.s32.totalorder %s251, %s253
      %p260 = scmp.eq.s32.totalorder %s33, 1
      %p261 = por %p259, %p260
      %p262 = scmp.ne.s32.totalorder %s253, %s254
      %p263 = scmp.eq.s32.totalorder %s33, 0
      %p264 = por %p262, %p263
      %p265 = scmp.ne.s32.totalorder %s253, %s254
      %p266 = scmp.eq.s32.totalorder %s34, 1
      %p267 = por %p265, %p266
      %p269 = scmp.ne.s32.totalorder %s254, %s268
      %p270 = scmp.eq.s32.totalorder %s34, 0
      %p271 = por %p269, %p270
      %s273 = sadd.s32 %s272, 1
      %p276 = scmp.eq.s32.totalorder %s28, 1
      %p277 = scmp.ne.s32.totalorder %s272, %s274
      %p278 = scmp.eq.s32.totalorder %s28, 0
      %p279 = por %p277, %p278
      %p280 = scmp.ne.s32.totalorder %s272, %s274
      %p281 = scmp.eq.s32.totalorder %s33, 1
      %p282 = por %p280, %p281
      %p283 = scmp.ne.s32.totalorder %s274, %s275
      %p284 = scmp.eq.s32.totalorder %s33, 0
      %p285 = por %p283, %p284
      %p286 = scmp.ne.s32.totalorder %s274, %s275
      %p287 = scmp.eq.s32.totalorder %s34, 1
      %p288 = por %p286, %p287
      %p290 = scmp.ne.s32.totalorder %s275, %s289
      %p291 = scmp.eq.s32.totalorder %s34, 0
      %p292 = por %p290, %p291
      %s294 = sadd.s32 %s293, 1
      %p297 = scmp.eq.s32.totalorder %s28, 1
      %p298 = scmp.ne.s32.totalorder %s293, %s295
      %p299 = scmp.eq.s32.totalorder %s28, 0
      %p300 = por %p298, %p299
      %p301 = scmp.ne.s32.totalorder %s293, %s295
      %p302 = scmp.eq.s32.totalorder %s33, 1
      %p303 = por %p301, %p302
      %p304 = scmp.ne.s32.totalorder %s295, %s296
      %p305 = scmp.eq.s32.totalorder %s33, 0
      %p306 = por %p304, %p305
      %p307 = scmp.ne.s32.totalorder %s295, %s296
      %p308 = scmp.eq.s32.totalorder %s34, 1
      %p309 = por %p307, %p308
      %p311 = scmp.ne.s32.totalorder %s296, %s310
      %p312 = scmp.eq.s32.totalorder %s34, 0
      %p313 = por %p311, %p312
      %s315 = sadd.s32 %s314, 1
      %p318 = scmp.eq.s32.totalorder %s28, 1
      %p319 = scmp.ne.s32.totalorder %s314, %s316
      %p320 = scmp.eq.s32.totalorder %s28, 0
      %p321 = por %p319, %p320
      %p322 = scmp.ne.s32.totalorder %s314, %s316
      %p323 = scmp.eq.s32.totalorder %s33, 1
      %p324 = por %p322, %p323
      %p325 = scmp.ne.s32.totalorder %s316, %s317
      %p326 = scmp.eq.s32.totalorder %s33, 0
      %p327 = por %p325, %p326
      %p328 = scmp.ne.s32.totalorder %s316, %s317
      %p329 = scmp.eq.s32.totalorder %s34, 1
      %p330 = por %p328, %p329
      %p332 = scmp.ne.s32.totalorder %s317, %s331
      %p333 = scmp.eq.s32.totalorder %s34, 0
      %p334 = por %p332, %p333
      %s336 = sadd.s32 %s335, 1
      %p339 = scmp.eq.s32.totalorder %s28, 1
      %p340 = scmp.ne.s32.totalorder %s335, %s337
      %p341 = scmp.eq.s32.totalorder %s28, 0
      %p342 = por %p340, %p341
      %p343 = scmp.ne.s32.totalorder %s335, %s337
      %p344 = scmp.eq.s32.totalorder %s33, 1
      %p345 = por %p343, %p344
      %p346 = scmp.ne.s32.totalorder %s337, %s338
      %p347 = scmp.eq.s32.totalorder %s33, 0
      %p348 = por %p346, %p347
      %p349 = scmp.ne.s32.totalorder %s337, %s338
      %p350 = scmp.eq.s32.totalorder %s34, 1
      %p351 = por %p349, %p350
      %p353 = scmp.ne.s32.totalorder %s338, %s352
      %p354 = scmp.eq.s32.totalorder %s34, 0
      %p355 = por %p353, %p354
      %s357 = sadd.s32 %s356, 1
      %p360 = scmp.eq.s32.totalorder %s28, 1
      %p361 = scmp.ne.s32.totalorder %s356, %s358
      %p362 = scmp.eq.s32.totalorder %s28, 0
      %p363 = por %p361, %p362
      %p364 = scmp.ne.s32.totalorder %s356, %s358
      %p365 = scmp.eq.s32.totalorder %s33, 1
      %p366 = por %p364, %p365
      %p367 = scmp.ne.s32.totalorder %s358, %s359
      %p368 = scmp.eq.s32.totalorder %s33, 0
      %p369 = por %p367, %p368
      %p370 = scmp.ne.s32.totalorder %s358, %s359
      %p371 = scmp.eq.s32.totalorder %s34, 1
      %p372 = por %p370, %p371
      %p374 = scmp.ne.s32.totalorder %s359, %s373
      %p375 = scmp.eq.s32.totalorder %s34, 0
      %p376 = por %p374, %p375
      %s378 = sadd.s32 %s377, 1
      %p381 = scmp.eq.s32.totalorder %s28, 1
      %p382 = scmp.ne.s32.totalorder %s377, %s379
      %p383 = scmp.eq.s32.totalorder %s28, 0
      %p384 = por %p382, %p383
      %p385 = scmp.ne.s32.totalorder %s377, %s379
      %p386 = scmp.eq.s32.totalorder %s33, 1
      %p387 = por %p385, %p386
      %p388 = scmp.ne.s32.totalorder %s379, %s380
      %p389 = scmp.eq.s32.totalorder %s33, 0
      %p390 = por %p388, %p389
      %p391 = scmp.ne.s32.totalorder %s379, %s380
      %p392 = scmp.eq.s32.totalorder %s34, 1
      %p393 = por %p391, %p392
      %p395 = scmp.ne.s32.totalorder %s380, %s394
      %p396 = scmp.eq.s32.totalorder %s34, 0
      %p397 = por %p395, %p396
      %s398 = ssub.s32 %s28, %s35
      %p399 = scmp.eq.s32.totalorder %s398, 0
      %s401 = sadd.s32 %s400, 1
      %s402 = scalar_select %p399, %s400, %s401
      %p405 = pneg %p399
      %p406 = scmp.eq.s32.totalorder %s28, 1
      %p407 = por %p405, %p406
      %p408 = scmp.ne.s32.totalorder %s400, %s403
      %p409 = scmp.eq.s32.totalorder %s28, 0
      %p410 = por %p408, %p409
      %p411 = scmp.ne.s32.totalorder %s400, %s403
      %p412 = scmp.eq.s32.totalorder %s33, 1
      %p413 = por %p411, %p412
      %p414 = scmp.ne.s32.totalorder %s403, %s404
      %p415 = scmp.eq.s32.totalorder %s33, 0
      %p416 = por %p414, %p415
      %p417 = scmp.ne.s32.totalorder %s403, %s404
      %p418 = scmp.eq.s32.totalorder %s34, 1
      %p419 = por %p417, %p418
      %p421 = scmp.ne.s32.totalorder %s404, %s420
      %p422 = scmp.eq.s32.totalorder %s34, 0
      %p423 = por %p421, %p422
      %p424 = scmp.le.s32.totalorder 1, %s28
      %p425 = scmp.lt.s32.totalorder %s28, 3
      %p426 = pnand %p424, %p425
      %p427 = pneg %p426
      // Predicated region
      $region9: #{tpu_custom_call.1} parent=5 // pred_check
        _
      $region10: #{tpu_custom_call.1} parent=5 // pred_check_branch
        %429 = sbr.rel (%p426) target = $region12
      $region11: #{tpu_custom_call.1} parent=5 // pred_region
        %s430 = ssub.s32 %s28, 1
        // Predicated region
        $region13: #{tpu_custom_call.1} parent=11 // pred_check
          %p431 = pneg %p75
        $region14: #{tpu_custom_call.1} parent=11 // pred_check_branch
          %433 = sbr.rel (%p431) target = $region16
        $region15: #{tpu_custom_call.1} parent=11 // pred_region
          _
        $region16: #{tpu_custom_call.1} parent=11 // pred_fallthru
          _
        // Predicated region
        $region17: #{tpu_custom_call.1} parent=11 // pred_check
          %p434 = pneg %p96
        $region18: #{tpu_custom_call.1} parent=11 // pred_check_branch
          %436 = sbr.rel (%p434) target = $region20
        $region19: #{tpu_custom_call.1} parent=11 // pred_region
          _
        $region20: #{tpu_custom_call.1} parent=11 // pred_fallthru
          _
        // Predicated region
        $region21: #{tpu_custom_call.1} parent=11 // pred_check
          %p437 = pneg %p117
        $region22: #{tpu_custom_call.1} parent=11 // pred_check_branch
          %439 = sbr.rel (%p437) target = $region24
        $region23: #{tpu_custom_call.1} parent=11 // pred_region
          _
        $region24: #{tpu_custom_call.1} parent=11 // pred_fallthru
          _
        // Predicated region
        $region25: #{tpu_custom_call.1} parent=11 // pred_check
          %p440 = pneg %p138
        $region26: #{tpu_custom_call.1} parent=11 // pred_check_branch
          %442 = sbr.rel (%p440) target = $region28
        $region27: #{tpu_custom_call.1} parent=11 // pred_region
          _
        $region28: #{tpu_custom_call.1} parent=11 // pred_fallthru
          _
        // Predicated region
        $region29: #{tpu_custom_call.1} parent=11 // pred_check
          %p443 = pneg %p159
        $region30: #{tpu_custom_call.1} parent=11 // pred_check_branch
          %445 = sbr.rel (%p443) target = $region32
        $region31: #{tpu_custom_call.1} parent=11 // pred_region
          %447 = vsyncadd [#allocation3], 0
          %s448 = sshll.u32 %s5, 4
          %s449 = int_to_ptr.hbm [resolvable:$true] %s448
          %s450 = sshll.u32 [#allocation2], 4
          %s451 = int_to_ptr.vmem [resolvable:$true] %s450
          %456 = dma.hbm_to_vmem [thread:$0]  %s449, 256, %s451, [#allocation3], 64, 64, 4
        $region32: #{tpu_custom_call.1} parent=11 // pred_fallthru
          _
        // Predicated region
        $region33: #{tpu_custom_call.1} parent=11 // pred_check
          %p457 = pneg %p180
        $region34: #{tpu_custom_call.1} parent=11 // pred_check_branch
          %459 = sbr.rel (%p457) target = $region36
        $region35: #{tpu_custom_call.1} parent=11 // pred_region
          _
        $region36: #{tpu_custom_call.1} parent=11 // pred_fallthru
          _
        // Predicated region
        $region37: #{tpu_custom_call.1} parent=11 // pred_check
          %p460 = pneg %p201
        $region38: #{tpu_custom_call.1} parent=11 // pred_check_branch
          %462 = sbr.rel (%p460) target = $region40
        $region39: #{tpu_custom_call.1} parent=11 // pred_region
          %464 = vsyncadd [#allocation6], 0
          %s465 = sshll.u32 %s7, 4
          %s466 = int_to_ptr.hbm [resolvable:$true] %s465
          %s467 = sshll.u32 [#allocation5], 4
          %s468 = int_to_ptr.vmem [resolvable:$true] %s467
          %473 = dma.hbm_to_vmem [thread:$0]  %s466, 256, %s468, [#allocation6], 64, 64, 4
        $region40: #{tpu_custom_call.1} parent=11 // pred_fallthru
          _
        // Predicated region
        $region41: #{tpu_custom_call.1} parent=11 // pred_check
          %p474 = pneg %p222
        $region42: #{tpu_custom_call.1} parent=11 // pred_check_branch
          %476 = sbr.rel (%p474) target = $region44
        $region43: #{tpu_custom_call.1} parent=11 // pred_region
          _
        $region44: #{tpu_custom_call.1} parent=11 // pred_fallthru
          _
        // Predicated region
        $region45: #{tpu_custom_call.1} parent=11 // pred_check
          %p477 = pneg %p243
        $region46: #{tpu_custom_call.1} parent=11 // pred_check_branch
          %479 = sbr.rel (%p477) target = $region48
        $region47: #{tpu_custom_call.1} parent=11 // pred_region
          _
        $region48: #{tpu_custom_call.1} parent=11 // pred_fallthru
          _
        // Predicated region
        $region49: #{tpu_custom_call.1} parent=11 // pred_check
          %p480 = pneg %p264
        $region50: #{tpu_custom_call.1} parent=11 // pred_check_branch
          %482 = sbr.rel (%p480) target = $region52
        $region51: #{tpu_custom_call.1} parent=11 // pred_region
          _
        $region52: #{tpu_custom_call.1} parent=11 // pred_fallthru
          _
        // Predicated region
        $region53: #{tpu_custom_call.1} parent=11 // pred_check
          %p483 = pneg %p285
        $region54: #{tpu_custom_call.1} parent=11 // pred_check_branch
          %485 = sbr.rel (%p483) target = $region56
        $region55: #{tpu_custom_call.1} parent=11 // pred_region
          %487 = vsyncadd [#allocation6], 0
          %s488 = sshll.u32 %s11, 4
          %s489 = int_to_ptr.hbm [resolvable:$true] %s488
          %s490 = sshll.u32 [#allocation7], 4
          %s491 = int_to_ptr.vmem [resolvable:$true] %s490
          %496 = dma.hbm_to_vmem [thread:$0]  %s489, 256, %s491, [#allocation6], 64, 64, 4
        $region56: #{tpu_custom_call.1} parent=11 // pred_fallthru
          _
        // Predicated region
        $region57: #{tpu_custom_call.1} parent=11 // pred_check
          %p497 = pneg %p306
        $region58: #{tpu_custom_call.1} parent=11 // pred_check_branch
          %499 = sbr.rel (%p497) target = $region60
        $region59: #{tpu_custom_call.1} parent=11 // pred_region
          _
        $region60: #{tpu_custom_call.1} parent=11 // pred_fallthru
          _
        // Predicated region
        $region61: #{tpu_custom_call.1} parent=11 // pred_check
          %p500 = pneg %p327
        $region62: #{tpu_custom_call.1} parent=11 // pred_check_branch
          %502 = sbr.rel (%p500) target = $region64
        $region63: #{tpu_custom_call.1} parent=11 // pred_region
          _
        $region64: #{tpu_custom_call.1} parent=11 // pred_fallthru
          _
        // Predicated region
        $region65: #{tpu_custom_call.1} parent=11 // pred_check
          %p503 = pneg %p348
        $region66: #{tpu_custom_call.1} parent=11 // pred_check_branch
          %505 = sbr.rel (%p503) target = $region68
        $region67: #{tpu_custom_call.1} parent=11 // pred_region
          _
        $region68: #{tpu_custom_call.1} parent=11 // pred_fallthru
          _
        // Predicated region
        $region69: #{tpu_custom_call.1} parent=11 // pred_check
          %p506 = pneg %p369
        $region70: #{tpu_custom_call.1} parent=11 // pred_check_branch
          %508 = sbr.rel (%p506) target = $region72
        $region71: #{tpu_custom_call.1} parent=11 // pred_region
          _
        $region72: #{tpu_custom_call.1} parent=11 // pred_fallthru
          _
        // Predicated region
        $region73: #{tpu_custom_call.1} parent=11 // pred_check
          %p509 = pneg %p390
        $region74: #{tpu_custom_call.1} parent=11 // pred_check_branch
          %511 = sbr.rel (%p509) target = $region76
        $region75: #{tpu_custom_call.1} parent=11 // pred_region
          _
        $region76: #{tpu_custom_call.1} parent=11 // pred_fallthru
          _
      $region12: #{tpu_custom_call.1} parent=5 // pred_fallthru
        _
      %p512 = scmp.lt.s32.totalorder %s28, 2
      // Predicated region
      $region77: #{tpu_custom_call.1} parent=5 // pred_check
        %p513 = pneg %p512
      $region78: #{tpu_custom_call.1} parent=5 // pred_check_branch
        %515 = sbr.rel (%p513) target = $region80
      $region79: #{tpu_custom_call.1} parent=5 // pred_region
        // Predicated region
        $region81: #{tpu_custom_call.1} parent=79 // pred_check
          %p516 = pneg %p48
        $region82: #{tpu_custom_call.1} parent=79 // pred_check_branch
          %518 = sbr.rel (%p516) target = $region84
        $region83: #{tpu_custom_call.1} parent=79 // pred_region
          %p519 = scmp.lt.s32.totalorder %s28, 1
          %s520 = scalar_select %p519, %s28, 1
          %s521 = smul.addr %s520, 8
          %s522 = scalar_lea.vmem %s0, %s521
        $region84: #{tpu_custom_call.1} parent=79 // pred_fallthru
          _
      $region80: #{tpu_custom_call.1} parent=5 // pred_fallthru
        _
      %p523 = scmp.le.s32.totalorder 1, %s28
      %p524 = scmp.lt.s32.totalorder %s28, 3
      %p525 = pnand %p523, %p524
      %p526 = pneg %p525
      // Predicated region
      $region85: #{tpu_custom_call.1} parent=5 // pred_check
        _
      $region86: #{tpu_custom_call.1} parent=5 // pred_check_branch
        %528 = sbr.rel (%p525) target = $region88
      $region87: #{tpu_custom_call.1} parent=5 // pred_region
        %s529 = ssub.s32 %s28, 1
        // Predicated region
        $region89: #{tpu_custom_call.1} parent=87 // pred_check
          %p530 = pneg %p159
        $region90: #{tpu_custom_call.1} parent=87 // pred_check_branch
          %532 = sbr.rel (%p530) target = $region92
        $region91: #{tpu_custom_call.1} parent=87 // pred_region
          %534 = dma.done [#allocation3], 256
        $region92: #{tpu_custom_call.1} parent=87 // pred_fallthru
          _
        // Predicated region
        $region93: #{tpu_custom_call.1} parent=87 // pred_check
          %p535 = pneg %p201
        $region94: #{tpu_custom_call.1} parent=87 // pred_check_branch
          %537 = sbr.rel (%p535) target = $region96
        $region95: #{tpu_custom_call.1} parent=87 // pred_region
          %539 = dma.done [#allocation6], 256
        $region96: #{tpu_custom_call.1} parent=87 // pred_fallthru
          _
        // Predicated region
        $region97: #{tpu_custom_call.1} parent=87 // pred_check
          %p540 = pneg %p285
        $region98: #{tpu_custom_call.1} parent=87 // pred_check_branch
          %542 = sbr.rel (%p540) target = $region100
        $region99: #{tpu_custom_call.1} parent=87 // pred_region
          %544 = dma.done [#allocation6], 256
        $region100: #{tpu_custom_call.1} parent=87 // pred_fallthru
          _
        %p545 = scmp.lt.s32.totalorder %s33, 1
        %s546 = scalar_select %p545, %s33, 1
        %s547 = smul.addr %s546, 8
        %s548 = scalar_lea.vmem %s0, %s547
        %p549 = pneg %p54
        %p550 = pneg %p51
        %p551 = pneg %p75
        %p552 = pneg %p72
        %p553 = pneg %p96
        %p554 = pneg %p93
        %p555 = pneg %p117
        %p556 = pneg %p114
        %p557 = pneg %p138
        %p558 = pneg %p135
        %p559 = pneg %p159
        %p560 = pneg %p156
        %p561 = pneg %p180
        %p562 = pneg %p177
        %p563 = pneg %p201
        %p564 = pneg %p198
        %p565 = pneg %p222
        %p566 = pneg %p219
        %p567 = pneg %p243
        %p568 = pneg %p240
        %p569 = pneg %p264
        %p570 = pneg %p261
        %p571 = pneg %p285
        %p572 = pneg %p282
        %p573 = pneg %p306
        %p574 = pneg %p303
        %p575 = pneg %p327
        %p576 = pneg %p324
        %p577 = pneg %p348
        %p578 = pneg %p345
        %p579 = pneg %p369
        %p580 = pneg %p366
        %p581 = pneg %p390
        %p582 = pneg %p387
        %p583 = pneg %p416
        %p584 = pneg %p413
        %s585 = sand.u32 %s403, 1
        %s586 = scalar_lea.sflag [#allocation4], %s585
        %s587 = sand.u32 %s403, 1
        %s588 = smul.addr %s587, 8
        %s589 = scalar_lea.vmem [#allocation8], %s588
        %p590 = scmp.lt.s32.totalorder %s33, 1
        %s591 = scalar_select %p590, %s33, 1
        %s592 = smul.addr %s591, 8
        %s593 = scalar_lea.vmem %s0, %s592
        %v595 = vld [vmem:[%s593] sm:$0xff]
        %v596 = vpack.c.bf16 %v595, %v595
        %v597 = vld [vmem:[%s1] sm:$0xf]
        %v598 = vld [vmem:[%s1 + $0x4] sm:$0xf]
        %v599 = vld [vmem:[%s1 + $0x8] sm:$0xf]
        %v600 = vld [vmem:[%s1 + $0xc] sm:$0xf]
        %v601 = vld [vmem:[%s2] sm:$0x1]
        %v603 = vperm.slane %v601, 0
        %v609 = vunpack.c.l.b16 %v597
        %v610 = vunpack.c.l.b16 %v598
        %v611 = vunpack.c.l.b16 %v599
        %v612 = vunpack.c.l.b16 %v600
        %v613 = vpack.c.b16 %v610, %v609
        %v614 = vpack.c.b16 %v612, %v611
        %vm617 = vcmask 261120
        %v619 = vsel %vm617, %v596, 0
        %621 = vmatpush.bf16.msra.mxu0 0
        %622 = vmatpush.bf16.msra.mxu0 0
        %623 = vmatpush.bf16.msra.mxu0 0
        %624 = vmatpush.bf16.msra.mxu0 0
        %625 = vmatpush.bf16.msra.mxu0 0
        %626 = vmatpush.bf16.msra.mxu0 0
        %627 = vmatpush.bf16.msra.mxu0 %v614
        %628 = vmatpush.bf16.msra.mxu0 %v613
        %629 = vmatmul.bf16.gmra.mxu0 %v619
        %v630 = vpop.f32.mrf.mxu0
        %v631 = vadd.f32 %v603, %v630
        %v632 = vpop.f32.mrf.mxu0
        %633 = vdwg.mxu0
        %v634 = vmul.f32 %v631, 0.35355338
        %v635 = vpack.c.bf16 %v634, %v634
        %v636 = vld [vmem:[%s3] sm:$0xf]
        %v637 = vld [vmem:[%s3 + $0x4] sm:$0xf]
        %v638 = vld [vmem:[%s3 + $0x8] sm:$0xf]
        %v639 = vld [vmem:[%s3 + $0xc] sm:$0xf]
        %v640 = vld [vmem:[%s4] sm:$0x1]
        %v642 = vperm.slane %v640, 0
        %v648 = vunpack.c.l.b16 %v636
        %v649 = vunpack.c.l.b16 %v637
        %v650 = vunpack.c.l.b16 %v638
        %v651 = vunpack.c.l.b16 %v639
        %v652 = vpack.c.b16 %v649, %v648
        %v653 = vpack.c.b16 %v651, %v650
        %656 = vmatpush.bf16.msra.mxu0 0
        %657 = vmatpush.bf16.msra.mxu0 0
        %658 = vmatpush.bf16.msra.mxu0 0
        %659 = vmatpush.bf16.msra.mxu0 0
        %660 = vmatpush.bf16.msra.mxu0 0
        %661 = vmatpush.bf16.msra.mxu0 0
        %662 = vmatpush.bf16.msra.mxu0 %v653
        %663 = vmatpush.bf16.msra.mxu0 %v652
        %664 = vmatmul.bf16.gmra.mxu0 %v619
        %v665 = vpop.f32.mrf.mxu0
        %v666 = vadd.f32 %v642, %v665
        %v667 = vpop.f32.mrf.mxu0
        %668 = vdwg.mxu0
        %v669 = vpack.c.bf16 %v666, %v666
        %v670 = vld [vmem:[#allocation2] sm:$0xf]
        %v671 = vld [vmem:[#allocation2 + $0x4] sm:$0xf]
        %v672 = vld [vmem:[#allocation2 + $0x8] sm:$0xf]
        %v673 = vld [vmem:[#allocation2 + $0xc] sm:$0xf]
        %v674 = vld [vmem:[%s6] sm:$0x1]
        %v676 = vperm.slane %v674, 0
        %v682 = vunpack.c.l.b16 %v670
        %v683 = vunpack.c.l.b16 %v671
        %v684 = vunpack.c.l.b16 %v672
        %v685 = vunpack.c.l.b16 %v673
        %v686 = vpack.c.b16 %v683, %v682
        %v687 = vpack.c.b16 %v685, %v684
        %690 = vmatpush.bf16.msra.mxu0 0
        %691 = vmatpush.bf16.msra.mxu0 0
        %692 = vmatpush.bf16.msra.mxu0 0
        %693 = vmatpush.bf16.msra.mxu0 0
        %694 = vmatpush.bf16.msra.mxu0 0
        %695 = vmatpush.bf16.msra.mxu0 0
        %696 = vmatpush.bf16.msra.mxu0 %v687
        %697 = vmatpush.bf16.msra.mxu0 %v686
        %698 = vmatmul.bf16.gmra.mxu0 %v619
        %v699 = vpop.f32.mrf.mxu0
        %v700 = vadd.f32 %v676, %v699
        %v701 = vpop.f32.mrf.mxu0
        %702 = vdwg.mxu0
        %v703 = vpack.c.bf16 %v700, %v700
        %705 = vrot.lane.b32.xlu0 %v635, 120
        %v706 = vpop.permute.xlu0 %705
        %707 = vrot.lane.b32.xlu0 %v635, 112
        %v708 = vpop.permute.xlu0 %707
        %709 = vrot.lane.b32.xlu0 %v635, 104
        %v710 = vpop.permute.xlu0 %709
        %712 = vrot.lane.b32.xlu0 %v669, 120
        %v713 = vpop.permute.xlu0 %712
        %714 = vrot.lane.b32.xlu0 %v669, 112
        %v715 = vpop.permute.xlu0 %714
        %716 = vrot.lane.b32.xlu0 %v669, 104
        %v717 = vpop.permute.xlu0 %716
        %719 = vrot.lane.b32.xlu0 %v703, 120
        %v720 = vpop.permute.xlu0 %719
        %721 = vrot.lane.b32.xlu0 %v703, 112
        %v722 = vpop.permute.xlu0 %721
        %723 = vrot.lane.b32.xlu0 %v703, 104
        %v724 = vpop.permute.xlu0 %723
        %vm725 = vcmask 64512
        %v727 = vsel %vm725, %v635, 0
        %v730 = vsel %vm725, %v669, 0
        %732 = vmatpush.bf16.xpose.msra.mxu0 0
        %733 = vmatpush.bf16.xpose.msra.mxu0 0
        %734 = vmatpush.bf16.xpose.msra.mxu0 0
        %735 = vmatpush.bf16.xpose.msra.mxu0 0
        %736 = vmatpush.bf16.xpose.msra.mxu0 0
        %737 = vmatpush.bf16.xpose.msra.mxu0 0
        %738 = vmatpush.bf16.xpose.msra.mxu0 0
        %739 = vmatpush.bf16.xpose.msra.mxu0 %v730
        %740 = vmatmul.bf16.gmra.mxu0 %v727
        %v741 = vpop.f32.mrf.mxu0
        %v742 = vadd.f32 0.0, %v741
        %v743 = vpop.f32.mrf.mxu0
        %744 = vdwg.mxu0
        %v746 = vsel %vm725, %v706, 0
        %v749 = vsel %vm725, %v713, 0
        %751 = vmatpush.bf16.xpose.msra.mxu0 0
        %752 = vmatpush.bf16.xpose.msra.mxu0 0
        %753 = vmatpush.bf16.xpose.msra.mxu0 0
        %754 = vmatpush.bf16.xpose.msra.mxu0 0
        %755 = vmatpush.bf16.xpose.msra.mxu0 0
        %756 = vmatpush.bf16.xpose.msra.mxu0 0
        %757 = vmatpush.bf16.xpose.msra.mxu0 0
        %758 = vmatpush.bf16.xpose.msra.mxu0 %v749
        %759 = vmatmul.bf16.gmra.mxu0 %v746
        %v760 = vpop.f32.mrf.mxu0
        %v761 = vadd.f32 0.0, %v760
        %v762 = vpop.f32.mrf.mxu0
        %763 = vdwg.mxu0
        %v765 = vsel %vm725, %v708, 0
        %v768 = vsel %vm725, %v715, 0
        %770 = vmatpush.bf16.xpose.msra.mxu0 0
        %771 = vmatpush.bf16.xpose.msra.mxu0 0
        %772 = vmatpush.bf16.xpose.msra.mxu0 0
        %773 = vmatpush.bf16.xpose.msra.mxu0 0
        %774 = vmatpush.bf16.xpose.msra.mxu0 0
        %775 = vmatpush.bf16.xpose.msra.mxu0 0
        %776 = vmatpush.bf16.xpose.msra.mxu0 0
        %777 = vmatpush.bf16.xpose.msra.mxu0 %v768
        %778 = vmatmul.bf16.gmra.mxu0 %v765
        %v779 = vpop.f32.mrf.mxu0
        %v780 = vadd.f32 0.0, %v779
        %v781 = vpop.f32.mrf.mxu0
        %782 = vdwg.mxu0
        %v784 = vsel %vm725, %v710, 0
        %v787 = vsel %vm725, %v717, 0
        %789 = vmatpush.bf16.xpose.msra.mxu0 0
        %790 = vmatpush.bf16.xpose.msra.mxu0 0
        %791 = vmatpush.bf16.xpose.msra.mxu0 0
        %792 = vmatpush.bf16.xpose.msra.mxu0 0
        %793 = vmatpush.bf16.xpose.msra.mxu0 0
        %794 = vmatpush.bf16.xpose.msra.mxu0 0
        %795 = vmatpush.bf16.xpose.msra.mxu0 0
        %796 = vmatpush.bf16.xpose.msra.mxu0 %v787
        %797 = vmatmul.bf16.gmra.mxu0 %v784
        %v798 = vpop.f32.mrf.mxu0
        %v799 = vadd.f32 0.0, %v798
        %v800 = vpop.f32.mrf.mxu0
        %801 = vdwg.mxu0
        %v802 = vsel %vm725, %v742, -inf
        %803 = vmax.xlane.f32.xlu0 %v802
        %v804 = vpop.xlane.xlu0 %803
        %v805 = vsel %vm725, %v761, -inf
        %806 = vmax.xlane.f32.xlu0 %v805
        %v807 = vpop.xlane.xlu0 %806
        %v808 = vsel %vm725, %v780, -inf
        %809 = vmax.xlane.f32.xlu0 %v808
        %v810 = vpop.xlane.xlu0 %809
        %v811 = vsel %vm725, %v799, -inf
        %812 = vmax.xlane.f32.xlu0 %v811
        %v813 = vpop.xlane.xlu0 %812
        %v814 = vsub.f32 %v742, %v804
        %v815 = vsub.f32 %v761, %v807
        %v816 = vsub.f32 %v780, %v810
        %v817 = vsub.f32 %v799, %v813
        %v818 = vmul.f32 %v814, 1.442695
        %v819 = vpow.pop %v818
        %v820 = vmul.f32 %v815, 1.442695
        %v821 = vpow.pop %v820
        %v822 = vmul.f32 %v816, 1.442695
        %v823 = vpow.pop %v822
        %v824 = vmul.f32 %v817, 1.442695
        %v825 = vpow.pop %v824
        %v826 = vsel %vm725, %v819, 0.0
        %827 = vadd.xlane.f32.xlu0 %v826
        %v828 = vpop.xlane.xlu0 %827
        %v829 = vsel %vm725, %v821, 0.0
        %830 = vadd.xlane.f32.xlu0 %v829
        %v831 = vpop.xlane.xlu0 %830
        %v832 = vsel %vm725, %v823, 0.0
        %833 = vadd.xlane.f32.xlu0 %v832
        %v834 = vpop.xlane.xlu0 %833
        %v835 = vsel %vm725, %v825, 0.0
        %836 = vadd.xlane.f32.xlu0 %v835
        %v837 = vpop.xlane.xlu0 %836
        %v838 = vrcp.pop %v828
        %v839 = vrcp.pop %v831
        %v840 = vrcp.pop %v834
        %v841 = vrcp.pop %v837
        %v842 = vmul.f32 %v819, %v838
        %v843 = vmul.f32 %v821, %v839
        %v844 = vmul.f32 %v823, %v840
        %v845 = vmul.f32 %v825, %v841
        %v846 = vpack.c.bf16 %v842, %v842
        %v847 = vpack.c.bf16 %v843, %v843
        %v848 = vpack.c.bf16 %v844, %v844
        %v849 = vpack.c.bf16 %v845, %v845
        %v851 = vsel %vm725, %v846, 0
        %vm853 = vcmask 1043456
        %v855 = vsel %vm853, %v703, 0
        %857 = vmatpush.bf16.msra.mxu0 0
        %858 = vmatpush.bf16.msra.mxu0 0
        %859 = vmatpush.bf16.msra.mxu0 0
        %860 = vmatpush.bf16.msra.mxu0 0
        %861 = vmatpush.bf16.msra.mxu0 0
        %862 = vmatpush.bf16.msra.mxu0 0
        %863 = vmatpush.bf16.msra.mxu0 0
        %864 = vmatpush.bf16.msra.mxu0 %v855
        %865 = vmatmul.bf16.gmra.mxu0 %v851
        %v866 = vpop.f32.mrf.mxu0
        %v867 = vadd.f32 0.0, %v866
        %v868 = vpop.f32.mrf.mxu0
        %869 = vdwg.mxu0
        %v871 = vsel %vm725, %v847, 0
        %v874 = vsel %vm853, %v720, 0
        %876 = vmatpush.bf16.msra.mxu0 0
        %877 = vmatpush.bf16.msra.mxu0 0
        %878 = vmatpush.bf16.msra.mxu0 0
        %879 = vmatpush.bf16.msra.mxu0 0
        %880 = vmatpush.bf16.msra.mxu0 0
        %881 = vmatpush.bf16.msra.mxu0 0
        %882 = vmatpush.bf16.msra.mxu0 0
        %883 = vmatpush.bf16.msra.mxu0 %v874
        %884 = vmatmul.bf16.gmra.mxu0 %v871
        %v885 = vpop.f32.mrf.mxu0
        %v886 = vadd.f32 0.0, %v885
        %v887 = vpop.f32.mrf.mxu0
        %888 = vdwg.mxu0
        %v890 = vsel %vm725, %v848, 0
        %v893 = vsel %vm853, %v722, 0
        %895 = vmatpush.bf16.msra.mxu0 0
        %896 = vmatpush.bf16.msra.mxu0 0
        %897 = vmatpush.bf16.msra.mxu0 0
        %898 = vmatpush.bf16.msra.mxu0 0
        %899 = vmatpush.bf16.msra.mxu0 0
        %900 = vmatpush.bf16.msra.mxu0 0
        %901 = vmatpush.bf16.msra.mxu0 0
        %902 = vmatpush.bf16.msra.mxu0 %v893
        %903 = vmatmul.bf16.gmra.mxu0 %v890
        %v904 = vpop.f32.mrf.mxu0
        %v905 = vadd.f32 0.0, %v904
        %v906 = vpop.f32.mrf.mxu0
        %907 = vdwg.mxu0
        %v909 = vsel %vm725, %v849, 0
        %v912 = vsel %vm853, %v724, 0
        %914 = vmatpush.bf16.msra.mxu0 0
        %915 = vmatpush.bf16.msra.mxu0 0
        %916 = vmatpush.bf16.msra.mxu0 0
        %917 = vmatpush.bf16.msra.mxu0 0
        %918 = vmatpush.bf16.msra.mxu0 0
        %919 = vmatpush.bf16.msra.mxu0 0
        %920 = vmatpush.bf16.msra.mxu0 0
        %921 = vmatpush.bf16.msra.mxu0 %v912
        %922 = vmatmul.bf16.gmra.mxu0 %v909
        %v923 = vpop.f32.mrf.mxu0
        %v924 = vadd.f32 0.0, %v923
        %v925 = vpop.f32.mrf.mxu0
        %926 = vdwg.mxu0
        %v927 = vpack.c.bf16 %v867, %v867
        %v928 = vpack.c.bf16 %v886, %v886
        %v929 = vpack.c.bf16 %v905, %v905
        %v930 = vpack.c.bf16 %v924, %v924
        %v932 = vunpack.c.l.b16 %v928
        %v933 = vpack.c.b16 %v932, %v932
        %934 = vrot.lane.b32.xlu0 %v933, 8
        %v935 = vpop.permute.xlu0 %934
        %v937 = vunpack.c.l.b16 %v929
        %v938 = vpack.c.b16 %v937, %v937
        %939 = vrot.lane.b32.xlu0 %v938, 16
        %v940 = vpop.permute.xlu0 %939
        %v942 = vunpack.c.l.b16 %v930
        %v943 = vpack.c.b16 %v942, %v942
        %944 = vrot.lane.b32.xlu0 %v943, 24
        %v945 = vpop.permute.xlu0 %944
        %v948 = vsel %vm725, %v927, %v935
        %vm949 = vcmask 130048
        %v951 = vsel %vm949, %v948, %v940
        %vm952 = vcmask 195584
        %v954 = vsel %vm952, %v951, %v945
        %v955 = vld [vmem:[#allocation5] sm:$0xf]
        %v956 = vld [vmem:[#allocation5 + $0x4] sm:$0xf]
        %v957 = vld [vmem:[#allocation5 + $0x8] sm:$0xf]
        %v958 = vld [vmem:[#allocation5 + $0xc] sm:$0xf]
        %v959 = vld [vmem:[%s8] sm:$0x1]
        %v961 = vperm.slane %v959, 0
        %v967 = vunpack.c.l.b16 %v955
        %v968 = vunpack.c.l.b16 %v956
        %v969 = vunpack.c.l.b16 %v957
        %v970 = vunpack.c.l.b16 %v958
        %v971 = vpack.c.b16 %v968, %v967
        %v972 = vpack.c.b16 %v970, %v969
        %v975 = vsel %vm617, %v954, 0
        %977 = vmatpush.bf16.msra.mxu0 0
        %978 = vmatpush.bf16.msra.mxu0 0
        %979 = vmatpush.bf16.msra.mxu0 0
        %980 = vmatpush.bf16.msra.mxu0 0
        %981 = vmatpush.bf16.msra.mxu0 0
        %982 = vmatpush.bf16.msra.mxu0 0
        %983 = vmatpush.bf16.msra.mxu0 %v972
        %984 = vmatpush.bf16.msra.mxu0 %v971
        %985 = vmatmul.bf16.gmra.mxu0 %v975
        %v986 = vpop.f32.mrf.mxu0
        %v987 = vadd.f32 %v961, %v986
        %v988 = vpop.f32.mrf.mxu0
        %989 = vdwg.mxu0
        %v990 = vadd.f32 %v987, %v595
        %v991 = vld [vmem:[%s9] sm:$0x1]
        %v992 = vld [vmem:[%s10] sm:$0x1]
        %v993 = vsel %vm617, %v990, 0.0
        %994 = vadd.xlane.f32.xlu0 %v993
        %v995 = vpop.xlane.xlu0 %994
        %v996 = vrcp.pop 32.0
        %v997 = vmul.f32 32.0, %v996
        %v998 = vsub.f32 1.0, %v997
        %v999 = vmul.f32 %v996, %v998
        %v1000 = vadd.f32 %v996, %v999
        %vm1001 = vweird.f32 %v996
        %v1002 = vsel %vm1001, %v996, %v1000
        %v1003 = vmul.f32 %v995, %v1002
        %v1004 = vsub.f32 %v990, %v1003
        %v1005 = vmul.f32 %v1004, %v1004
        %v1006 = vsel %vm617, %v1005, 0.0
        %1007 = vadd.xlane.f32.xlu0 %v1006
        %v1008 = vpop.xlane.xlu0 %1007
        %v1009 = vmul.f32 %v1008, %v1002
        %v1010 = vadd.f32 %v1009, 1e-05
        %v1011 = vrsqrt.pop %v1010
        %v1012 = vmul.f32 %v1011, %v1010
        %v1013 = vmul.f32 %v1012, %v1011
        %v1014 = vmul.f32 0.5, %v1013
        %v1015 = vsub.f32 1.5, %v1014
        %v1016 = vmul.f32 %v1011, %v1015
        %vm1017 = vweird.f32 %v1010
        %vm1018 = vweird.f32 %v1011
        %vm1019 = vmor %vm1017, %vm1018
        %v1020 = vsel %vm1019, %v1011, %v1016
        %v1021 = vmul.f32 %v1004, %v1020
        %v1023 = vperm.slane %v991, 0
        %v1025 = vmul.f32 %v1021, %v1023
        %v1027 = vperm.slane %v992, 0
        %v1029 = vadd.f32 %v1025, %v1027
        %v1030 = vpack.c.bf16 %v1029, %v1029
        %v1031 = vld [vmem:[#allocation7] sm:$0xf]
        %v1032 = vld [vmem:[#allocation7 + $0x4] sm:$0xf]
        %v1033 = vld [vmem:[#allocation7 + $0x8] sm:$0xf]
        %v1034 = vld [vmem:[#allocation7 + $0xc] sm:$0xf]
        %v1035 = vld [vmem:[%s12] sm:$0x1]
        %v1037 = vperm.slane %v1035, 0
        %v1043 = vunpack.c.l.b16 %v1031
        %v1044 = vunpack.c.l.b16 %v1032
        %v1045 = vunpack.c.l.b16 %v1033
        %v1046 = vunpack.c.l.b16 %v1034
        %v1047 = vpack.c.b16 %v1044, %v1043
        %v1048 = vpack.c.b16 %v1046, %v1045
        %v1052 = vsel %vm617, %v1030, 0
        %1054 = vmatpush.bf16.msra.mxu0 0
        %1055 = vmatpush.bf16.msra.mxu0 0
        %1056 = vmatpush.bf16.msra.mxu0 0
        %1057 = vmatpush.bf16.msra.mxu0 0
        %1058 = vmatpush.bf16.msra.mxu0 0
        %1059 = vmatpush.bf16.msra.mxu0 0
        %1060 = vmatpush.bf16.msra.mxu0 %v1048
        %1061 = vmatpush.bf16.msra.mxu0 %v1047
        %1062 = vmatmul.bf16.gmra.mxu0 %v1052
        %v1063 = vpop.f32.mrf.mxu0
        %v1064 = vadd.f32 %v1037, %v1063
        %v1065 = vpop.f32.mrf.mxu0
        %1066 = vdwg.mxu0
        %v1067 = vmul.f32 %v1064, 0.5
        %v1068 = vmul.f32 %v1064, 0.044715
        %v1069 = vmul.f32 %v1068, %v1064
        %v1070 = vmul.f32 %v1069, %v1064
        %v1071 = vadd.f32 %v1064, %v1070
        %v1072 = vmul.f32 %v1071, 0.7978846
        %v1073 = vtanh.pop %v1072
        %v1074 = vadd.f32 %v1073, 1.0
        %v1075 = vmul.f32 %v1067, %v1074
        %v1076 = vpack.c.bf16 %v1075, %v1075
        %v1077 = vld [vmem:[%s13] sm:$0xf]
        %v1078 = vld [vmem:[%s13 + $0x4] sm:$0xf]
        %v1079 = vld [vmem:[%s13 + $0x8] sm:$0xf]
        %v1080 = vld [vmem:[%s13 + $0xc] sm:$0xf]
        %v1081 = vld [vmem:[%s13 + $0x10] sm:$0xf]
        %v1082 = vld [vmem:[%s13 + $0x14] sm:$0xf]
        %v1083 = vld [vmem:[%s13 + $0x18] sm:$0xf]
        %v1084 = vld [vmem:[%s13 + $0x1c] sm:$0xf]
        %v1085 = vld [vmem:[%s14] sm:$0x1]
        %v1087 = vperm.slane %v1085, 0
        %v1097 = vunpack.c.l.b16 %v1077
        %v1098 = vunpack.c.l.b16 %v1078
        %v1099 = vunpack.c.l.b16 %v1079
        %v1100 = vunpack.c.l.b16 %v1080
        %v1101 = vunpack.c.l.b16 %v1081
        %v1102 = vunpack.c.l.b16 %v1082
        %v1103 = vunpack.c.l.b16 %v1083
        %v1104 = vunpack.c.l.b16 %v1084
        %v1105 = vpack.c.b16 %v1098, %v1097
        %v1106 = vpack.c.b16 %v1100, %v1099
        %v1107 = vpack.c.b16 %v1102, %v1101
        %v1108 = vpack.c.b16 %v1104, %v1103
        %vm1113 = vcmask 523264
        %v1115 = vsel %vm1113, %v1076, 0
        %1117 = vmatpush.bf16.msra.mxu0 0
        %1118 = vmatpush.bf16.msra.mxu0 0
        %1119 = vmatpush.bf16.msra.mxu0 0
        %1120 = vmatpush.bf16.msra.mxu0 0
        %1121 = vmatpush.bf16.msra.mxu0 %v1108
        %1122 = vmatpush.bf16.msra.mxu0 %v1107
        %1123 = vmatpush.bf16.msra.mxu0 %v1106
        %1124 = vmatpush.bf16.msra.mxu0 %v1105
        %1125 = vmatmul.bf16.gmra.mxu0 %v1115
        %v1126 = vpop.f32.mrf.mxu0
        %v1127 = vadd.f32 %v1087, %v1126
        %v1128 = vpop.f32.mrf.mxu0
        %1129 = vdwg.mxu0
        %v1130 = vadd.f32 %v1127, %v1029
        %v1131 = vld [vmem:[%s15] sm:$0x1]
        %v1132 = vld [vmem:[%s16] sm:$0x1]
        %v1133 = vsel %vm617, %v1130, 0.0
        %1134 = vadd.xlane.f32.xlu0 %v1133
        %v1135 = vpop.xlane.xlu0 %1134
        %v1136 = vmul.f32 %v1135, %v1002
        %v1137 = vsub.f32 %v1130, %v1136
        %v1138 = vmul.f32 %v1137, %v1137
        %v1139 = vsel %vm617, %v1138, 0.0
        %1140 = vadd.xlane.f32.xlu0 %v1139
        %v1141 = vpop.xlane.xlu0 %1140
        %v1142 = vmul.f32 %v1141, %v1002
        %v1143 = vadd.f32 %v1142, 1e-05
        %v1144 = vrsqrt.pop %v1143
        %v1145 = vmul.f32 %v1144, %v1143
        %v1146 = vmul.f32 %v1145, %v1144
        %v1147 = vmul.f32 0.5, %v1146
        %v1148 = vsub.f32 1.5, %v1147
        %v1149 = vmul.f32 %v1144, %v1148
        %vm1150 = vweird.f32 %v1143
        %vm1151 = vweird.f32 %v1144
        %vm1152 = vmor %vm1150, %vm1151
        %v1153 = vsel %vm1152, %v1144, %v1149
        %v1154 = vmul.f32 %v1137, %v1153
        %v1156 = vperm.slane %v1131, 0
        %v1158 = vmul.f32 %v1154, %v1156
        %v1160 = vperm.slane %v1132, 0
        %v1162 = vadd.f32 %v1158, %v1160
        %1163 = vst.msk [vmem:[%s589] sm:$0xff] %vm617, %v1162
        %s1164 = sand.u32 %s403, 1
        %s1165 = scalar_lea.sflag [#allocation4], %s1164
        %s1166 = sand.u32 %s403, 1
        %s1167 = smul.addr %s1166, 8
        %s1168 = scalar_lea.vmem [#allocation8], %s1167
        // Predicated region
        $region101: #{tpu_custom_call.1} parent=87 // pred_check
          %p1169 = pneg %p413
        $region102: #{tpu_custom_call.1} parent=87 // pred_check_branch
          %1171 = sbr.rel (%p1169) target = $region104
        $region103: #{tpu_custom_call.1} parent=87 // pred_region
          %1173 = vsyncadd %s1165, 0
          %s1174 = smul.addr %s33, 8
          %s1175 = scalar_lea.hbm %s17, %s1174
          %s1177 = sshll.u32 %s1168, 4
          %s1178 = int_to_ptr.vmem [resolvable:$true] %s1177
          %s1179 = sshll.u32 %s1175, 4
          %s1180 = int_to_ptr.hbm [resolvable:$true] %s1179
          %1182 = dma.vmem_to_hbm [thread:$0]  %s1178, 128, %s1180, %s1165
        $region104: #{tpu_custom_call.1} parent=87 // pred_fallthru
          _
      $region88: #{tpu_custom_call.1} parent=5 // pred_fallthru
        _
      %p1183 = scmp.le.s32.totalorder 2, %s28
      // Predicated region
      $region105: #{tpu_custom_call.1} parent=5 // pred_check
        %p1184 = pneg %p1183
      $region106: #{tpu_custom_call.1} parent=5 // pred_check_branch
        %1186 = sbr.rel (%p1184) target = $region108
      $region107: #{tpu_custom_call.1} parent=5 // pred_region
        %s1187 = ssub.s32 %s28, 2
        // Predicated region
        $region109: #{tpu_custom_call.1} parent=107 // pred_check
          %p1188 = pneg %p419
        $region110: #{tpu_custom_call.1} parent=107 // pred_check_branch
          %1190 = sbr.rel (%p1188) target = $region112
        $region111: #{tpu_custom_call.1} parent=107 // pred_region
          %s1191 = sand.u32 %s404, 1
          %s1192 = scalar_lea.sflag [#allocation4], %s1191
          %s1193 = sand.u32 %s404, 1
          %s1194 = smul.addr %s1193, 8
          %s1195 = scalar_lea.vmem [#allocation8], %s1194
          %1197 = dma.done %s1192, 128
        $region112: #{tpu_custom_call.1} parent=107 // pred_fallthru
          _
      $region108: #{tpu_custom_call.1} parent=5 // pred_fallthru
        _
    $region6: #{tpu_custom_call.1} parent=1 // loop_footer
      %s32 = sadd.s32 1, %s28
    $region7: #{tpu_custom_call.1} parent=1 // loop_footer_branch
      %27 = sbr.rel target = $region3
    $region8: #{tpu_custom_call.1} parent=1 // loop_exit
      _
    %1198 = vsyncpa [#allocation3], 1
    %s1199 = scalar_lea.sflag [#allocation3], 1
    %1200 = vsyncpa %s1199, 1
    %1201 = vsyncpa [#allocation6], 1
    %1202 = vsyncpa [#allocation4], 1
    %s1203 = scalar_lea.sflag [#allocation4], 1
    %1204 = vsyncpa %s1203, 1

// kernel: tpu_custom_call.1
$region0: #{tpu_custom_call.1}
  #allocation0 [shape = 'u32[]', space=smem, size = 0x4, offset = 0x4, fixed_abs, tag = 'smem constant byte address 0x4 - core index']
  #allocation1 [shape = 'u32[72,128]{1,0:T(1,128)}', space=vmem, size = 0x9000, scoped, tag = 'internal scratch']
  %s0 = inlined_call_operand.vmem [shape: f32[2,8,32], index: 0, kind: input, shape index: {}]
  %s1 = inlined_call_operand.vmem [shape: bf16[32,32], index: 1, kind: input, shape index: {}]
  %s2 = inlined_call_operand.vmem [shape: f32[1,32], index: 2, kind: input, shape index: {}]
  %s3 = inlined_call_operand.vmem [shape: bf16[32,32], index: 3, kind: input, shape index: {}]
  %s4 = inlined_call_operand.vmem [shape: f32[1,32], index: 4, kind: input, shape index: {}]
  %s5 = inlined_call_operand.hbm [shape: bf16[32,32], index: 5, kind: input, shape index: {}]
  %s6 = inlined_call_operand.vmem [shape: f32[1,32], index: 6, kind: input, shape index: {}]
  %s7 = inlined_call_operand.hbm [shape: bf16[32,32], index: 7, kind: input, shape index: {}]
  %s8 = inlined_call_operand.vmem [shape: f32[1,32], index: 8, kind: input, shape index: {}]
  %s9 = inlined_call_operand.vmem [shape: f32[1,32], index: 9, kind: input, shape index: {}]
  %s10 = inlined_call_operand.vmem [shape: f32[1,32], index: 10, kind: input, shape index: {}]
  %s11 = inlined_call_operand.hbm [shape: bf16[32,64], index: 11, kind: input, shape index: {}]
  %s12 = inlined_call_operand.vmem [shape: f32[1,64], index: 12, kind: input, shape index: {}]
  %s13 = inlined_call_operand.vmem [shape: bf16[64,32], index: 13, kind: input, shape index: {}]
  %s14 = inlined_call_operand.vmem [shape: f32[1,32], index: 14, kind: input, shape index: {}]
  %s15 = inlined_call_operand.vmem [shape: f32[1,32], index: 15, kind: input, shape index: {}]
  %s16 = inlined_call_operand.vmem [shape: f32[1,32], index: 16, kind: input, shape index: {}]
  %s17 = inlined_call_operand.hbm [shape: f32[2,8,32], index: 17, kind: output, shape index: {}]
  %s18 = sld [smem:[#allocation0]]
  $region113: #{tpu_custom_call.1} parent=0
    _
  %s20 = ssub.s32 1, %s18
  %s21 = scalar_select 0, %s20, %s18
  $region1: #{tpu_custom_call.1} parent=0
    #allocation2 [shape = 'u8[8192]{0}', space=vmem, size = 0x2000, scoped, tag = 'input window, operand 5, single buffered']
    #allocation3 [shape = 's32[2]{0}', space=sflag, size = 0x8, scoped, tag = 'scoped memory for tpu_custom_call.1']
    #allocation4 [shape = 's32[2]{0}', space=sflag, size = 0x8, scoped, tag = 'scoped memory for tpu_custom_call.1']
    #allocation5 [shape = 'u8[8192]{0}', space=vmem, size = 0x2000, scoped, tag = 'input window, operand 7, single buffered']
    #allocation6 [shape = 's32[1]{0}', space=sflag, size = 0x4, scoped, tag = 'scoped memory for tpu_custom_call.1']
    #allocation7 [shape = 'u8[8192]{0}', space=vmem, size = 0x2000, scoped, tag = 'input window, operand 11, single buffered']
    #allocation8 [shape = 'u8[8192]{0}', space=vmem, size = 0x2000, scoped, tag = 'output window, operand 0']
    %22 = vsyncpa [#allocation3], 0
    %23 = vsyncpa [#allocation6], 0
    %24 = vsyncpa [#allocation4], 0
    %s25 = scalar_lea.sflag [#allocation4], 1
    %26 = vsyncpa %s25, 0
    loop: start=0, step=1, limit=4
    $region2: #{tpu_custom_call.1} parent=1 // loop_pre_header
      _
    $region3: #{tpu_custom_call.1} parent=1 // loop_header
      %s28 = sphi 0, %s32
      %p29 = scmp.ge.s32.totalorder %s28, 4
      %s38 = sphi 0, %s40
      %s41 = sphi 0, %s38
      %s42 = sphi 0, %s41
      %s58 = sphi 0, %s42
      %s62 = sphi 0, %s62
      %s64 = sphi 0, %s62
      %s65 = sphi 0, %s64
      %s79 = sphi 0, %s65
      %s83 = sphi 0, %s83
      %s85 = sphi 0, %s83
      %s86 = sphi 0, %s85
      %s100 = sphi 0, %s86
      %s104 = sphi 0, %s104
      %s106 = sphi 0, %s104
      %s107 = sphi 0, %s106
      %s121 = sphi 0, %s107
      %s125 = sphi 0, %s125
      %s127 = sphi 0, %s125
      %s128 = sphi 0, %s127
      %s142 = sphi 0, %s128
      %s146 = sphi 0, %s146
      %s148 = sphi 0, %s146
      %s149 = sphi 0, %s148
      %s163 = sphi 0, %s149
      %s167 = sphi 0, %s167
      %s169 = sphi 0, %s167
      %s170 = sphi 0, %s169
      %s184 = sphi 0, %s170
      %s188 = sphi 0, %s188
      %s190 = sphi 0, %s188
      %s191 = sphi 0, %s190
      %s205 = sphi 0, %s191
      %s209 = sphi 0, %s209
      %s211 = sphi 0, %s209
      %s212 = sphi 0, %s211
      %s226 = sphi 0, %s212
      %s230 = sphi 0, %s230
      %s232 = sphi 0, %s230
      %s233 = sphi 0, %s232
      %s247 = sphi 0, %s233
      %s251 = sphi 0, %s251
      %s253 = sphi 0, %s251
      %s254 = sphi 0, %s253
      %s268 = sphi 0, %s254
      %s272 = sphi 0, %s272
      %s274 = sphi 0, %s272
      %s275 = sphi 0, %s274
      %s289 = sphi 0, %s275
      %s293 = sphi 0, %s293
      %s295 = sphi 0, %s293
      %s296 = sphi 0, %s295
      %s310 = sphi 0, %s296
      %s314 = sphi 0, %s314
      %s316 = sphi 0, %s314
      %s317 = sphi 0, %s316
      %s331 = sphi 0, %s317
      %s335 = sphi 0, %s335
      %s337 = sphi 0, %s335
      %s338 = sphi 0, %s337
      %s352 = sphi 0, %s338
      %s356 = sphi 0, %s356
      %s358 = sphi 0, %s356
      %s359 = sphi 0, %s358
      %s373 = sphi 0, %s359
      %s377 = sphi 0, %s377
      %s379 = sphi 0, %s377
      %s380 = sphi 0, %s379
      %s394 = sphi 0, %s380
      %s400 = sphi 0, %s402
      %s403 = sphi 0, %s400
      %s404 = sphi 0, %s403
      %s420 = sphi 0, %s404
    $region4: #{tpu_custom_call.1} parent=1 // loop_header_branch
      %31 = sbr.rel (%p29) target = $region8
    $region5: #{tpu_custom_call.1} parent=1 // loop_body
      %s33 = ssub.s32 %s28, 1
      %s34 = ssub.s32 %s28, 2
      %s35 = sadd.s32 %s28, 1
      %s36 = ssub.s32 %s28, %s35
      %p37 = scmp.eq.s32.totalorder %s36, 0
      %s39 = sadd.s32 %s38, 1
      %s40 = scalar_select %p37, %s38, %s39
      %p43 = pneg %p37
      %p44 = scmp.eq.s32.totalorder %s28, 1
      %p45 = por %p43, %p44
      %p46 = scmp.ne.s32.totalorder %s38, %s41
      %p47 = scmp.eq.s32.totalorder %s28, 0
      %p48 = por %p46, %p47
      %p49 = scmp.ne.s32.totalorder %s38, %s41
      %p50 = scmp.eq.s32.totalorder %s33, 1
      %p51 = por %p49, %p50
      %p52 = scmp.ne.s32.totalorder %s41, %s42
      %p53 = scmp.eq.s32.totalorder %s33, 0
      %p54 = por %p52, %p53
      %p55 = scmp.ne.s32.totalorder %s41, %s42
      %p56 = scmp.eq.s32.totalorder %s34, 1
      %p57 = por %p55, %p56
      %p59 = scmp.ne.s32.totalorder %s42, %s58
      %p60 = scmp.eq.s32.totalorder %s34, 0
      %p61 = por %p59, %p60
      %s63 = sadd.s32 %s62, 1
      %p66 = scmp.eq.s32.totalorder %s28, 1
      %p67 = scmp.ne.s32.totalorder %s62, %s64
      %p68 = scmp.eq.s32.totalorder %s28, 0
      %p69 = por %p67, %p68
      %p70 = scmp.ne.s32.totalorder %s62, %s64
      %p71 = scmp.eq.s32.totalorder %s33, 1
      %p72 = por %p70, %p71
      %p73 = scmp.ne.s32.totalorder %s64, %s65
      %p74 = scmp.eq.s32.totalorder %s33, 0
      %p75 = por %p73, %p74
      %p76 = scmp.ne.s32.totalorder %s64, %s65
      %p77 = scmp.eq.s32.totalorder %s34, 1
      %p78 = por %p76, %p77
      %p80 = scmp.ne.s32.totalorder %s65, %s79
      %p81 = scmp.eq.s32.totalorder %s34, 0
      %p82 = por %p80, %p81
      %s84 = sadd.s32 %s83, 1
      %p87 = scmp.eq.s32.totalorder %s28, 1
      %p88 = scmp.ne.s32.totalorder %s83, %s85
      %p89 = scmp.eq.s32.totalorder %s28, 0
      %p90 = por %p88, %p89
      %p91 = scmp.ne.s32.totalorder %s83, %s85
      %p92 = scmp.eq.s32.totalorder %s33, 1
      %p93 = por %p91, %p92
      %p94 = scmp.ne.s32.totalorder %s85, %s86
      %p95 = scmp.eq.s32.totalorder %s33, 0
      %p96 = por %p94, %p95
      %p97 = scmp.ne.s32.totalorder %s85, %s86
      %p98 = scmp.eq.s32.totalorder %s34, 1
      %p99 = por %p97, %p98
      %p101 = scmp.ne.s32.totalorder %s86, %s100
      %p102 = scmp.eq.s32.totalorder %s34, 0
      %p103 = por %p101, %p102
      %s105 = sadd.s32 %s104, 1
      %p108 = scmp.eq.s32.totalorder %s28, 1
      %p109 = scmp.ne.s32.totalorder %s104, %s106
      %p110 = scmp.eq.s32.totalorder %s28, 0
      %p111 = por %p109, %p110
      %p112 = scmp.ne.s32.totalorder %s104, %s106
      %p113 = scmp.eq.s32.totalorder %s33, 1
      %p114 = por %p112, %p113
      %p115 = scmp.ne.s32.totalorder %s106, %s107
      %p116 = scmp.eq.s32.totalorder %s33, 0
      %p117 = por %p115, %p116
      %p118 = scmp.ne.s32.totalorder %s106, %s107
      %p119 = scmp.eq.s32.totalorder %s34, 1
      %p120 = por %p118, %p119
      %p122 = scmp.ne.s32.totalorder %s107, %s121
      %p123 = scmp.eq.s32.totalorder %s34, 0
      %p124 = por %p122, %p123
      %s126 = sadd.s32 %s125, 1
      %p129 = scmp.eq.s32.totalorder %s28, 1
      %p130 = scmp.ne.s32.totalorder %s125, %s127
      %p131 = scmp.eq.s32.totalorder %s28, 0
      %p132 = por %p130, %p131
      %p133 = scmp.ne.s32.totalorder %s125, %s127
      %p134 = scmp.eq.s32.totalorder %s33, 1
      %p135 = por %p133, %p134
      %p136 = scmp.ne.s32.totalorder %s127, %s128
      %p137 = scmp.eq.s32.totalorder %s33, 0
      %p138 = por %p136, %p137
      %p139 = scmp.ne.s32.totalorder %s127, %s128
      %p140 = scmp.eq.s32.totalorder %s34, 1
      %p141 = por %p139, %p140
      %p143 = scmp.ne.s32.totalorder %s128, %s142
      %p144 = scmp.eq.s32.totalorder %s34, 0
      %p145 = por %p143, %p144
      %s147 = sadd.s32 %s146, 1
      %p150 = scmp.eq.s32.totalorder %s28, 1
      %p151 = scmp.ne.s32.totalorder %s146, %s148
      %p152 = scmp.eq.s32.totalorder %s28, 0
      %p153 = por %p151, %p152
      %p154 = scmp.ne.s32.totalorder %s146, %s148
      %p155 = scmp.eq.s32.totalorder %s33, 1
      %p156 = por %p154, %p155
      %p157 = scmp.ne.s32.totalorder %s148, %s149
      %p158 = scmp.eq.s32.totalorder %s33, 0
      %p159 = por %p157, %p158
      %p160 = scmp.ne.s32.totalorder %s148, %s149
      %p161 = scmp.eq.s32.totalorder %s34, 1
      %p162 = por %p160, %p161
      %p164 = scmp.ne.s32.totalorder %s149, %s163
      %p165 = scmp.eq.s32.totalorder %s34, 0
      %p166 = por %p164, %p165
      %s168 = sadd.s32 %s167, 1
      %p171 = scmp.eq.s32.totalorder %s28, 1
      %p172 = scmp.ne.s32.totalorder %s167, %s169
      %p173 = scmp.eq.s32.totalorder %s28, 0
      %p174 = por %p172, %p173
      %p175 = scmp.ne.s32.totalorder %s167, %s169
      %p176 = scmp.eq.s32.totalorder %s33, 1
      %p177 = por %p175, %p176
      %p178 = scmp.ne.s32.totalorder %s169, %s170
      %p179 = scmp.eq.s32.totalorder %s33, 0
      %p180 = por %p178, %p179
      %p181 = scmp.ne.s32.totalorder %s169, %s170
      %p182 = scmp.eq.s32.totalorder %s34, 1
      %p183 = por %p181, %p182
      %p185 = scmp.ne.s32.totalorder %s170, %s184
      %p186 = scmp.eq.s32.totalorder %s34, 0
      %p187 = por %p185, %p186
      %s189 = sadd.s32 %s188, 1
      %p192 = scmp.eq.s32.totalorder %s28, 1
      %p193 = scmp.ne.s32.totalorder %s188, %s190
      %p194 = scmp.eq.s32.totalorder %s28, 0
      %p195 = por %p193, %p194
      %p196 = scmp.ne.s32.totalorder %s188, %s190
      %p197 = scmp.eq.s32.totalorder %s33, 1
      %p198 = por %p196, %p197
      %p199 = scmp.ne.s32.totalorder %s190, %s191
      %p200 = scmp.eq.s32.totalorder %s33, 0
      %p201 = por %p199, %p200
      %p202 = scmp.ne.s32.totalorder %s190, %s191
      %p203 = scmp.eq.s32.totalorder %s34, 1
      %p204 = por %p202, %p203
      %p206 = scmp.ne.s32.totalorder %s191, %s205
      %p207 = scmp.eq.s32.totalorder %s34, 0
      %p208 = por %p206, %p207
      %s210 = sadd.s32 %s209, 1
      %p213 = scmp.eq.s32.totalorder %s28, 1
      %p214 = scmp.ne.s32.totalorder %s209, %s211
      %p215 = scmp.eq.s32.totalorder %s28, 0
      %p216 = por %p214, %p215
      %p217 = scmp.ne.s32.totalorder %s209, %s211
      %p218 = scmp.eq.s32.totalorder %s33, 1
      %p219 = por %p217, %p218
      %p220 = scmp.ne.s32.totalorder %s211, %s212
      %p221 = scmp.eq.s32.totalorder %s33, 0
      %p222 = por %p220, %p221
      %p223 = scmp.ne.s32.totalorder %s211, %s212
      %p224 = scmp.eq.s32.totalorder %s34, 1
      %p225 = por %p223, %p224
      %p227 = scmp.ne.s32.totalorder %s212, %s226
      %p228 = scmp.eq.s32.totalorder %s34, 0
      %p229 = por %p227, %p228
      %s231 = sadd.s32 %s230, 1
      %p234 = scmp.eq.s32.totalorder %s28, 1
      %p235 = scmp.ne.s32.totalorder %s230, %s232
      %p236 = scmp.eq.s32.totalorder %s28, 0
      %p237 = por %p235, %p236
      %p238 = scmp.ne.s32.totalorder %s230, %s232
      %p239 = scmp.eq.s32.totalorder %s33, 1
      %p240 = por %p238, %p239
      %p241 = scmp.ne.s32.totalorder %s232, %s233
      %p242 = scmp.eq.s32.totalorder %s33, 0
      %p243 = por %p241, %p242
      %p244 = scmp.ne.s32.totalorder %s232, %s233
      %p245 = scmp.eq.s32.totalorder %s34, 1
      %p246 = por %p244, %p245
      %p248 = scmp.ne.s32.totalorder %s233, %s247
      %p249 = scmp.eq.s32.totalorder %s34, 0
      %p250 = por %p248, %p249
      %s252 = sadd.s32 %s251, 1
      %p255 = scmp.eq.s32.totalorder %s28, 1
      %p256 = scmp.ne.s32.totalorder %s251, %s253
      %p257 = scmp.eq.s32.totalorder %s28, 0
      %p258 = por %p256, %p257
      %p259 = scmp.ne.s32.totalorder %s251, %s253
      %p260 = scmp.eq.s32.totalorder %s33, 1
      %p261 = por %p259, %p260
      %p262 = scmp.ne.s32.totalorder %s253, %s254
      %p263 = scmp.eq.s32.totalorder %s33, 0
      %p264 = por %p262, %p263
      %p265 = scmp.ne.s32.totalorder %s253, %s254
      %p266 = scmp.eq.s32.totalorder %s34, 1
      %p267 = por %p265, %p266
      %p269 = scmp.ne.s32.totalorder %s254, %s268
      %p270 = scmp.eq.s32.totalorder %s34, 0
      %p271 = por %p269, %p270
      %s273 = sadd.s32 %s272, 1
      %p276 = scmp.eq.s32.totalorder %s28, 1
      %p277 = scmp.ne.s32.totalorder %s272, %s274
      %p278 = scmp.eq.s32.totalorder %s28, 0
      %p279 = por %p277, %p278
      %p280 = scmp.ne.s32.totalorder %s272, %s274
      %p281 = scmp.eq.s32.totalorder %s33, 1
      %p282 = por %p280, %p281
      %p283 = scmp.ne.s32.totalorder %s274, %s275
      %p284 = scmp.eq.s32.totalorder %s33, 0
      %p285 = por %p283, %p284
      %p286 = scmp.ne.s32.totalorder %s274, %s275
      %p287 = scmp.eq.s32.totalorder %s34, 1
      %p288 = por %p286, %p287
      %p290 = scmp.ne.s32.totalorder %s275, %s289
      %p291 = scmp.eq.s32.totalorder %s34, 0
      %p292 = por %p290, %p291
      %s294 = sadd.s32 %s293, 1
      %p297 = scmp.eq.s32.totalorder %s28, 1
      %p298 = scmp.ne.s32.totalorder %s293, %s295
      %p299 = scmp.eq.s32.totalorder %s28, 0
      %p300 = por %p298, %p299
      %p301 = scmp.ne.s32.totalorder %s293, %s295
      %p302 = scmp.eq.s32.totalorder %s33, 1
      %p303 = por %p301, %p302
      %p304 = scmp.ne.s32.totalorder %s295, %s296
      %p305 = scmp.eq.s32.totalorder %s33, 0
      %p306 = por %p304, %p305
      %p307 = scmp.ne.s32.totalorder %s295, %s296
      %p308 = scmp.eq.s32.totalorder %s34, 1
      %p309 = por %p307, %p308
      %p311 = scmp.ne.s32.totalorder %s296, %s310
      %p312 = scmp.eq.s32.totalorder %s34, 0
      %p313 = por %p311, %p312
      %s315 = sadd.s32 %s314, 1
      %p318 = scmp.eq.s32.totalorder %s28, 1
      %p319 = scmp.ne.s32.totalorder %s314, %s316
      %p320 = scmp.eq.s32.totalorder %s28, 0
      %p321 = por %p319, %p320
      %p322 = scmp.ne.s32.totalorder %s314, %s316
      %p323 = scmp.eq.s32.totalorder %s33, 1
      %p324 = por %p322, %p323
      %p325 = scmp.ne.s32.totalorder %s316, %s317
      %p326 = scmp.eq.s32.totalorder %s33, 0
      %p327 = por %p325, %p326
      %p328 = scmp.ne.s32.totalorder %s316, %s317
      %p329 = scmp.eq.s32.totalorder %s34, 1
      %p330 = por %p328, %p329
      %p332 = scmp.ne.s32.totalorder %s317, %s331
      %p333 = scmp.eq.s32.totalorder %s34, 0
      %p334 = por %p332, %p333
      %s336 = sadd.s32 %s335, 1
      %p339 = scmp.eq.s32.totalorder %s28, 1
      %p340 = scmp.ne.s32.totalorder %s335, %s337
      %p341 = scmp.eq.s32.totalorder %s28, 0
      %p342 = por %p340, %p341
      %p343 = scmp.ne.s32.totalorder %s335, %s337
      %p344 = scmp.eq.s32.totalorder %s33, 1
      %p345 = por %p343, %p344
      %p346 = scmp.ne.s32.totalorder %s337, %s338
      %p347 = scmp.eq.s32.totalorder %s33, 0
      %p348 = por %p346, %p347
      %p349 = scmp.ne.s32.totalorder %s337, %s338
      %p350 = scmp.eq.s32.totalorder %s34, 1
      %p351 = por %p349, %p350
      %p353 = scmp.ne.s32.totalorder %s338, %s352
      %p354 = scmp.eq.s32.totalorder %s34, 0
      %p355 = por %p353, %p354
      %s357 = sadd.s32 %s356, 1
      %p360 = scmp.eq.s32.totalorder %s28, 1
      %p361 = scmp.ne.s32.totalorder %s356, %s358
      %p362 = scmp.eq.s32.totalorder %s28, 0
      %p363 = por %p361, %p362
      %p364 = scmp.ne.s32.totalorder %s356, %s358
      %p365 = scmp.eq.s32.totalorder %s33, 1
      %p366 = por %p364, %p365
      %p367 = scmp.ne.s32.totalorder %s358, %s359
      %p368 = scmp.eq.s32.totalorder %s33, 0
      %p369 = por %p367, %p368
      %p370 = scmp.ne.s32.totalorder %s358, %s359
      %p371 = scmp.eq.s32.totalorder %s34, 1
      %p372 = por %p370, %p371
      %p374 = scmp.ne.s32.totalorder %s359, %s373
      %p375 = scmp.eq.s32.totalorder %s34, 0
      %p376 = por %p374, %p375
      %s378 = sadd.s32 %s377, 1
      %p381 = scmp.eq.s32.totalorder %s28, 1
      %p382 = scmp.ne.s32.totalorder %s377, %s379
      %p383 = scmp.eq.s32.totalorder %s28, 0
      %p384 = por %p382, %p383
      %p385 = scmp.ne.s32.totalorder %s377, %s379
      %p386 = scmp.eq.s32.totalorder %s33, 1
      %p387 = por %p385, %p386
      %p388 = scmp.ne.s32.totalorder %s379, %s380
      %p389 = scmp.eq.s32.totalorder %s33, 0
      %p390 = por %p388, %p389
      %p391 = scmp.ne.s32.totalorder %s379, %s380
      %p392 = scmp.eq.s32.totalorder %s34, 1
      %p393 = por %p391, %p392
      %p395 = scmp.ne.s32.totalorder %s380, %s394
      %p396 = scmp.eq.s32.totalorder %s34, 0
      %p397 = por %p395, %p396
      %s398 = ssub.s32 %s28, %s35
      %p399 = scmp.eq.s32.totalorder %s398, 0
      %s401 = sadd.s32 %s400, 1
      %s402 = scalar_select %p399, %s400, %s401
      %p405 = pneg %p399
      %p406 = scmp.eq.s32.totalorder %s28, 1
      %p407 = por %p405, %p406
      %p408 = scmp.ne.s32.totalorder %s400, %s403
      %p409 = scmp.eq.s32.totalorder %s28, 0
      %p410 = por %p408, %p409
      %p411 = scmp.ne.s32.totalorder %s400, %s403
      %p412 = scmp.eq.s32.totalorder %s33, 1
      %p413 = por %p411, %p412
      %p414 = scmp.ne.s32.totalorder %s403, %s404
      %p415 = scmp.eq.s32.totalorder %s33, 0
      %p416 = por %p414, %p415
      %p417 = scmp.ne.s32.totalorder %s403, %s404
      %p418 = scmp.eq.s32.totalorder %s34, 1
      %p419 = por %p417, %p418
      %p421 = scmp.ne.s32.totalorder %s404, %s420
      %p422 = scmp.eq.s32.totalorder %s34, 0
      %p423 = por %p421, %p422
      %p424 = scmp.le.s32.totalorder 1, %s28
      %p425 = scmp.lt.s32.totalorder %s28, 3
      %p426 = pnand %p424, %p425
      %p427 = pneg %p426
      // Predicated region
      $region9: #{tpu_custom_call.1} parent=5 // pred_check
        _
      $region10: #{tpu_custom_call.1} parent=5 // pred_check_branch
        %429 = sbr.rel (%p426) target = $region12
      $region11: #{tpu_custom_call.1} parent=5 // pred_region
        %s430 = ssub.s32 %s28, 1
        // Predicated region
        $region13: #{tpu_custom_call.1} parent=11 // pred_check
          %p431 = pneg %p75
        $region14: #{tpu_custom_call.1} parent=11 // pred_check_branch
          %433 = sbr.rel (%p431) target = $region16
        $region15: #{tpu_custom_call.1} parent=11 // pred_region
          _
        $region16: #{tpu_custom_call.1} parent=11 // pred_fallthru
          _
        // Predicated region
        $region17: #{tpu_custom_call.1} parent=11 // pred_check
          %p434 = pneg %p96
        $region18: #{tpu_custom_call.1} parent=11 // pred_check_branch
          %436 = sbr.rel (%p434) target = $region20
        $region19: #{tpu_custom_call.1} parent=11 // pred_region
          _
        $region20: #{tpu_custom_call.1} parent=11 // pred_fallthru
          _
        // Predicated region
        $region21: #{tpu_custom_call.1} parent=11 // pred_check
          %p437 = pneg %p117
        $region22: #{tpu_custom_call.1} parent=11 // pred_check_branch
          %439 = sbr.rel (%p437) target = $region24
        $region23: #{tpu_custom_call.1} parent=11 // pred_region
          _
        $region24: #{tpu_custom_call.1} parent=11 // pred_fallthru
          _
        // Predicated region
        $region25: #{tpu_custom_call.1} parent=11 // pred_check
          %p440 = pneg %p138
        $region26: #{tpu_custom_call.1} parent=11 // pred_check_branch
          %442 = sbr.rel (%p440) target = $region28
        $region27: #{tpu_custom_call.1} parent=11 // pred_region
          _
        $region28: #{tpu_custom_call.1} parent=11 // pred_fallthru
          _
        // Predicated region
        $region29: #{tpu_custom_call.1} parent=11 // pred_check
          %p443 = pneg %p159
        $region30: #{tpu_custom_call.1} parent=11 // pred_check_branch
          %445 = sbr.rel (%p443) target = $region32
        $region31: #{tpu_custom_call.1} parent=11 // pred_region
          %447 = vsyncadd [#allocation3], 0
          %s448 = sshll.u32 %s5, 4
          %s449 = int_to_ptr.hbm [resolvable:$true] %s448
          %s450 = sshll.u32 [#allocation2], 4
          %s451 = int_to_ptr.vmem [resolvable:$true] %s450
          %456 = dma.hbm_to_vmem [thread:$0]  %s449, 256, %s451, [#allocation3], 64, 64, 4
        $region32: #{tpu_custom_call.1} parent=11 // pred_fallthru
          _
        // Predicated region
        $region33: #{tpu_custom_call.1} parent=11 // pred_check
          %p457 = pneg %p180
        $region34: #{tpu_custom_call.1} parent=11 // pred_check_branch
          %459 = sbr.rel (%p457) target = $region36
        $region35: #{tpu_custom_call.1} parent=11 // pred_region
          _
        $region36: #{tpu_custom_call.1} parent=11 // pred_fallthru
          _
        // Predicated region
        $region37: #{tpu_custom_call.1} parent=11 // pred_check
          %p460 = pneg %p201
        $region38: #{tpu_custom_call.1} parent=11 // pred_check_branch
          %462 = sbr.rel (%p460) target = $region40
        $region39: #{tpu_custom_call.1} parent=11 // pred_region
          %464 = vsyncadd [#allocation6], 0
          %s465 = sshll.u32 %s7, 4
          %s466 = int_to_ptr.hbm [resolvable:$true] %s465
          %s467 = sshll.u32 [#allocation5], 4
          %s468 = int_to_ptr.vmem [resolvable:$true] %s467
          %473 = dma.hbm_to_vmem [thread:$0]  %s466, 256, %s468, [#allocation6], 64, 64, 4
        $region40: #{tpu_custom_call.1} parent=11 // pred_fallthru
          _
        // Predicated region
        $region41: #{tpu_custom_call.1} parent=11 // pred_check
          %p474 = pneg %p222
        $region42: #{tpu_custom_call.1} parent=11 // pred_check_branch
          %476 = sbr.rel (%p474) target = $region44
        $region43: #{tpu_custom_call.1} parent=11 // pred_region
          _
        $region44: #{tpu_custom_call.1} parent=11 // pred_fallthru
          _
        // Predicated region
        $region45: #{tpu_custom_call.1} parent=11 // pred_check
          %p477 = pneg %p243
        $region46: #{tpu_custom_call.1} parent=11 // pred_check_branch
          %479 = sbr.rel (%p477) target = $region48
        $region47: #{tpu_custom_call.1} parent=11 // pred_region
          _
        $region48: #{tpu_custom_call.1} parent=11 // pred_fallthru
          _
        // Predicated region
        $region49: #{tpu_custom_call.1} parent=11 // pred_check
          %p480 = pneg %p264
        $region50: #{tpu_custom_call.1} parent=11 // pred_check_branch
          %482 = sbr.rel (%p480) target = $region52
        $region51: #{tpu_custom_call.1} parent=11 // pred_region
          _
        $region52: #{tpu_custom_call.1} parent=11 // pred_fallthru
          _
        // Predicated region
        $region53: #{tpu_custom_call.1} parent=11 // pred_check
          %p483 = pneg %p285
        $region54: #{tpu_custom_call.1} parent=11 // pred_check_branch
          %485 = sbr.rel (%p483) target = $region56
        $region55: #{tpu_custom_call.1} parent=11 // pred_region
          %487 = vsyncadd [#allocation6], 0
          %s488 = sshll.u32 %s11, 4
          %s489 = int_to_ptr.hbm [resolvable:$true] %s488
          %s490 = sshll.u32 [#allocation7], 4
          %s491 = int_to_ptr.vmem [resolvable:$true] %s490
          %496 = dma.hbm_to_vmem [thread:$0]  %s489, 256, %s491, [#allocation6], 64, 64, 4
        $region56: #{tpu_custom_call.1} parent=11 // pred_fallthru
          _
        // Predicated region
        $region57: #{tpu_custom_call.1} parent=11 // pred_check
          %p497 = pneg %p306
        $region58: #{tpu_custom_call.1} parent=11 // pred_check_branch
          %499 = sbr.rel (%p497) target = $region60
        $region59: #{tpu_custom_call.1} parent=11 // pred_region
          _
        $region60: #{tpu_custom_call.1} parent=11 // pred_fallthru
          _
        // Predicated region
        $region61: #{tpu_custom_call.1} parent=11 // pred_check
          %p500 = pneg %p327
        $region62: #{tpu_custom_call.1} parent=11 // pred_check_branch
          %502 = sbr.rel (%p500) target = $region64
        $region63: #{tpu_custom_call.1} parent=11 // pred_region
          _
        $region64: #{tpu_custom_call.1} parent=11 // pred_fallthru
          _
        // Predicated region
        $region65: #{tpu_custom_call.1} parent=11 // pred_check
          %p503 = pneg %p348
        $region66: #{tpu_custom_call.1} parent=11 // pred_check_branch
          %505 = sbr.rel (%p503) target = $region68
        $region67: #{tpu_custom_call.1} parent=11 // pred_region
          _
        $region68: #{tpu_custom_call.1} parent=11 // pred_fallthru
          _
        // Predicated region
        $region69: #{tpu_custom_call.1} parent=11 // pred_check
          %p506 = pneg %p369
        $region70: #{tpu_custom_call.1} parent=11 // pred_check_branch
          %508 = sbr.rel (%p506) target = $region72
        $region71: #{tpu_custom_call.1} parent=11 // pred_region
          _
        $region72: #{tpu_custom_call.1} parent=11 // pred_fallthru
          _
        // Predicated region
        $region73: #{tpu_custom_call.1} parent=11 // pred_check
          %p509 = pneg %p390
        $region74: #{tpu_custom_call.1} parent=11 // pred_check_branch
          %511 = sbr.rel (%p509) target = $region76
        $region75: #{tpu_custom_call.1} parent=11 // pred_region
          _
        $region76: #{tpu_custom_call.1} parent=11 // pred_fallthru
          _
      $region12: #{tpu_custom_call.1} parent=5 // pred_fallthru
        _
      %p512 = scmp.lt.s32.totalorder %s28, 2
      // Predicated region
      $region77: #{tpu_custom_call.1} parent=5 // pred_check
        %p513 = pneg %p512
      $region78: #{tpu_custom_call.1} parent=5 // pred_check_branch
        %515 = sbr.rel (%p513) target = $region80
      $region79: #{tpu_custom_call.1} parent=5 // pred_region
        // Predicated region
        $region81: #{tpu_custom_call.1} parent=79 // pred_check
          %p516 = pneg %p48
        $region82: #{tpu_custom_call.1} parent=79 // pred_check_branch
          %518 = sbr.rel (%p516) target = $region84
        $region83: #{tpu_custom_call.1} parent=79 // pred_region
          %p519 = scmp.lt.s32.totalorder %s28, 1
          %s520 = scalar_select %p519, %s28, 1
          %s521 = smul.addr %s520, 8
          %s522 = scalar_lea.vmem %s0, %s521
        $region84: #{tpu_custom_call.1} parent=79 // pred_fallthru
          _
      $region80: #{tpu_custom_call.1} parent=5 // pred_fallthru
        _
      %p523 = scmp.le.s32.totalorder 1, %s28
      %p524 = scmp.lt.s32.totalorder %s28, 3
      %p525 = pnand %p523, %p524
      %p526 = pneg %p525
      // Predicated region
      $region85: #{tpu_custom_call.1} parent=5 // pred_check
        _
      $region86: #{tpu_custom_call.1} parent=5 // pred_check_branch
        %528 = sbr.rel (%p525) target = $region88
      $region87: #{tpu_custom_call.1} parent=5 // pred_region
        %s529 = ssub.s32 %s28, 1
        // Predicated region
        $region89: #{tpu_custom_call.1} parent=87 // pred_check
          %p530 = pneg %p159
        $region90: #{tpu_custom_call.1} parent=87 // pred_check_branch
          %532 = sbr.rel (%p530) target = $region92
        $region91: #{tpu_custom_call.1} parent=87 // pred_region
          %534 = dma.done [#allocation3], 256
        $region92: #{tpu_custom_call.1} parent=87 // pred_fallthru
          _
        // Predicated region
        $region93: #{tpu_custom_call.1} parent=87 // pred_check
          %p535 = pneg %p201
        $region94: #{tpu_custom_call.1} parent=87 // pred_check_branch
          %537 = sbr.rel (%p535) target = $region96
        $region95: #{tpu_custom_call.1} parent=87 // pred_region
          %539 = dma.done [#allocation6], 256
        $region96: #{tpu_custom_call.1} parent=87 // pred_fallthru
          _
        // Predicated region
        $region97: #{tpu_custom_call.1} parent=87 // pred_check
          %p540 = pneg %p285
        $region98: #{tpu_custom_call.1} parent=87 // pred_check_branch
          %542 = sbr.rel (%p540) target = $region100
        $region99: #{tpu_custom_call.1} parent=87 // pred_region
          %544 = dma.done [#allocation6], 256
        $region100: #{tpu_custom_call.1} parent=87 // pred_fallthru
          _
        %p545 = scmp.lt.s32.totalorder %s33, 1
        %s546 = scalar_select %p545, %s33, 1
        %s547 = smul.addr %s546, 8
        %s548 = scalar_lea.vmem %s0, %s547
        %p549 = pneg %p54
        %p550 = pneg %p51
        %p551 = pneg %p75
        %p552 = pneg %p72
        %p553 = pneg %p96
        %p554 = pneg %p93
        %p555 = pneg %p117
        %p556 = pneg %p114
        %p557 = pneg %p138
        %p558 = pneg %p135
        %p559 = pneg %p159
        %p560 = pneg %p156
        %p561 = pneg %p180
        %p562 = pneg %p177
        %p563 = pneg %p201
        %p564 = pneg %p198
        %p565 = pneg %p222
        %p566 = pneg %p219
        %p567 = pneg %p243
        %p568 = pneg %p240
        %p569 = pneg %p264
        %p570 = pneg %p261
        %p571 = pneg %p285
        %p572 = pneg %p282
        %p573 = pneg %p306
        %p574 = pneg %p303
        %p575 = pneg %p327
        %p576 = pneg %p324
        %p577 = pneg %p348
        %p578 = pneg %p345
        %p579 = pneg %p369
        %p580 = pneg %p366
        %p581 = pneg %p390
        %p582 = pneg %p387
        %p583 = pneg %p416
        %p584 = pneg %p413
        %s585 = sand.u32 %s403, 1
        %s586 = scalar_lea.sflag [#allocation4], %s585
        %s587 = sand.u32 %s403, 1
        %s588 = smul.addr %s587, 8
        %s589 = scalar_lea.vmem [#allocation8], %s588
        %p590 = scmp.lt.s32.totalorder %s33, 1
        %s591 = scalar_select %p590, %s33, 1
        %s592 = smul.addr %s591, 8
        %s593 = scalar_lea.vmem %s0, %s592
        %v595 = vld [vmem:[%s593] sm:$0xff]
        %v596 = vpack.c.bf16 %v595, %v595
        %v597 = vld [vmem:[%s1] sm:$0xf]
        %v598 = vld [vmem:[%s1 + $0x4] sm:$0xf]
        %v599 = vld [vmem:[%s1 + $0x8] sm:$0xf]
        %v600 = vld [vmem:[%s1 + $0xc] sm:$0xf]
        %v601 = vld [vmem:[%s2] sm:$0x1]
        %v603 = vperm.slane %v601, 0
        %v609 = vunpack.c.l.b16 %v597
        %v610 = vunpack.c.l.b16 %v598
        %v611 = vunpack.c.l.b16 %v599
        %v612 = vunpack.c.l.b16 %v600
        %v613 = vpack.c.b16 %v610, %v609
        %v614 = vpack.c.b16 %v612, %v611
        %vm617 = vcmask 261120
        %v619 = vsel %vm617, %v596, 0
        %621 = vmatpush.bf16.msra.mxu0 0
        %622 = vmatpush.bf16.msra.mxu0 0
        %623 = vmatpush.bf16.msra.mxu0 0
        %624 = vmatpush.bf16.msra.mxu0 0
        %625 = vmatpush.bf16.msra.mxu0 0
        %626 = vmatpush.bf16.msra.mxu0 0
        %627 = vmatpush.bf16.msra.mxu0 %v614
        %628 = vmatpush.bf16.msra.mxu0 %v613
        %629 = vmatmul.bf16.gmra.mxu0 %v619
        %v630 = vpop.f32.mrf.mxu0
        %v631 = vadd.f32 %v603, %v630
        %v632 = vpop.f32.mrf.mxu0
        %633 = vdwg.mxu0
        %v634 = vmul.f32 %v631, 0.35355338
        %v635 = vpack.c.bf16 %v634, %v634
        %v636 = vld [vmem:[%s3] sm:$0xf]
        %v637 = vld [vmem:[%s3 + $0x4] sm:$0xf]
        %v638 = vld [vmem:[%s3 + $0x8] sm:$0xf]
        %v639 = vld [vmem:[%s3 + $0xc] sm:$0xf]
        %v640 = vld [vmem:[%s4] sm:$0x1]
        %v642 = vperm.slane %v640, 0
        %v648 = vunpack.c.l.b16 %v636
        %v649 = vunpack.c.l.b16 %v637
        %v650 = vunpack.c.l.b16 %v638
        %v651 = vunpack.c.l.b16 %v639
        %v652 = vpack.c.b16 %v649, %v648
        %v653 = vpack.c.b16 %v651, %v650
        %656 = vmatpush.bf16.msra.mxu0 0
        %657 = vmatpush.bf16.msra.mxu0 0
        %658 = vmatpush.bf16.msra.mxu0 0
        %659 = vmatpush.bf16.msra.mxu0 0
        %660 = vmatpush.bf16.msra.mxu0 0
        %661 = vmatpush.bf16.msra.mxu0 0
        %662 = vmatpush.bf16.msra.mxu0 %v653
        %663 = vmatpush.bf16.msra.mxu0 %v652
        %664 = vmatmul.bf16.gmra.mxu0 %v619
        %v665 = vpop.f32.mrf.mxu0
        %v666 = vadd.f32 %v642, %v665
        %v667 = vpop.f32.mrf.mxu0
        %668 = vdwg.mxu0
        %v669 = vpack.c.bf16 %v666, %v666
        %v670 = vld [vmem:[#allocation2] sm:$0xf]
        %v671 = vld [vmem:[#allocation2 + $0x4] sm:$0xf]
        %v672 = vld [vmem:[#allocation2 + $0x8] sm:$0xf]
        %v673 = vld [vmem:[#allocation2 + $0xc] sm:$0xf]
        %v674 = vld [vmem:[%s6] sm:$0x1]
        %v676 = vperm.slane %v674, 0
        %v682 = vunpack.c.l.b16 %v670
        %v683 = vunpack.c.l.b16 %v671
        %v684 = vunpack.c.l.b16 %v672
        %v685 = vunpack.c.l.b16 %v673
        %v686 = vpack.c.b16 %v683, %v682
        %v687 = vpack.c.b16 %v685, %v684
        %690 = vmatpush.bf16.msra.mxu0 0
        %691 = vmatpush.bf16.msra.mxu0 0
        %692 = vmatpush.bf16.msra.mxu0 0
        %693 = vmatpush.bf16.msra.mxu0 0
        %694 = vmatpush.bf16.msra.mxu0 0
        %695 = vmatpush.bf16.msra.mxu0 0
        %696 = vmatpush.bf16.msra.mxu0 %v687
        %697 = vmatpush.bf16.msra.mxu0 %v686
        %698 = vmatmul.bf16.gmra.mxu0 %v619
        %v699 = vpop.f32.mrf.mxu0
        %v700 = vadd.f32 %v676, %v699
        %v701 = vpop.f32.mrf.mxu0
        %702 = vdwg.mxu0
        %v703 = vpack.c.bf16 %v700, %v700
        %705 = vrot.lane.b32.xlu0 %v635, 120
        %v706 = vpop.permute.xlu0 %705
        %707 = vrot.lane.b32.xlu0 %v635, 112
        %v708 = vpop.permute.xlu0 %707
        %709 = vrot.lane.b32.xlu0 %v635, 104
        %v710 = vpop.permute.xlu0 %709
        %712 = vrot.lane.b32.xlu0 %v669, 120
        %v713 = vpop.permute.xlu0 %712
        %714 = vrot.lane.b32.xlu0 %v669, 112
        %v715 = vpop.permute.xlu0 %714
        %716 = vrot.lane.b32.xlu0 %v669, 104
        %v717 = vpop.permute.xlu0 %716
        %719 = vrot.lane.b32.xlu0 %v703, 120
        %v720 = vpop.permute.xlu0 %719
        %721 = vrot.lane.b32.xlu0 %v703, 112
        %v722 = vpop.permute.xlu0 %721
        %723 = vrot.lane.b32.xlu0 %v703, 104
        %v724 = vpop.permute.xlu0 %723
        %vm725 = vcmask 64512
        %v727 = vsel %vm725, %v635, 0
        %v730 = vsel %vm725, %v669, 0
        %732 = vmatpush.bf16.xpose.msra.mxu0 0
        %733 = vmatpush.bf16.xpose.msra.mxu0 0
        %734 = vmatpush.bf16.xpose.msra.mxu0 0
        %735 = vmatpush.bf16.xpose.msra.mxu0 0
        %736 = vmatpush.bf16.xpose.msra.mxu0 0
        %737 = vmatpush.bf16.xpose.msra.mxu0 0
        %738 = vmatpush.bf16.xpose.msra.mxu0 0
        %739 = vmatpush.bf16.xpose.msra.mxu0 %v730
        %740 = vmatmul.bf16.gmra.mxu0 %v727
        %v741 = vpop.f32.mrf.mxu0
        %v742 = vadd.f32 0.0, %v741
        %v743 = vpop.f32.mrf.mxu0
        %744 = vdwg.mxu0
        %v746 = vsel %vm725, %v706, 0
        %v749 = vsel %vm725, %v713, 0
        %751 = vmatpush.bf16.xpose.msra.mxu0 0
        %752 = vmatpush.bf16.xpose.msra.mxu0 0
        %753 = vmatpush.bf16.xpose.msra.mxu0 0
        %754 = vmatpush.bf16.xpose.msra.mxu0 0
        %755 = vmatpush.bf16.xpose.msra.mxu0 0
        %756 = vmatpush.bf16.xpose.msra.mxu0 0
        %757 = vmatpush.bf16.xpose.msra.mxu0 0
        %758 = vmatpush.bf16.xpose.msra.mxu0 %v749
        %759 = vmatmul.bf16.gmra.mxu0 %v746
        %v760 = vpop.f32.mrf.mxu0
        %v761 = vadd.f32 0.0, %v760
        %v762 = vpop.f32.mrf.mxu0
        %763 = vdwg.mxu0
        %v765 = vsel %vm725, %v708, 0
        %v768 = vsel %vm725, %v715, 0
        %770 = vmatpush.bf16.xpose.msra.mxu0 0
        %771 = vmatpush.bf16.xpose.msra.mxu0 0
        %772 = vmatpush.bf16.xpose.msra.mxu0 0
        %773 = vmatpush.bf16.xpose.msra.mxu0 0
        %774 = vmatpush.bf16.xpose.msra.mxu0 0
        %775 = vmatpush.bf16.xpose.msra.mxu0 0
        %776 = vmatpush.bf16.xpose.msra.mxu0 0
        %777 = vmatpush.bf16.xpose.msra.mxu0 %v768
        %778 = vmatmul.bf16.gmra.mxu0 %v765
        %v779 = vpop.f32.mrf.mxu0
        %v780 = vadd.f32 0.0, %v779
        %v781 = vpop.f32.mrf.mxu0
        %782 = vdwg.mxu0
        %v784 = vsel %vm725, %v710, 0
        %v787 = vsel %vm725, %v717, 0
        %789 = vmatpush.bf16.xpose.msra.mxu0 0
        %790 = vmatpush.bf16.xpose.msra.mxu0 0
        %791 = vmatpush.bf16.xpose.msra.mxu0 0
        %792 = vmatpush.bf16.xpose.msra.mxu0 0
        %793 = vmatpush.bf16.xpose.msra.mxu0 0
        %794 = vmatpush.bf16.xpose.msra.mxu0 0
        %795 = vmatpush.bf16.xpose.msra.mxu0 0
        %796 = vmatpush.bf16.xpose.msra.mxu0 %v787
        %797 = vmatmul.bf16.gmra.mxu0 %v784
        %v798 = vpop.f32.mrf.mxu0
        %v799 = vadd.f32 0.0, %v798
        %v800 = vpop.f32.mrf.mxu0
        %801 = vdwg.mxu0
        %v802 = vsel %vm725, %v742, -inf
        %803 = vmax.xlane.f32.xlu0 %v802
        %v804 = vpop.xlane.xlu0 %803
        %v805 = vsel %vm725, %v761, -inf
        %806 = vmax.xlane.f32.xlu0 %v805
        %v807 = vpop.xlane.xlu0 %806
        %v808 = vsel %vm725, %v780, -inf
        %809 = vmax.xlane.f32.xlu0 %v808
        %v810 = vpop.xlane.xlu0 %809
        %v811 = vsel %vm725, %v799, -inf
        %812 = vmax.xlane.f32.xlu0 %v811
        %v813 = vpop.xlane.xlu0 %812
        %v814 = vsub.f32 %v742, %v804
        %v815 = vsub.f32 %v761, %v807
        %v816 = vsub.f32 %v780, %v810
        %v817 = vsub.f32 %v799, %v813
        %v818 = vmul.f32 %v814, 1.442695
        %v819 = vpow.pop %v818
        %v820 = vmul.f32 %v815, 1.442695
        %v821 = vpow.pop %v820
        %v822 = vmul.f32 %v816, 1.442695
        %v823 = vpow.pop %v822
        %v824 = vmul.f32 %v817, 1.442695
        %v825 = vpow.pop %v824
        %v826 = vsel %vm725, %v819, 0.0
        %827 = vadd.xlane.f32.xlu0 %v826
        %v828 = vpop.xlane.xlu0 %827
        %v829 = vsel %vm725, %v821, 0.0
        %830 = vadd.xlane.f32.xlu0 %v829
        %v831 = vpop.xlane.xlu0 %830
        %v832 = vsel %vm725, %v823, 0.0
        %833 = vadd.xlane.f32.xlu0 %v832
        %v834 = vpop.xlane.xlu0 %833
        %v835 = vsel %vm725, %v825, 0.0
        %836 = vadd.xlane.f32.xlu0 %v835
        %v837 = vpop.xlane.xlu0 %836
        %v838 = vrcp.pop %v828
        %v839 = vrcp.pop %v831
        %v840 = vrcp.pop %v834
        %v841 = vrcp.pop %v837
        %v842 = vmul.f32 %v819, %v838
        %v843 = vmul.f32 %v821, %v839
        %v844 = vmul.f32 %v823, %v840
        %v845 = vmul.f32 %v825, %v841
        %v846 = vpack.c.bf16 %v842, %v842
        %v847 = vpack.c.bf16 %v843, %v843
        %v848 = vpack.c.bf16 %v844, %v844
        %v849 = vpack.c.bf16 %v845, %v845
        %v851 = vsel %vm725, %v846, 0
        %vm853 = vcmask 1043456
        %v855 = vsel %vm853, %v703, 0
        %857 = vmatpush.bf16.msra.mxu0 0
        %858 = vmatpush.bf16.msra.mxu0 0
        %859 = vmatpush.bf16.msra.mxu0 0
        %860 = vmatpush.bf16.msra.mxu0 0
        %861 = vmatpush.bf16.msra.mxu0 0
        %862 = vmatpush.bf16.msra.mxu0 0
        %863 = vmatpush.bf16.msra.mxu0 0
        %864 = vmatpush.bf16.msra.mxu0 %v855
        %865 = vmatmul.bf16.gmra.mxu0 %v851
        %v866 = vpop.f32.mrf.mxu0
        %v867 = vadd.f32 0.0, %v866
        %v868 = vpop.f32.mrf.mxu0
        %869 = vdwg.mxu0
        %v871 = vsel %vm725, %v847, 0
        %v874 = vsel %vm853, %v720, 0
        %876 = vmatpush.bf16.msra.mxu0 0
        %877 = vmatpush.bf16.msra.mxu0 0
        %878 = vmatpush.bf16.msra.mxu0 0
        %879 = vmatpush.bf16.msra.mxu0 0
        %880 = vmatpush.bf16.msra.mxu0 0
        %881 = vmatpush.bf16.msra.mxu0 0
        %882 = vmatpush.bf16.msra.mxu0 0
        %883 = vmatpush.bf16.msra.mxu0 %v874
        %884 = vmatmul.bf16.gmra.mxu0 %v871
        %v885 = vpop.f32.mrf.mxu0
        %v886 = vadd.f32 0.0, %v885
        %v887 = vpop.f32.mrf.mxu0
        %888 = vdwg.mxu0
        %v890 = vsel %vm725, %v848, 0
        %v893 = vsel %vm853, %v722, 0
        %895 = vmatpush.bf16.msra.mxu0 0
        %896 = vmatpush.bf16.msra.mxu0 0
        %897 = vmatpush.bf16.msra.mxu0 0
        %898 = vmatpush.bf16.msra.mxu0 0
        %899 = vmatpush.bf16.msra.mxu0 0
        %900 = vmatpush.bf16.msra.mxu0 0
        %901 = vmatpush.bf16.msra.mxu0 0
        %902 = vmatpush.bf16.msra.mxu0 %v893
        %903 = vmatmul.bf16.gmra.mxu0 %v890
        %v904 = vpop.f32.mrf.mxu0
        %v905 = vadd.f32 0.0, %v904
        %v906 = vpop.f32.mrf.mxu0
        %907 = vdwg.mxu0
        %v909 = vsel %vm725, %v849, 0
        %v912 = vsel %vm853, %v724, 0
        %914 = vmatpush.bf16.msra.mxu0 0
        %915 = vmatpush.bf16.msra.mxu0 0
        %916 = vmatpush.bf16.msra.mxu0 0
        %917 = vmatpush.bf16.msra.mxu0 0
        %918 = vmatpush.bf16.msra.mxu0 0
        %919 = vmatpush.bf16.msra.mxu0 0
        %920 = vmatpush.bf16.msra.mxu0 0
        %921 = vmatpush.bf16.msra.mxu0 %v912
        %922 = vmatmul.bf16.gmra.mxu0 %v909
        %v923 = vpop.f32.mrf.mxu0
        %v924 = vadd.f32 0.0, %v923
        %v925 = vpop.f32.mrf.mxu0
        %926 = vdwg.mxu0
        %v927 = vpack.c.bf16 %v867, %v867
        %v928 = vpack.c.bf16 %v886, %v886
        %v929 = vpack.c.bf16 %v905, %v905
        %v930 = vpack.c.bf16 %v924, %v924
        %v932 = vunpack.c.l.b16 %v928
        %v933 = vpack.c.b16 %v932, %v932
        %934 = vrot.lane.b32.xlu0 %v933, 8
        %v935 = vpop.permute.xlu0 %934
        %v937 = vunpack.c.l.b16 %v929
        %v938 = vpack.c.b16 %v937, %v937
        %939 = vrot.lane.b32.xlu0 %v938, 16
        %v940 = vpop.permute.xlu0 %939
        %v942 = vunpack.c.l.b16 %v930
        %v943 = vpack.c.b16 %v942, %v942
        %944 = vrot.lane.b32.xlu0 %v943, 24
        %v945 = vpop.permute.xlu0 %944
        %v948 = vsel %vm725, %v927, %v935
        %vm949 = vcmask 130048
        %v951 = vsel %vm949, %v948, %v940
        %vm952 = vcmask 195584
        %v954 = vsel %vm952, %v951, %v945
        %v955 = vld [vmem:[#allocation5] sm:$0xf]
        %v956 = vld [vmem:[#allocation5 + $0x4] sm:$0xf]
        %v957 = vld [vmem:[#allocation5 + $0x8] sm:$0xf]
        %v958 = vld [vmem:[#allocation5 + $0xc] sm:$0xf]
        %v959 = vld [vmem:[%s8] sm:$0x1]
        %v961 = vperm.slane %v959, 0
        %v967 = vunpack.c.l.b16 %v955
        %v968 = vunpack.c.l.b16 %v956
        %v969 = vunpack.c.l.b16 %v957
        %v970 = vunpack.c.l.b16 %v958
        %v971 = vpack.c.b16 %v968, %v967
        %v972 = vpack.c.b16 %v970, %v969
        %v975 = vsel %vm617, %v954, 0
        %977 = vmatpush.bf16.msra.mxu0 0
        %978 = vmatpush.bf16.msra.mxu0 0
        %979 = vmatpush.bf16.msra.mxu0 0
        %980 = vmatpush.bf16.msra.mxu0 0
        %981 = vmatpush.bf16.msra.mxu0 0
        %982 = vmatpush.bf16.msra.mxu0 0
        %983 = vmatpush.bf16.msra.mxu0 %v972
        %984 = vmatpush.bf16.msra.mxu0 %v971
        %985 = vmatmul.bf16.gmra.mxu0 %v975
        %v986 = vpop.f32.mrf.mxu0
        %v987 = vadd.f32 %v961, %v986
        %v988 = vpop.f32.mrf.mxu0
        %989 = vdwg.mxu0
        %v990 = vadd.f32 %v987, %v595
        %v991 = vld [vmem:[%s9] sm:$0x1]
        %v992 = vld [vmem:[%s10] sm:$0x1]
        %v993 = vsel %vm617, %v990, 0.0
        %994 = vadd.xlane.f32.xlu0 %v993
        %v995 = vpop.xlane.xlu0 %994
        %v996 = vrcp.pop 32.0
        %v997 = vmul.f32 32.0, %v996
        %v998 = vsub.f32 1.0, %v997
        %v999 = vmul.f32 %v996, %v998
        %v1000 = vadd.f32 %v996, %v999
        %vm1001 = vweird.f32 %v996
        %v1002 = vsel %vm1001, %v996, %v1000
        %v1003 = vmul.f32 %v995, %v1002
        %v1004 = vsub.f32 %v990, %v1003
        %v1005 = vmul.f32 %v1004, %v1004
        %v1006 = vsel %vm617, %v1005, 0.0
        %1007 = vadd.xlane.f32.xlu0 %v1006
        %v1008 = vpop.xlane.xlu0 %1007
        %v1009 = vmul.f32 %v1008, %v1002
        %v1010 = vadd.f32 %v1009, 1e-05
        %v1011 = vrsqrt.pop %v1010
        %v1012 = vmul.f32 %v1011, %v1010
        %v1013 = vmul.f32 %v1012, %v1011
        %v1014 = vmul.f32 0.5, %v1013
        %v1015 = vsub.f32 1.5, %v1014
        %v1016 = vmul.f32 %v1011, %v1015
        %vm1017 = vweird.f32 %v1010
        %vm1018 = vweird.f32 %v1011
        %vm1019 = vmor %vm1017, %vm1018
        %v1020 = vsel %vm1019, %v1011, %v1016
        %v1021 = vmul.f32 %v1004, %v1020
        %v1023 = vperm.slane %v991, 0
        %v1025 = vmul.f32 %v1021, %v1023
        %v1027 = vperm.slane %v992, 0
        %v1029 = vadd.f32 %v1025, %v1027
        %v1030 = vpack.c.bf16 %v1029, %v1029
        %v1031 = vld [vmem:[#allocation7] sm:$0xf]
        %v1032 = vld [vmem:[#allocation7 + $0x4] sm:$0xf]
        %v1033 = vld [vmem:[#allocation7 + $0x8] sm:$0xf]
        %v1034 = vld [vmem:[#allocation7 + $0xc] sm:$0xf]
        %v1035 = vld [vmem:[%s12] sm:$0x1]
        %v1037 = vperm.slane %v1035, 0
        %v1043 = vunpack.c.l.b16 %v1031
        %v1044 = vunpack.c.l.b16 %v1032
        %v1045 = vunpack.c.l.b16 %v1033
        %v1046 = vunpack.c.l.b16 %v1034
        %v1047 = vpack.c.b16 %v1044, %v1043
        %v1048 = vpack.c.b16 %v1046, %v1045
        %v1052 = vsel %vm617, %v1030, 0
        %1054 = vmatpush.bf16.msra.mxu0 0
        %1055 = vmatpush.bf16.msra.mxu0 0
        %1056 = vmatpush.bf16.msra.mxu0 0
        %1057 = vmatpush.bf16.msra.mxu0 0
        %1058 = vmatpush.bf16.msra.mxu0 0
        %1059 = vmatpush.bf16.msra.mxu0 0
        %1060 = vmatpush.bf16.msra.mxu0 %v1048
        %1061 = vmatpush.bf16.msra.mxu0 %v1047
        %1062 = vmatmul.bf16.gmra.mxu0 %v1052
        %v1063 = vpop.f32.mrf.mxu0
        %v1064 = vadd.f32 %v1037, %v1063
        %v1065 = vpop.f32.mrf.mxu0
        %1066 = vdwg.mxu0
        %v1067 = vmul.f32 %v1064, 0.5
        %v1068 = vmul.f32 %v1064, 0.044715
        %v1069 = vmul.f32 %v1068, %v1064
        %v1070 = vmul.f32 %v1069, %v1064
        %v1071 = vadd.f32 %v1064, %v1070
        %v1072 = vmul.f32 %v1071, 0.7978846
        %v1073 = vtanh.pop %v1072
        %v1074 = vadd.f32 %v1073, 1.0
        %v1075 = vmul.f32 %v1067, %v1074
        %v1076 = vpack.c.bf16 %v1075, %v1075
        %v1077 = vld [vmem:[%s13] sm:$0xf]
        %v1078 = vld [vmem:[%s13 + $0x4] sm:$0xf]
        %v1079 = vld [vmem:[%s13 + $0x8] sm:$0xf]
        %v1080 = vld [vmem:[%s13 + $0xc] sm:$0xf]
        %v1081 = vld [vmem:[%s13 + $0x10] sm:$0xf]
        %v1082 = vld [vmem:[%s13 + $0x14] sm:$0xf]
        %v1083 = vld [vmem:[%s13 + $0x18] sm:$0xf]
        %v1084 = vld [vmem:[%s13 + $0x1c] sm:$0xf]
        %v1085 = vld [vmem:[%s14] sm:$0x1]
        %v1087 = vperm.slane %v1085, 0
        %v1097 = vunpack.c.l.b16 %v1077
        %v1098 = vunpack.c.l.b16 %v1078
        %v1099 = vunpack.c.l.b16 %v1079
        %v1100 = vunpack.c.l.b16 %v1080
        %v1101 = vunpack.c.l.b16 %v1081
        %v1102 = vunpack.c.l.b16 %v1082
        %v1103 = vunpack.c.l.b16 %v1083
        %v1104 = vunpack.c.l.b16 %v1084
        %v1105 = vpack.c.b16 %v1098, %v1097
        %v1106 = vpack.c.b16 %v1100, %v1099
        %v1107 = vpack.c.b16 %v1102, %v1101
        %v1108 = vpack.c.b16 %v1104, %v1103
        %vm1113 = vcmask 523264
        %v1115 = vsel %vm1113, %v1076, 0
        %1117 = vmatpush.bf16.msra.mxu0 0
        %1118 = vmatpush.bf16.msra.mxu0 0
        %1119 = vmatpush.bf16.msra.mxu0 0
        %1120 = vmatpush.bf16.msra.mxu0 0
        %1121 = vmatpush.bf16.msra.mxu0 %v1108
        %1122 = vmatpush.bf16.msra.mxu0 %v1107
        %1123 = vmatpush.bf16.msra.mxu0 %v1106
        %1124 = vmatpush.bf16.msra.mxu0 %v1105
        %1125 = vmatmul.bf16.gmra.mxu0 %v1115
        %v1126 = vpop.f32.mrf.mxu0
        %v1127 = vadd.f32 %v1087, %v1126
        %v1128 = vpop.f32.mrf.mxu0
        %1129 = vdwg.mxu0
        %v1130 = vadd.f32 %v1127, %v1029
        %v1131 = vld [vmem:[%s15] sm:$0x1]
        %v1132 = vld [vmem:[%s16] sm:$0x1]
        %v1133 = vsel %vm617, %v1130, 0.0
        %1134 = vadd.xlane.f32.xlu0 %v1133
        %v1135 = vpop.xlane.xlu0 %1134
        %v1136 = vmul.f32 %v1135, %v1002
        %v1137 = vsub.f32 %v1130, %v1136
        %v1138 = vmul.f32 %v1137, %v1137
        %v1139 = vsel %vm617, %v1138, 0.0
        %1140 = vadd.xlane.f32.xlu0 %v1139
        %v1141 = vpop.xlane.xlu0 %1140
        %v1142 = vmul.f32 %v1141, %v1002
        %v1143 = vadd.f32 %v1142, 1e-05
        %v1144 = vrsqrt.pop %v1143
        %v1145 = vmul.f32 %v1144, %v1143
        %v1146 = vmul.f32 %v1145, %v1144
        %v1147 = vmul.f32 0.5, %v1146
        %v1148 = vsub.f32 1.5, %v1147
        %v1149 = vmul.f32 %v1144, %v1148
        %vm1150 = vweird.f32 %v1143
        %vm1151 = vweird.f32 %v1144
        %vm1152 = vmor %vm1150, %vm1151
        %v1153 = vsel %vm1152, %v1144, %v1149
        %v1154 = vmul.f32 %v1137, %v1153
        %v1156 = vperm.slane %v1131, 0
        %v1158 = vmul.f32 %v1154, %v1156
        %v1160 = vperm.slane %v1132, 0
        %v1162 = vadd.f32 %v1158, %v1160
        %1163 = vst.msk [vmem:[%s589] sm:$0xff] %vm617, %v1162
        %s1164 = sand.u32 %s403, 1
        %s1165 = scalar_lea.sflag [#allocation4], %s1164
        %s1166 = sand.u32 %s403, 1
        %s1167 = smul.addr %s1166, 8
        %s1168 = scalar_lea.vmem [#allocation8], %s1167
        // Predicated region
        $region101: #{tpu_custom_call.1} parent=87 // pred_check
          %p1169 = pneg %p413
        $region102: #{tpu_custom_call.1} parent=87 // pred_check_branch
          %1171 = sbr.rel (%p1169) target = $region104
        $region103: #{tpu_custom_call.1} parent=87 // pred_region
          %1173 = vsyncadd %s1165, 0
          %s1174 = smul.addr %s33, 8
          %s1175 = scalar_lea.hbm %s17, %s1174
          %s1177 = sshll.u32 %s1168, 4
          %s1178 = int_to_ptr.vmem [resolvable:$true] %s1177
          %s1179 = sshll.u32 %s1175, 4
          %s1180 = int_to_ptr.hbm [resolvable:$true] %s1179
          %1182 = dma.vmem_to_hbm [thread:$0]  %s1178, 128, %s1180, %s1165
        $region104: #{tpu_custom_call.1} parent=87 // pred_fallthru
          _
      $region88: #{tpu_custom_call.1} parent=5 // pred_fallthru
        _
      %p1183 = scmp.le.s32.totalorder 2, %s28
      // Predicated region
      $region105: #{tpu_custom_call.1} parent=5 // pred_check
        %p1184 = pneg %p1183
      $region106: #{tpu_custom_call.1} parent=5 // pred_check_branch
        %1186 = sbr.rel (%p1184) target = $region108
      $region107: #{tpu_custom_call.1} parent=5 // pred_region
        %s1187 = ssub.s32 %s28, 2
        // Predicated region
        $region109: #{tpu_custom_call.1} parent=107 // pred_check
          %p1188 = pneg %p419
        $region110: #{tpu_custom_call.1} parent=107 // pred_check_branch
          %1190 = sbr.rel (%p1188) target = $region112
        $region111: #{tpu_custom_call.1} parent=107 // pred_region
          %s1191 = sand.u32 %s404, 1
          %s1192 = scalar_lea.sflag [#allocation4], %s1191
          %s1193 = sand.u32 %s404, 1
          %s1194 = smul.addr %s1193, 8
          %s1195 = scalar_lea.vmem [#allocation8], %s1194
          %1197 = dma.done %s1192, 128
        $region112: #{tpu_custom_call.1} parent=107 // pred_fallthru
          _
      $region108: #{tpu_custom_call.1} parent=5 // pred_fallthru
        _
    $region6: #{tpu_custom_call.1} parent=1 // loop_footer
      %s32 = sadd.s32 1, %s28
    $region7: #{tpu_custom_call.1} parent=1 // loop_footer_branch
      %27 = sbr.rel target = $region3
    $region8: #{tpu_custom_call.1} parent=1 // loop_exit
      _
    %1198 = vsyncpa [#allocation3], 1
    %s1199 = scalar_lea.sflag [#allocation3], 1
    %1200 = vsyncpa %s1199, 1
    %1201 = vsyncpa [#allocation6], 1
    %1202 = vsyncpa [#allocation4], 1
    %s1203 = scalar_lea.sflag [#allocation4], 1
    %1204 = vsyncpa %s1203, 1

</llo_original>
